<compile_context>
chip_gen: v6e
topology: v6e:2x2x1
jax: 0.10.0
libtpu: 0.0.40
codegen_flags: <defaults>
</compile_context>

<pallas_src>
import jax
import jax.numpy as jnp
from jax import lax
from jax.experimental import pallas as pl
from jax.experimental.pallas import tpu as pltpu

INPUT_SIZE = 1
H1 = 6        # hidden_layer1_size
O1 = 6        # output1_size
H2 = 12       # hidden_layer2_size
HH = H1 + H2  # stacked hidden size for the fused layer-2 matvec
OUT = 14      # output_size
SEQ = 16      # sequence length for the demo

# ---- packed slab layout: one (64, 128) float32 buffer, single input DMA ----
R_WH1 = 0     # rows  0..5   (H1, 4*H1)  lstm1 weight_hh^T         [gate-scaled]
R_WI1 = 6     # row   6      (1,  4*H1)  lstm1 weight_ih^T row     [gate-scaled]
R_B1 = 7      # row   7      (1,  4*H1)  b_ih1 + b_hh1             [gate-scaled]
R_W2 = 8      # rows  8..25  (HH, 4*H2)  [wl1@wi2 ; wh2] stacked   [gate-scaled]
R_B2 = 32     # row   32     (1,  4*H2)  bl1@wi2 + b_ih2 + b_hh2   [gate-scaled]
R_WL2T = 33   # rows  33..46 (OUT, H2)   linear2 weight (row-major) ; bias col at lane H2
R_X = 48      # rows  48..63 (SEQ, 1)    input sequence column (written per call)
SLAB_ROWS = 64
SLAB_COLS = 128


def morse_lstm_kernel(slab_ref, out_ref):
    f32 = jnp.float32

    # ---- hoisted, loop-invariant weight/bias loads ----
    wh1 = slab_ref[R_WH1:R_WH1 + H1, 0:4 * H1]        # (6, 24)
    wi1 = slab_ref[R_WI1:R_WI1 + 1, 0:4 * H1]         # (1, 24)
    b1 = slab_ref[R_B1:R_B1 + 1, 0:4 * H1]            # (1, 24)
    w2 = slab_ref[R_W2:R_W2 + HH, 0:4 * H2]           # (18, 48)
    b2 = slab_ref[R_B2:R_B2 + 1, 0:4 * H2]            # (1, 48)
    wl2t = slab_ref[R_WL2T:R_WL2T + OUT, 0:H2]        # (14, 12)
    bl2c = slab_ref[R_WL2T:R_WL2T + OUT, H2:H2 + 1]   # (14, 1)
    xcol = slab_ref[R_X:R_X + SEQ, 0:1]               # (16, 1)

    # Hoisted selector masks: place the (1,K) lane vectors h1 / h2 into
    # sublanes 0..5 / 6..17 of one (18,1) column (pure iota/cmp/mul/reduce,
    # guaranteed to lower; the h2 half is off the critical h1 chain).
    r1 = lax.broadcasted_iota(jnp.int32, (HH, H1), 0)
    q1 = lax.broadcasted_iota(jnp.int32, (HH, H1), 1)
    sel1 = (r1 == q1).astype(f32)                     # (18, 6)
    r2 = lax.broadcasted_iota(jnp.int32, (HH, H2), 0)
    q2 = lax.broadcasted_iota(jnp.int32, (HH, H2), 1)
    sel2 = (r2 == q2 + H1).astype(f32)                # (18, 12)

    # Layer-1 input projection for ALL time steps, hoisted out of the loop.
    xwb = xcol * wi1 + b1                             # (16, 24)

    hhc = jnp.zeros((HH, 1), f32)   # stacked [h1; h2] column, carried
    c1 = jnp.zeros((1, H1), f32)
    c2 = jnp.zeros((1, H2), f32)
    h2 = jnp.zeros((1, H2), f32)

    for t in range(SEQ):            # fully unrolled (SEQ is static)
        # ---------- LSTM layer 1 (hidden = H1) ----------
        g1 = xwb[t:t + 1, :] + jnp.sum(hhc[0:H1, :] * wh1, axis=0, keepdims=True)
        u1 = jnp.tanh(g1)                             # single EUP pass (weights pre-scaled)
        i1 = 0.5 * u1[:, 0 * H1:1 * H1] + 0.5
        f1 = 0.5 * u1[:, 1 * H1:2 * H1] + 0.5
        gg1 = u1[:, 2 * H1:3 * H1]
        o1 = 0.5 * u1[:, 3 * H1:4 * H1] + 0.5
        c1 = f1 * c1 + i1 * gg1
        h1 = o1 * jnp.tanh(c1)                        # (1, 6)

        # ---------- stacked [h1(t); h2(t-1)] column (one relayout site) ----------
        hhc = (jnp.sum(sel1 * h1, axis=1, keepdims=True)
               + jnp.sum(sel2 * h2, axis=1, keepdims=True))   # (18, 1)

        # ---------- LSTM layer 2 (Linear1 folded in, both matvecs fused) ----------
        g2 = b2 + jnp.sum(hhc * w2, axis=0, keepdims=True)    # (1, 48)
        u2 = jnp.tanh(g2)                             # single EUP pass
        i2 = 0.5 * u2[:, 0 * H2:1 * H2] + 0.5
        f2 = 0.5 * u2[:, 1 * H2:2 * H2] + 0.5
        gg2 = u2[:, 2 * H2:3 * H2]
        o2 = 0.5 * u2[:, 3 * H2:4 * H2] + 0.5
        c2 = f2 * c2 + i2 * gg2
        h2 = o2 * jnp.tanh(c2)                        # (1, 12)

    # Linear2 on the last hidden state, via the transposed weight so the
    # result comes out directly as a (OUT, 1) column (no final relayout).
    out_ref[...] = jnp.sum(h2 * wl2t, axis=1, keepdims=True) + bl2c


@jax.jit
def morse_lstm_forward(x, param_slab):
    x_col = x.reshape(SEQ, INPUT_SIZE).astype(jnp.float32)
    slab = param_slab.at[R_X:R_X + SEQ, 0:1].set(x_col)     # single-input kernel
    vmem = pl.BlockSpec(memory_space=pltpu.MemorySpace.VMEM)
    out = pl.pallas_call(
        morse_lstm_kernel,
        out_shape=jax.ShapeDtypeStruct((OUT, 1), jnp.float32),
        in_specs=[vmem],
        out_specs=vmem,
    )(slab)
    return out[:, 0]                                          # (OUT,)


# ----------------------------- parameter setup -----------------------------
def init_params(key):
    """Deterministic init mirroring PyTorch default layouts, pre-transposed
    so row-vector @ matrix products are the natural formulation."""
    ks = list(jax.random.split(key, 12))

    def u(k, shape, bound):
        return jax.random.uniform(k, shape, jnp.float32, -bound, bound)

    k1 = 1.0 / jnp.sqrt(H1)
    k2 = 1.0 / jnp.sqrt(H2)

    w_ih1 = u(ks[0], (4 * H1, INPUT_SIZE), k1)
    w_hh1 = u(ks[1], (4 * H1, H1), k1)
    b_ih1 = u(ks[2], (4 * H1,), k1)
    b_hh1 = u(ks[3], (4 * H1,), k1)
    w_l1 = u(ks[4], (O1, H1), k1)
    b_l1 = u(ks[5], (O1,), k1)
    w_ih2 = u(ks[6], (4 * H2, O1), k2)
    w_hh2 = u(ks[7], (4 * H2, H2), k2)
    b_ih2 = u(ks[8], (4 * H2,), k2)
    b_hh2 = u(ks[9], (4 * H2,), k2)
    w_l2 = u(ks[10], (OUT, H2), k2)
    b_l2 = u(ks[11], (OUT,), k2)

    return {
        "wi1": w_ih1.T, "wh1": w_hh1.T, "b1": (b_ih1 + b_hh1).reshape(1, -1),
        "wl1": w_l1.T, "bl1": b_l1.reshape(1, -1),
        "wi2": w_ih2.T, "wh2": w_hh2.T, "b2": (b_ih2 + b_hh2).reshape(1, -1),
        "wl2": w_l2.T, "bl2": b_l2.reshape(1, -1),
    }


def _gate_scale(h):
    # 0.5 on the i/f/o quarters (so sigmoid(x) = 0.5*tanh(x/2)+0.5 needs only
    # one in-kernel tanh per gate vector), 1.0 on the g quarter.  Exact.
    return jnp.concatenate([jnp.full((h,), 0.5), jnp.full((h,), 0.5),
                            jnp.ones((h,)), jnp.full((h,), 0.5)]).astype(jnp.float32)


def pack_params(p):
    """Fold Linear1 into LSTM2, pre-scale gate columns by 0.5, and pack all
    parameters into one (64, 128) float32 slab (single HBM->VMEM DMA)."""
    s1 = _gate_scale(H1)
    s2 = _gate_scale(H2)
    w12 = p["wl1"] @ p["wi2"]                    # (H1, 4*H2)
    b2p = p["bl1"] @ p["wi2"] + p["b2"]          # (1, 4*H2)
    w2 = jnp.concatenate([w12, p["wh2"]], axis=0)  # (HH, 4*H2), row-contiguous stack

    slab = jnp.zeros((SLAB_ROWS, SLAB_COLS), jnp.float32)

    def put(s, row, a):
        a = jnp.asarray(a, jnp.float32)
        return s.at[row:row + a.shape[0], 0:a.shape[1]].set(a)

    slab = put(slab, R_WH1, p["wh1"] * s1)
    slab = put(slab, R_WI1, p["wi1"] * s1)
    slab = put(slab, R_B1, p["b1"] * s1)
    slab = put(slab, R_W2, w2 * s2)
    slab = put(slab, R_B2, b2p * s2)
    slab = put(slab, R_WL2T, p["wl2"].T)                                  # (OUT, H2)
    slab = slab.at[R_WL2T:R_WL2T + OUT, H2:H2 + 1].set(p["bl2"].reshape(OUT, 1))
    return slab


# ------------------------------ pure-JAX reference ------------------------------
def reference_forward(x, p):
    """Direct (unfused, sigmoid-based) PyTorch-equivalent math for validation."""
    x2 = x.reshape(-1, INPUT_SIZE).astype(jnp.float32)
    h1 = jnp.zeros((1, H1)); c1 = jnp.zeros((1, H1))
    h2 = jnp.zeros((1, H2)); c2 = jnp.zeros((1, H2))

    def cell(x_t, h, c, wi, wh, b, hsz):
        g = x_t @ wi + h @ wh + b
        i = jax.nn.sigmoid(g[:, 0:hsz]); f = jax.nn.sigmoid(g[:, hsz:2 * hsz])
        gg = jnp.tanh(g[:, 2 * hsz:3 * hsz]); o = jax.nn.sigmoid(g[:, 3 * hsz:4 * hsz])
        c = f * c + i * gg
        return o * jnp.tanh(c), c

    for t in range(x2.shape[0]):
        x_t = x2[t:t + 1]
        h1, c1 = cell(x_t, h1, c1, p["wi1"], p["wh1"], p["b1"], H1)
        p1 = h1 @ p["wl1"] + p["bl1"]
        h2, c2 = cell(p1, h2, c2, p["wi2"], p["wh2"], p["b2"], H2)
    pred = h2 @ p["wl2"] + p["bl2"]
    # _sqmax in the original rebinds its local, so the returned tensor is untouched.
    return pred[0]


if __name__ == "__main__":
    key = jax.random.PRNGKey(0)
    kx, kp = jax.random.split(key)
    x = jax.random.normal(kx, (SEQ,), jnp.float32)     # input_seq, shape (T,)
    params = init_params(kp)
    slab = pack_params(params)

    out = jax.block_until_ready(morse_lstm_forward(x, slab))
    ref = reference_forward(x, params)

    assert out.shape == (OUT,)
    assert jnp.allclose(out, ref, atol=1e-4, rtol=1e-4), (out, ref)
    print("KERNEL_OK")
</pallas_src>

<mosaic_0001>
module attributes {stable_mosaic.version = 11 : i64} {
  func.func @morse_lstm_kernel(%arg0: memref<64x128xf32, #tpu.memory_space<vmem>>, %arg1: memref<14x1xf32, #tpu.memory_space<vmem>>) attributes {dimension_semantics = [], scalar_prefetch = 0 : i64, scratch_operands = 0 : i64, tpu.core_type = #tpu.core_type<tc>} {
    %c0 = arith.constant 0 : index
    %c0_0 = arith.constant 0 : index
    %0 = vector.load %arg0[%c0, %c0_0] : memref<64x128xf32, #tpu.memory_space<vmem>>, vector<6x24xf32>
    %c6 = arith.constant 6 : index
    %c0_1 = arith.constant 0 : index
    %1 = vector.load %arg0[%c6, %c0_1] : memref<64x128xf32, #tpu.memory_space<vmem>>, vector<1x24xf32>
    %c7 = arith.constant 7 : index
    %c0_2 = arith.constant 0 : index
    %2 = vector.load %arg0[%c7, %c0_2] : memref<64x128xf32, #tpu.memory_space<vmem>>, vector<1x24xf32>
    %c8 = arith.constant 8 : index
    %c0_3 = arith.constant 0 : index
    %3 = vector.load %arg0[%c8, %c0_3] : memref<64x128xf32, #tpu.memory_space<vmem>>, vector<18x48xf32>
    %c32 = arith.constant 32 : index
    %c0_4 = arith.constant 0 : index
    %4 = vector.load %arg0[%c32, %c0_4] : memref<64x128xf32, #tpu.memory_space<vmem>>, vector<1x48xf32>
    %c33 = arith.constant 33 : index
    %c0_5 = arith.constant 0 : index
    %5 = vector.load %arg0[%c33, %c0_5] : memref<64x128xf32, #tpu.memory_space<vmem>>, vector<14x12xf32>
    %c33_6 = arith.constant 33 : index
    %c12 = arith.constant 12 : index
    %6 = vector.load %arg0[%c33_6, %c12] : memref<64x128xf32, #tpu.memory_space<vmem>>, vector<14x1xf32>
    %c48 = arith.constant 48 : index
    %c0_7 = arith.constant 0 : index
    %7 = vector.load %arg0[%c48, %c0_7] : memref<64x128xf32, #tpu.memory_space<vmem>>, vector<16x1xf32>
    %8 = tpu.iota {dimensions = array<i32: 0>} : vector<18x6xi32>
    %9 = tpu.iota {dimensions = array<i32: 1>} : vector<18x6xi32>
    %10 = arith.cmpi eq, %8, %9 : vector<18x6xi32>
    %11 = arith.extui %10 : vector<18x6xi1> to vector<18x6xi32>
    %12 = arith.sitofp %11 : vector<18x6xi32> to vector<18x6xf32>
    %13 = tpu.iota {dimensions = array<i32: 0>} : vector<18x12xi32>
    %14 = tpu.iota {dimensions = array<i32: 1>} : vector<18x12xi32>
    %c6_i32 = arith.constant 6 : i32
    %15 = vector.broadcast %c6_i32 : i32 to vector<18x12xi32>
    %16 = arith.addi %14, %15 : vector<18x12xi32>
    %17 = arith.cmpi eq, %13, %16 : vector<18x12xi32>
    %18 = arith.extui %17 : vector<18x12xi1> to vector<18x12xi32>
    %19 = arith.sitofp %18 : vector<18x12xi32> to vector<18x12xf32>
    %20 = vector.broadcast %7 : vector<16x1xf32> to vector<16x24xf32>
    %21 = vector.broadcast %1 : vector<1x24xf32> to vector<16x24xf32>
    %22 = arith.mulf %20, %21 : vector<16x24xf32>
    %23 = vector.broadcast %2 : vector<1x24xf32> to vector<16x24xf32>
    %24 = arith.addf %22, %23 : vector<16x24xf32>
    %cst = arith.constant 0.000000e+00 : f32
    %25 = vector.broadcast %cst : f32 to vector<18x1xf32>
    %cst_8 = arith.constant 0.000000e+00 : f32
    %26 = vector.broadcast %cst_8 : f32 to vector<1x6xf32>
    %cst_9 = arith.constant 0.000000e+00 : f32
    %27 = vector.broadcast %cst_9 : f32 to vector<1x12xf32>
    %cst_10 = arith.constant 0.000000e+00 : f32
    %28 = vector.broadcast %cst_10 : f32 to vector<1x12xf32>
    %29 = vector.extract_strided_slice %24 {offsets = [0, 0], sizes = [1, 24], strides = [1, 1]} : vector<16x24xf32> to vector<1x24xf32>
    %30 = vector.extract_strided_slice %25 {offsets = [0, 0], sizes = [6, 1], strides = [1, 1]} : vector<18x1xf32> to vector<6x1xf32>
    %31 = vector.broadcast %30 : vector<6x1xf32> to vector<6x24xf32>
    %32 = arith.mulf %31, %0 : vector<6x24xf32>
    %cst_11 = arith.constant dense<0.000000e+00> : vector<24xf32>
    %33 = vector.multi_reduction <add>, %32, %cst_11 [0] : vector<6x24xf32> to vector<24xf32>
    %34 = vector.shape_cast %33 : vector<24xf32> to vector<1x24xf32>
    %35 = arith.addf %29, %34 : vector<1x24xf32>
    %36 = math.tanh %35 : vector<1x24xf32>
    %37 = vector.extract_strided_slice %36 {offsets = [0, 0], sizes = [1, 6], strides = [1, 1]} : vector<1x24xf32> to vector<1x6xf32>
    %cst_12 = arith.constant 5.000000e-01 : f32
    %38 = vector.broadcast %cst_12 : f32 to vector<1x6xf32>
    %39 = arith.mulf %38, %37 : vector<1x6xf32>
    %cst_13 = arith.constant 5.000000e-01 : f32
    %40 = vector.broadcast %cst_13 : f32 to vector<1x6xf32>
    %41 = arith.addf %39, %40 : vector<1x6xf32>
    %42 = vector.extract_strided_slice %36 {offsets = [0, 6], sizes = [1, 6], strides = [1, 1]} : vector<1x24xf32> to vector<1x6xf32>
    %cst_14 = arith.constant 5.000000e-01 : f32
    %43 = vector.broadcast %cst_14 : f32 to vector<1x6xf32>
    %44 = arith.mulf %43, %42 : vector<1x6xf32>
    %cst_15 = arith.constant 5.000000e-01 : f32
    %45 = vector.broadcast %cst_15 : f32 to vector<1x6xf32>
    %46 = arith.addf %44, %45 : vector<1x6xf32>
    %47 = vector.extract_strided_slice %36 {offsets = [0, 12], sizes = [1, 6], strides = [1, 1]} : vector<1x24xf32> to vector<1x6xf32>
    %48 = vector.extract_strided_slice %36 {offsets = [0, 18], sizes = [1, 6], strides = [1, 1]} : vector<1x24xf32> to vector<1x6xf32>
    %cst_16 = arith.constant 5.000000e-01 : f32
    %49 = vector.broadcast %cst_16 : f32 to vector<1x6xf32>
    %50 = arith.mulf %49, %48 : vector<1x6xf32>
    %cst_17 = arith.constant 5.000000e-01 : f32
    %51 = vector.broadcast %cst_17 : f32 to vector<1x6xf32>
    %52 = arith.addf %50, %51 : vector<1x6xf32>
    %53 = arith.mulf %46, %26 : vector<1x6xf32>
    %54 = arith.mulf %41, %47 : vector<1x6xf32>
    %55 = arith.addf %53, %54 : vector<1x6xf32>
    %56 = math.tanh %55 : vector<1x6xf32>
    %57 = arith.mulf %52, %56 : vector<1x6xf32>
    %58 = vector.broadcast %57 : vector<1x6xf32> to vector<18x6xf32>
    %59 = arith.mulf %12, %58 : vector<18x6xf32>
    %cst_18 = arith.constant dense<0.000000e+00> : vector<18xf32>
    %60 = vector.multi_reduction <add>, %59, %cst_18 [1] : vector<18x6xf32> to vector<18xf32>
    %61 = vector.shape_cast %60 : vector<18xf32> to vector<18x1xf32>
    %62 = vector.broadcast %28 : vector<1x12xf32> to vector<18x12xf32>
    %63 = arith.mulf %19, %62 : vector<18x12xf32>
    %cst_19 = arith.constant dense<0.000000e+00> : vector<18xf32>
    %64 = vector.multi_reduction <add>, %63, %cst_19 [1] : vector<18x12xf32> to vector<18xf32>
    %65 = vector.shape_cast %64 : vector<18xf32> to vector<18x1xf32>
    %66 = arith.addf %61, %65 : vector<18x1xf32>
    %67 = vector.broadcast %66 : vector<18x1xf32> to vector<18x48xf32>
    %68 = arith.mulf %67, %3 : vector<18x48xf32>
    %cst_20 = arith.constant dense<0.000000e+00> : vector<48xf32>
    %69 = vector.multi_reduction <add>, %68, %cst_20 [0] : vector<18x48xf32> to vector<48xf32>
    %70 = vector.shape_cast %69 : vector<48xf32> to vector<1x48xf32>
    %71 = arith.addf %4, %70 : vector<1x48xf32>
    %72 = math.tanh %71 : vector<1x48xf32>
    %73 = vector.extract_strided_slice %72 {offsets = [0, 0], sizes = [1, 12], strides = [1, 1]} : vector<1x48xf32> to vector<1x12xf32>
    %cst_21 = arith.constant 5.000000e-01 : f32
    %74 = vector.broadcast %cst_21 : f32 to vector<1x12xf32>
    %75 = arith.mulf %74, %73 : vector<1x12xf32>
    %cst_22 = arith.constant 5.000000e-01 : f32
    %76 = vector.broadcast %cst_22 : f32 to vector<1x12xf32>
    %77 = arith.addf %75, %76 : vector<1x12xf32>
    %78 = vector.extract_strided_slice %72 {offsets = [0, 12], sizes = [1, 12], strides = [1, 1]} : vector<1x48xf32> to vector<1x12xf32>
    %cst_23 = arith.constant 5.000000e-01 : f32
    %79 = vector.broadcast %cst_23 : f32 to vector<1x12xf32>
    %80 = arith.mulf %79, %78 : vector<1x12xf32>
    %cst_24 = arith.constant 5.000000e-01 : f32
    %81 = vector.broadcast %cst_24 : f32 to vector<1x12xf32>
    %82 = arith.addf %80, %81 : vector<1x12xf32>
    %83 = vector.extract_strided_slice %72 {offsets = [0, 24], sizes = [1, 12], strides = [1, 1]} : vector<1x48xf32> to vector<1x12xf32>
    %84 = vector.extract_strided_slice %72 {offsets = [0, 36], sizes = [1, 12], strides = [1, 1]} : vector<1x48xf32> to vector<1x12xf32>
    %cst_25 = arith.constant 5.000000e-01 : f32
    %85 = vector.broadcast %cst_25 : f32 to vector<1x12xf32>
    %86 = arith.mulf %85, %84 : vector<1x12xf32>
    %cst_26 = arith.constant 5.000000e-01 : f32
    %87 = vector.broadcast %cst_26 : f32 to vector<1x12xf32>
    %88 = arith.addf %86, %87 : vector<1x12xf32>
    %89 = arith.mulf %82, %27 : vector<1x12xf32>
    %90 = arith.mulf %77, %83 : vector<1x12xf32>
    %91 = arith.addf %89, %90 : vector<1x12xf32>
    %92 = math.tanh %91 : vector<1x12xf32>
    %93 = arith.mulf %88, %92 : vector<1x12xf32>
    %94 = vector.extract_strided_slice %24 {offsets = [1, 0], sizes = [1, 24], strides = [1, 1]} : vector<16x24xf32> to vector<1x24xf32>
    %95 = vector.extract_strided_slice %66 {offsets = [0, 0], sizes = [6, 1], strides = [1, 1]} : vector<18x1xf32> to vector<6x1xf32>
    %96 = vector.broadcast %95 : vector<6x1xf32> to vector<6x24xf32>
    %97 = arith.mulf %96, %0 : vector<6x24xf32>
    %cst_27 = arith.constant dense<0.000000e+00> : vector<24xf32>
    %98 = vector.multi_reduction <add>, %97, %cst_27 [0] : vector<6x24xf32> to vector<24xf32>
    %99 = vector.shape_cast %98 : vector<24xf32> to vector<1x24xf32>
    %100 = arith.addf %94, %99 : vector<1x24xf32>
    %101 = math.tanh %100 : vector<1x24xf32>
    %102 = vector.extract_strided_slice %101 {offsets = [0, 0], sizes = [1, 6], strides = [1, 1]} : vector<1x24xf32> to vector<1x6xf32>
    %cst_28 = arith.constant 5.000000e-01 : f32
    %103 = vector.broadcast %cst_28 : f32 to vector<1x6xf32>
    %104 = arith.mulf %103, %102 : vector<1x6xf32>
    %cst_29 = arith.constant 5.000000e-01 : f32
    %105 = vector.broadcast %cst_29 : f32 to vector<1x6xf32>
    %106 = arith.addf %104, %105 : vector<1x6xf32>
    %107 = vector.extract_strided_slice %101 {offsets = [0, 6], sizes = [1, 6], strides = [1, 1]} : vector<1x24xf32> to vector<1x6xf32>
    %cst_30 = arith.constant 5.000000e-01 : f32
    %108 = vector.broadcast %cst_30 : f32 to vector<1x6xf32>
    %109 = arith.mulf %108, %107 : vector<1x6xf32>
    %cst_31 = arith.constant 5.000000e-01 : f32
    %110 = vector.broadcast %cst_31 : f32 to vector<1x6xf32>
    %111 = arith.addf %109, %110 : vector<1x6xf32>
    %112 = vector.extract_strided_slice %101 {offsets = [0, 12], sizes = [1, 6], strides = [1, 1]} : vector<1x24xf32> to vector<1x6xf32>
    %113 = vector.extract_strided_slice %101 {offsets = [0, 18], sizes = [1, 6], strides = [1, 1]} : vector<1x24xf32> to vector<1x6xf32>
    %cst_32 = arith.constant 5.000000e-01 : f32
    %114 = vector.broadcast %cst_32 : f32 to vector<1x6xf32>
    %115 = arith.mulf %114, %113 : vector<1x6xf32>
    %cst_33 = arith.constant 5.000000e-01 : f32
    %116 = vector.broadcast %cst_33 : f32 to vector<1x6xf32>
    %117 = arith.addf %115, %116 : vector<1x6xf32>
    %118 = arith.mulf %111, %55 : vector<1x6xf32>
    %119 = arith.mulf %106, %112 : vector<1x6xf32>
    %120 = arith.addf %118, %119 : vector<1x6xf32>
    %121 = math.tanh %120 : vector<1x6xf32>
    %122 = arith.mulf %117, %121 : vector<1x6xf32>
    %123 = vector.broadcast %122 : vector<1x6xf32> to vector<18x6xf32>
    %124 = arith.mulf %12, %123 : vector<18x6xf32>
    %cst_34 = arith.constant dense<0.000000e+00> : vector<18xf32>
    %125 = vector.multi_reduction <add>, %124, %cst_34 [1] : vector<18x6xf32> to vector<18xf32>
    %126 = vector.shape_cast %125 : vector<18xf32> to vector<18x1xf32>
    %127 = vector.broadcast %93 : vector<1x12xf32> to vector<18x12xf32>
    %128 = arith.mulf %19, %127 : vector<18x12xf32>
    %cst_35 = arith.constant dense<0.000000e+00> : vector<18xf32>
    %129 = vector.multi_reduction <add>, %128, %cst_35 [1] : vector<18x12xf32> to vector<18xf32>
    %130 = vector.shape_cast %129 : vector<18xf32> to vector<18x1xf32>
    %131 = arith.addf %126, %130 : vector<18x1xf32>
    %132 = vector.broadcast %131 : vector<18x1xf32> to vector<18x48xf32>
    %133 = arith.mulf %132, %3 : vector<18x48xf32>
    %cst_36 = arith.constant dense<0.000000e+00> : vector<48xf32>
    %134 = vector.multi_reduction <add>, %133, %cst_36 [0] : vector<18x48xf32> to vector<48xf32>
    %135 = vector.shape_cast %134 : vector<48xf32> to vector<1x48xf32>
    %136 = arith.addf %4, %135 : vector<1x48xf32>
    %137 = math.tanh %136 : vector<1x48xf32>
    %138 = vector.extract_strided_slice %137 {offsets = [0, 0], sizes = [1, 12], strides = [1, 1]} : vector<1x48xf32> to vector<1x12xf32>
    %cst_37 = arith.constant 5.000000e-01 : f32
    %139 = vector.broadcast %cst_37 : f32 to vector<1x12xf32>
    %140 = arith.mulf %139, %138 : vector<1x12xf32>
    %cst_38 = arith.constant 5.000000e-01 : f32
    %141 = vector.broadcast %cst_38 : f32 to vector<1x12xf32>
    %142 = arith.addf %140, %141 : vector<1x12xf32>
    %143 = vector.extract_strided_slice %137 {offsets = [0, 12], sizes = [1, 12], strides = [1, 1]} : vector<1x48xf32> to vector<1x12xf32>
    %cst_39 = arith.constant 5.000000e-01 : f32
    %144 = vector.broadcast %cst_39 : f32 to vector<1x12xf32>
    %145 = arith.mulf %144, %143 : vector<1x12xf32>
    %cst_40 = arith.constant 5.000000e-01 : f32
    %146 = vector.broadcast %cst_40 : f32 to vector<1x12xf32>
    %147 = arith.addf %145, %146 : vector<1x12xf32>
    %148 = vector.extract_strided_slice %137 {offsets = [0, 24], sizes = [1, 12], strides = [1, 1]} : vector<1x48xf32> to vector<1x12xf32>
    %149 = vector.extract_strided_slice %137 {offsets = [0, 36], sizes = [1, 12], strides = [1, 1]} : vector<1x48xf32> to vector<1x12xf32>
    %cst_41 = arith.constant 5.000000e-01 : f32
    %150 = vector.broadcast %cst_41 : f32 to vector<1x12xf32>
    %151 = arith.mulf %150, %149 : vector<1x12xf32>
    %cst_42 = arith.constant 5.000000e-01 : f32
    %152 = vector.broadcast %cst_42 : f32 to vector<1x12xf32>
    %153 = arith.addf %151, %152 : vector<1x12xf32>
    %154 = arith.mulf %147, %91 : vector<1x12xf32>
    %155 = arith.mulf %142, %148 : vector<1x12xf32>
    %156 = arith.addf %154, %155 : vector<1x12xf32>
    %157 = math.tanh %156 : vector<1x12xf32>
    %158 = arith.mulf %153, %157 : vector<1x12xf32>
    %159 = vector.extract_strided_slice %24 {offsets = [2, 0], sizes = [1, 24], strides = [1, 1]} : vector<16x24xf32> to vector<1x24xf32>
    %160 = vector.extract_strided_slice %131 {offsets = [0, 0], sizes = [6, 1], strides = [1, 1]} : vector<18x1xf32> to vector<6x1xf32>
    %161 = vector.broadcast %160 : vector<6x1xf32> to vector<6x24xf32>
    %162 = arith.mulf %161, %0 : vector<6x24xf32>
    %cst_43 = arith.constant dense<0.000000e+00> : vector<24xf32>
    %163 = vector.multi_reduction <add>, %162, %cst_43 [0] : vector<6x24xf32> to vector<24xf32>
    %164 = vector.shape_cast %163 : vector<24xf32> to vector<1x24xf32>
    %165 = arith.addf %159, %164 : vector<1x24xf32>
    %166 = math.tanh %165 : vector<1x24xf32>
    %167 = vector.extract_strided_slice %166 {offsets = [0, 0], sizes = [1, 6], strides = [1, 1]} : vector<1x24xf32> to vector<1x6xf32>
    %cst_44 = arith.constant 5.000000e-01 : f32
    %168 = vector.broadcast %cst_44 : f32 to vector<1x6xf32>
    %169 = arith.mulf %168, %167 : vector<1x6xf32>
    %cst_45 = arith.constant 5.000000e-01 : f32
    %170 = vector.broadcast %cst_45 : f32 to vector<1x6xf32>
    %171 = arith.addf %169, %170 : vector<1x6xf32>
    %172 = vector.extract_strided_slice %166 {offsets = [0, 6], sizes = [1, 6], strides = [1, 1]} : vector<1x24xf32> to vector<1x6xf32>
    %cst_46 = arith.constant 5.000000e-01 : f32
    %173 = vector.broadcast %cst_46 : f32 to vector<1x6xf32>
    %174 = arith.mulf %173, %172 : vector<1x6xf32>
    %cst_47 = arith.constant 5.000000e-01 : f32
    %175 = vector.broadcast %cst_47 : f32 to vector<1x6xf32>
    %176 = arith.addf %174, %175 : vector<1x6xf32>
    %177 = vector.extract_strided_slice %166 {offsets = [0, 12], sizes = [1, 6], strides = [1, 1]} : vector<1x24xf32> to vector<1x6xf32>
    %178 = vector.extract_strided_slice %166 {offsets = [0, 18], sizes = [1, 6], strides = [1, 1]} : vector<1x24xf32> to vector<1x6xf32>
    %cst_48 = arith.constant 5.000000e-01 : f32
    %179 = vector.broadcast %cst_48 : f32 to vector<1x6xf32>
    %180 = arith.mulf %179, %178 : vector<1x6xf32>
    %cst_49 = arith.constant 5.000000e-01 : f32
    %181 = vector.broadcast %cst_49 : f32 to vector<1x6xf32>
    %182 = arith.addf %180, %181 : vector<1x6xf32>
    %183 = arith.mulf %176, %120 : vector<1x6xf32>
    %184 = arith.mulf %171, %177 : vector<1x6xf32>
    %185 = arith.addf %183, %184 : vector<1x6xf32>
    %186 = math.tanh %185 : vector<1x6xf32>
    %187 = arith.mulf %182, %186 : vector<1x6xf32>
    %188 = vector.broadcast %187 : vector<1x6xf32> to vector<18x6xf32>
    %189 = arith.mulf %12, %188 : vector<18x6xf32>
    %cst_50 = arith.constant dense<0.000000e+00> : vector<18xf32>
    %190 = vector.multi_reduction <add>, %189, %cst_50 [1] : vector<18x6xf32> to vector<18xf32>
    %191 = vector.shape_cast %190 : vector<18xf32> to vector<18x1xf32>
    %192 = vector.broadcast %158 : vector<1x12xf32> to vector<18x12xf32>
    %193 = arith.mulf %19, %192 : vector<18x12xf32>
    %cst_51 = arith.constant dense<0.000000e+00> : vector<18xf32>
    %194 = vector.multi_reduction <add>, %193, %cst_51 [1] : vector<18x12xf32> to vector<18xf32>
    %195 = vector.shape_cast %194 : vector<18xf32> to vector<18x1xf32>
    %196 = arith.addf %191, %195 : vector<18x1xf32>
    %197 = vector.broadcast %196 : vector<18x1xf32> to vector<18x48xf32>
    %198 = arith.mulf %197, %3 : vector<18x48xf32>
    %cst_52 = arith.constant dense<0.000000e+00> : vector<48xf32>
    %199 = vector.multi_reduction <add>, %198, %cst_52 [0] : vector<18x48xf32> to vector<48xf32>
    %200 = vector.shape_cast %199 : vector<48xf32> to vector<1x48xf32>
    %201 = arith.addf %4, %200 : vector<1x48xf32>
    %202 = math.tanh %201 : vector<1x48xf32>
    %203 = vector.extract_strided_slice %202 {offsets = [0, 0], sizes = [1, 12], strides = [1, 1]} : vector<1x48xf32> to vector<1x12xf32>
    %cst_53 = arith.constant 5.000000e-01 : f32
    %204 = vector.broadcast %cst_53 : f32 to vector<1x12xf32>
    %205 = arith.mulf %204, %203 : vector<1x12xf32>
    %cst_54 = arith.constant 5.000000e-01 : f32
    %206 = vector.broadcast %cst_54 : f32 to vector<1x12xf32>
    %207 = arith.addf %205, %206 : vector<1x12xf32>
    %208 = vector.extract_strided_slice %202 {offsets = [0, 12], sizes = [1, 12], strides = [1, 1]} : vector<1x48xf32> to vector<1x12xf32>
    %cst_55 = arith.constant 5.000000e-01 : f32
    %209 = vector.broadcast %cst_55 : f32 to vector<1x12xf32>
    %210 = arith.mulf %209, %208 : vector<1x12xf32>
    %cst_56 = arith.constant 5.000000e-01 : f32
    %211 = vector.broadcast %cst_56 : f32 to vector<1x12xf32>
    %212 = arith.addf %210, %211 : vector<1x12xf32>
    %213 = vector.extract_strided_slice %202 {offsets = [0, 24], sizes = [1, 12], strides = [1, 1]} : vector<1x48xf32> to vector<1x12xf32>
    %214 = vector.extract_strided_slice %202 {offsets = [0, 36], sizes = [1, 12], strides = [1, 1]} : vector<1x48xf32> to vector<1x12xf32>
    %cst_57 = arith.constant 5.000000e-01 : f32
    %215 = vector.broadcast %cst_57 : f32 to vector<1x12xf32>
    %216 = arith.mulf %215, %214 : vector<1x12xf32>
    %cst_58 = arith.constant 5.000000e-01 : f32
    %217 = vector.broadcast %cst_58 : f32 to vector<1x12xf32>
    %218 = arith.addf %216, %217 : vector<1x12xf32>
    %219 = arith.mulf %212, %156 : vector<1x12xf32>
    %220 = arith.mulf %207, %213 : vector<1x12xf32>
    %221 = arith.addf %219, %220 : vector<1x12xf32>
    %222 = math.tanh %221 : vector<1x12xf32>
    %223 = arith.mulf %218, %222 : vector<1x12xf32>
    %224 = vector.extract_strided_slice %24 {offsets = [3, 0], sizes = [1, 24], strides = [1, 1]} : vector<16x24xf32> to vector<1x24xf32>
    %225 = vector.extract_strided_slice %196 {offsets = [0, 0], sizes = [6, 1], strides = [1, 1]} : vector<18x1xf32> to vector<6x1xf32>
    %226 = vector.broadcast %225 : vector<6x1xf32> to vector<6x24xf32>
    %227 = arith.mulf %226, %0 : vector<6x24xf32>
    %cst_59 = arith.constant dense<0.000000e+00> : vector<24xf32>
    %228 = vector.multi_reduction <add>, %227, %cst_59 [0] : vector<6x24xf32> to vector<24xf32>
    %229 = vector.shape_cast %228 : vector<24xf32> to vector<1x24xf32>
    %230 = arith.addf %224, %229 : vector<1x24xf32>
    %231 = math.tanh %230 : vector<1x24xf32>
    %232 = vector.extract_strided_slice %231 {offsets = [0, 0], sizes = [1, 6], strides = [1, 1]} : vector<1x24xf32> to vector<1x6xf32>
    %cst_60 = arith.constant 5.000000e-01 : f32
    %233 = vector.broadcast %cst_60 : f32 to vector<1x6xf32>
    %234 = arith.mulf %233, %232 : vector<1x6xf32>
    %cst_61 = arith.constant 5.000000e-01 : f32
    %235 = vector.broadcast %cst_61 : f32 to vector<1x6xf32>
    %236 = arith.addf %234, %235 : vector<1x6xf32>
    %237 = vector.extract_strided_slice %231 {offsets = [0, 6], sizes = [1, 6], strides = [1, 1]} : vector<1x24xf32> to vector<1x6xf32>
    %cst_62 = arith.constant 5.000000e-01 : f32
    %238 = vector.broadcast %cst_62 : f32 to vector<1x6xf32>
    %239 = arith.mulf %238, %237 : vector<1x6xf32>
    %cst_63 = arith.constant 5.000000e-01 : f32
    %240 = vector.broadcast %cst_63 : f32 to vector<1x6xf32>
    %241 = arith.addf %239, %240 : vector<1x6xf32>
    %242 = vector.extract_strided_slice %231 {offsets = [0, 12], sizes = [1, 6], strides = [1, 1]} : vector<1x24xf32> to vector<1x6xf32>
    %243 = vector.extract_strided_slice %231 {offsets = [0, 18], sizes = [1, 6], strides = [1, 1]} : vector<1x24xf32> to vector<1x6xf32>
    %cst_64 = arith.constant 5.000000e-01 : f32
    %244 = vector.broadcast %cst_64 : f32 to vector<1x6xf32>
    %245 = arith.mulf %244, %243 : vector<1x6xf32>
    %cst_65 = arith.constant 5.000000e-01 : f32
    %246 = vector.broadcast %cst_65 : f32 to vector<1x6xf32>
    %247 = arith.addf %245, %246 : vector<1x6xf32>
    %248 = arith.mulf %241, %185 : vector<1x6xf32>
    %249 = arith.mulf %236, %242 : vector<1x6xf32>
    %250 = arith.addf %248, %249 : vector<1x6xf32>
    %251 = math.tanh %250 : vector<1x6xf32>
    %252 = arith.mulf %247, %251 : vector<1x6xf32>
    %253 = vector.broadcast %252 : vector<1x6xf32> to vector<18x6xf32>
    %254 = arith.mulf %12, %253 : vector<18x6xf32>
    %cst_66 = arith.constant dense<0.000000e+00> : vector<18xf32>
    %255 = vector.multi_reduction <add>, %254, %cst_66 [1] : vector<18x6xf32> to vector<18xf32>
    %256 = vector.shape_cast %255 : vector<18xf32> to vector<18x1xf32>
    %257 = vector.broadcast %223 : vector<1x12xf32> to vector<18x12xf32>
    %258 = arith.mulf %19, %257 : vector<18x12xf32>
    %cst_67 = arith.constant dense<0.000000e+00> : vector<18xf32>
    %259 = vector.multi_reduction <add>, %258, %cst_67 [1] : vector<18x12xf32> to vector<18xf32>
    %260 = vector.shape_cast %259 : vector<18xf32> to vector<18x1xf32>
    %261 = arith.addf %256, %260 : vector<18x1xf32>
    %262 = vector.broadcast %261 : vector<18x1xf32> to vector<18x48xf32>
    %263 = arith.mulf %262, %3 : vector<18x48xf32>
    %cst_68 = arith.constant dense<0.000000e+00> : vector<48xf32>
    %264 = vector.multi_reduction <add>, %263, %cst_68 [0] : vector<18x48xf32> to vector<48xf32>
    %265 = vector.shape_cast %264 : vector<48xf32> to vector<1x48xf32>
    %266 = arith.addf %4, %265 : vector<1x48xf32>
    %267 = math.tanh %266 : vector<1x48xf32>
    %268 = vector.extract_strided_slice %267 {offsets = [0, 0], sizes = [1, 12], strides = [1, 1]} : vector<1x48xf32> to vector<1x12xf32>
    %cst_69 = arith.constant 5.000000e-01 : f32
    %269 = vector.broadcast %cst_69 : f32 to vector<1x12xf32>
    %270 = arith.mulf %269, %268 : vector<1x12xf32>
    %cst_70 = arith.constant 5.000000e-01 : f32
    %271 = vector.broadcast %cst_70 : f32 to vector<1x12xf32>
    %272 = arith.addf %270, %271 : vector<1x12xf32>
    %273 = vector.extract_strided_slice %267 {offsets = [0, 12], sizes = [1, 12], strides = [1, 1]} : vector<1x48xf32> to vector<1x12xf32>
    %cst_71 = arith.constant 5.000000e-01 : f32
    %274 = vector.broadcast %cst_71 : f32 to vector<1x12xf32>
    %275 = arith.mulf %274, %273 : vector<1x12xf32>
    %cst_72 = arith.constant 5.000000e-01 : f32
    %276 = vector.broadcast %cst_72 : f32 to vector<1x12xf32>
    %277 = arith.addf %275, %276 : vector<1x12xf32>
    %278 = vector.extract_strided_slice %267 {offsets = [0, 24], sizes = [1, 12], strides = [1, 1]} : vector<1x48xf32> to vector<1x12xf32>
    %279 = vector.extract_strided_slice %267 {offsets = [0, 36], sizes = [1, 12], strides = [1, 1]} : vector<1x48xf32> to vector<1x12xf32>
    %cst_73 = arith.constant 5.000000e-01 : f32
    %280 = vector.broadcast %cst_73 : f32 to vector<1x12xf32>
    %281 = arith.mulf %280, %279 : vector<1x12xf32>
    %cst_74 = arith.constant 5.000000e-01 : f32
    %282 = vector.broadcast %cst_74 : f32 to vector<1x12xf32>
    %283 = arith.addf %281, %282 : vector<1x12xf32>
    %284 = arith.mulf %277, %221 : vector<1x12xf32>
    %285 = arith.mulf %272, %278 : vector<1x12xf32>
    %286 = arith.addf %284, %285 : vector<1x12xf32>
    %287 = math.tanh %286 : vector<1x12xf32>
    %288 = arith.mulf %283, %287 : vector<1x12xf32>
    %289 = vector.extract_strided_slice %24 {offsets = [4, 0], sizes = [1, 24], strides = [1, 1]} : vector<16x24xf32> to vector<1x24xf32>
    %290 = vector.extract_strided_slice %261 {offsets = [0, 0], sizes = [6, 1], strides = [1, 1]} : vector<18x1xf32> to vector<6x1xf32>
    %291 = vector.broadcast %290 : vector<6x1xf32> to vector<6x24xf32>
    %292 = arith.mulf %291, %0 : vector<6x24xf32>
    %cst_75 = arith.constant dense<0.000000e+00> : vector<24xf32>
    %293 = vector.multi_reduction <add>, %292, %cst_75 [0] : vector<6x24xf32> to vector<24xf32>
    %294 = vector.shape_cast %293 : vector<24xf32> to vector<1x24xf32>
    %295 = arith.addf %289, %294 : vector<1x24xf32>
    %296 = math.tanh %295 : vector<1x24xf32>
    %297 = vector.extract_strided_slice %296 {offsets = [0, 0], sizes = [1, 6], strides = [1, 1]} : vector<1x24xf32> to vector<1x6xf32>
    %cst_76 = arith.constant 5.000000e-01 : f32
    %298 = vector.broadcast %cst_76 : f32 to vector<1x6xf32>
    %299 = arith.mulf %298, %297 : vector<1x6xf32>
    %cst_77 = arith.constant 5.000000e-01 : f32
    %300 = vector.broadcast %cst_77 : f32 to vector<1x6xf32>
    %301 = arith.addf %299, %300 : vector<1x6xf32>
    %302 = vector.extract_strided_slice %296 {offsets = [0, 6], sizes = [1, 6], strides = [1, 1]} : vector<1x24xf32> to vector<1x6xf32>
    %cst_78 = arith.constant 5.000000e-01 : f32
    %303 = vector.broadcast %cst_78 : f32 to vector<1x6xf32>
    %304 = arith.mulf %303, %302 : vector<1x6xf32>
    %cst_79 = arith.constant 5.000000e-01 : f32
    %305 = vector.broadcast %cst_79 : f32 to vector<1x6xf32>
    %306 = arith.addf %304, %305 : vector<1x6xf32>
    %307 = vector.extract_strided_slice %296 {offsets = [0, 12], sizes = [1, 6], strides = [1, 1]} : vector<1x24xf32> to vector<1x6xf32>
    %308 = vector.extract_strided_slice %296 {offsets = [0, 18], sizes = [1, 6], strides = [1, 1]} : vector<1x24xf32> to vector<1x6xf32>
    %cst_80 = arith.constant 5.000000e-01 : f32
    %309 = vector.broadcast %cst_80 : f32 to vector<1x6xf32>
    %310 = arith.mulf %309, %308 : vector<1x6xf32>
    %cst_81 = arith.constant 5.000000e-01 : f32
    %311 = vector.broadcast %cst_81 : f32 to vector<1x6xf32>
    %312 = arith.addf %310, %311 : vector<1x6xf32>
    %313 = arith.mulf %306, %250 : vector<1x6xf32>
    %314 = arith.mulf %301, %307 : vector<1x6xf32>
    %315 = arith.addf %313, %314 : vector<1x6xf32>
    %316 = math.tanh %315 : vector<1x6xf32>
    %317 = arith.mulf %312, %316 : vector<1x6xf32>
    %318 = vector.broadcast %317 : vector<1x6xf32> to vector<18x6xf32>
    %319 = arith.mulf %12, %318 : vector<18x6xf32>
    %cst_82 = arith.constant dense<0.000000e+00> : vector<18xf32>
    %320 = vector.multi_reduction <add>, %319, %cst_82 [1] : vector<18x6xf32> to vector<18xf32>
    %321 = vector.shape_cast %320 : vector<18xf32> to vector<18x1xf32>
    %322 = vector.broadcast %288 : vector<1x12xf32> to vector<18x12xf32>
    %323 = arith.mulf %19, %322 : vector<18x12xf32>
    %cst_83 = arith.constant dense<0.000000e+00> : vector<18xf32>
    %324 = vector.multi_reduction <add>, %323, %cst_83 [1] : vector<18x12xf32> to vector<18xf32>
    %325 = vector.shape_cast %324 : vector<18xf32> to vector<18x1xf32>
    %326 = arith.addf %321, %325 : vector<18x1xf32>
    %327 = vector.broadcast %326 : vector<18x1xf32> to vector<18x48xf32>
    %328 = arith.mulf %327, %3 : vector<18x48xf32>
    %cst_84 = arith.constant dense<0.000000e+00> : vector<48xf32>
    %329 = vector.multi_reduction <add>, %328, %cst_84 [0] : vector<18x48xf32> to vector<48xf32>
    %330 = vector.shape_cast %329 : vector<48xf32> to vector<1x48xf32>
    %331 = arith.addf %4, %330 : vector<1x48xf32>
    %332 = math.tanh %331 : vector<1x48xf32>
    %333 = vector.extract_strided_slice %332 {offsets = [0, 0], sizes = [1, 12], strides = [1, 1]} : vector<1x48xf32> to vector<1x12xf32>
    %cst_85 = arith.constant 5.000000e-01 : f32
    %334 = vector.broadcast %cst_85 : f32 to vector<1x12xf32>
    %335 = arith.mulf %334, %333 : vector<1x12xf32>
    %cst_86 = arith.constant 5.000000e-01 : f32
    %336 = vector.broadcast %cst_86 : f32 to vector<1x12xf32>
    %337 = arith.addf %335, %336 : vector<1x12xf32>
    %338 = vector.extract_strided_slice %332 {offsets = [0, 12], sizes = [1, 12], strides = [1, 1]} : vector<1x48xf32> to vector<1x12xf32>
    %cst_87 = arith.constant 5.000000e-01 : f32
    %339 = vector.broadcast %cst_87 : f32 to vector<1x12xf32>
    %340 = arith.mulf %339, %338 : vector<1x12xf32>
    %cst_88 = arith.constant 5.000000e-01 : f32
    %341 = vector.broadcast %cst_88 : f32 to vector<1x12xf32>
    %342 = arith.addf %340, %341 : vector<1x12xf32>
    %343 = vector.extract_strided_slice %332 {offsets = [0, 24], sizes = [1, 12], strides = [1, 1]} : vector<1x48xf32> to vector<1x12xf32>
    %344 = vector.extract_strided_slice %332 {offsets = [0, 36], sizes = [1, 12], strides = [1, 1]} : vector<1x48xf32> to vector<1x12xf32>
    %cst_89 = arith.constant 5.000000e-01 : f32
    %345 = vector.broadcast %cst_89 : f32 to vector<1x12xf32>
    %346 = arith.mulf %345, %344 : vector<1x12xf32>
    %cst_90 = arith.constant 5.000000e-01 : f32
    %347 = vector.broadcast %cst_90 : f32 to vector<1x12xf32>
    %348 = arith.addf %346, %347 : vector<1x12xf32>
    %349 = arith.mulf %342, %286 : vector<1x12xf32>
    %350 = arith.mulf %337, %343 : vector<1x12xf32>
    %351 = arith.addf %349, %350 : vector<1x12xf32>
    %352 = math.tanh %351 : vector<1x12xf32>
    %353 = arith.mulf %348, %352 : vector<1x12xf32>
    %354 = vector.extract_strided_slice %24 {offsets = [5, 0], sizes = [1, 24], strides = [1, 1]} : vector<16x24xf32> to vector<1x24xf32>
    %355 = vector.extract_strided_slice %326 {offsets = [0, 0], sizes = [6, 1], strides = [1, 1]} : vector<18x1xf32> to vector<6x1xf32>
    %356 = vector.broadcast %355 : vector<6x1xf32> to vector<6x24xf32>
    %357 = arith.mulf %356, %0 : vector<6x24xf32>
    %cst_91 = arith.constant dense<0.000000e+00> : vector<24xf32>
    %358 = vector.multi_reduction <add>, %357, %cst_91 [0] : vector<6x24xf32> to vector<24xf32>
    %359 = vector.shape_cast %358 : vector<24xf32> to vector<1x24xf32>
    %360 = arith.addf %354, %359 : vector<1x24xf32>
    %361 = math.tanh %360 : vector<1x24xf32>
    %362 = vector.extract_strided_slice %361 {offsets = [0, 0], sizes = [1, 6], strides = [1, 1]} : vector<1x24xf32> to vector<1x6xf32>
    %cst_92 = arith.constant 5.000000e-01 : f32
    %363 = vector.broadcast %cst_92 : f32 to vector<1x6xf32>
    %364 = arith.mulf %363, %362 : vector<1x6xf32>
    %cst_93 = arith.constant 5.000000e-01 : f32
    %365 = vector.broadcast %cst_93 : f32 to vector<1x6xf32>
    %366 = arith.addf %364, %365 : vector<1x6xf32>
    %367 = vector.extract_strided_slice %361 {offsets = [0, 6], sizes = [1, 6], strides = [1, 1]} : vector<1x24xf32> to vector<1x6xf32>
    %cst_94 = arith.constant 5.000000e-01 : f32
    %368 = vector.broadcast %cst_94 : f32 to vector<1x6xf32>
    %369 = arith.mulf %368, %367 : vector<1x6xf32>
    %cst_95 = arith.constant 5.000000e-01 : f32
    %370 = vector.broadcast %cst_95 : f32 to vector<1x6xf32>
    %371 = arith.addf %369, %370 : vector<1x6xf32>
    %372 = vector.extract_strided_slice %361 {offsets = [0, 12], sizes = [1, 6], strides = [1, 1]} : vector<1x24xf32> to vector<1x6xf32>
    %373 = vector.extract_strided_slice %361 {offsets = [0, 18], sizes = [1, 6], strides = [1, 1]} : vector<1x24xf32> to vector<1x6xf32>
    %cst_96 = arith.constant 5.000000e-01 : f32
    %374 = vector.broadcast %cst_96 : f32 to vector<1x6xf32>
    %375 = arith.mulf %374, %373 : vector<1x6xf32>
    %cst_97 = arith.constant 5.000000e-01 : f32
    %376 = vector.broadcast %cst_97 : f32 to vector<1x6xf32>
    %377 = arith.addf %375, %376 : vector<1x6xf32>
    %378 = arith.mulf %371, %315 : vector<1x6xf32>
    %379 = arith.mulf %366, %372 : vector<1x6xf32>
    %380 = arith.addf %378, %379 : vector<1x6xf32>
    %381 = math.tanh %380 : vector<1x6xf32>
    %382 = arith.mulf %377, %381 : vector<1x6xf32>
    %383 = vector.broadcast %382 : vector<1x6xf32> to vector<18x6xf32>
    %384 = arith.mulf %12, %383 : vector<18x6xf32>
    %cst_98 = arith.constant dense<0.000000e+00> : vector<18xf32>
    %385 = vector.multi_reduction <add>, %384, %cst_98 [1] : vector<18x6xf32> to vector<18xf32>
    %386 = vector.shape_cast %385 : vector<18xf32> to vector<18x1xf32>
    %387 = vector.broadcast %353 : vector<1x12xf32> to vector<18x12xf32>
    %388 = arith.mulf %19, %387 : vector<18x12xf32>
    %cst_99 = arith.constant dense<0.000000e+00> : vector<18xf32>
    %389 = vector.multi_reduction <add>, %388, %cst_99 [1] : vector<18x12xf32> to vector<18xf32>
    %390 = vector.shape_cast %389 : vector<18xf32> to vector<18x1xf32>
    %391 = arith.addf %386, %390 : vector<18x1xf32>
    %392 = vector.broadcast %391 : vector<18x1xf32> to vector<18x48xf32>
    %393 = arith.mulf %392, %3 : vector<18x48xf32>
    %cst_100 = arith.constant dense<0.000000e+00> : vector<48xf32>
    %394 = vector.multi_reduction <add>, %393, %cst_100 [0] : vector<18x48xf32> to vector<48xf32>
    %395 = vector.shape_cast %394 : vector<48xf32> to vector<1x48xf32>
    %396 = arith.addf %4, %395 : vector<1x48xf32>
    %397 = math.tanh %396 : vector<1x48xf32>
    %398 = vector.extract_strided_slice %397 {offsets = [0, 0], sizes = [1, 12], strides = [1, 1]} : vector<1x48xf32> to vector<1x12xf32>
    %cst_101 = arith.constant 5.000000e-01 : f32
    %399 = vector.broadcast %cst_101 : f32 to vector<1x12xf32>
    %400 = arith.mulf %399, %398 : vector<1x12xf32>
    %cst_102 = arith.constant 5.000000e-01 : f32
    %401 = vector.broadcast %cst_102 : f32 to vector<1x12xf32>
    %402 = arith.addf %400, %401 : vector<1x12xf32>
    %403 = vector.extract_strided_slice %397 {offsets = [0, 12], sizes = [1, 12], strides = [1, 1]} : vector<1x48xf32> to vector<1x12xf32>
    %cst_103 = arith.constant 5.000000e-01 : f32
    %404 = vector.broadcast %cst_103 : f32 to vector<1x12xf32>
    %405 = arith.mulf %404, %403 : vector<1x12xf32>
    %cst_104 = arith.constant 5.000000e-01 : f32
    %406 = vector.broadcast %cst_104 : f32 to vector<1x12xf32>
    %407 = arith.addf %405, %406 : vector<1x12xf32>
    %408 = vector.extract_strided_slice %397 {offsets = [0, 24], sizes = [1, 12], strides = [1, 1]} : vector<1x48xf32> to vector<1x12xf32>
    %409 = vector.extract_strided_slice %397 {offsets = [0, 36], sizes = [1, 12], strides = [1, 1]} : vector<1x48xf32> to vector<1x12xf32>
    %cst_105 = arith.constant 5.000000e-01 : f32
    %410 = vector.broadcast %cst_105 : f32 to vector<1x12xf32>
    %411 = arith.mulf %410, %409 : vector<1x12xf32>
    %cst_106 = arith.constant 5.000000e-01 : f32
    %412 = vector.broadcast %cst_106 : f32 to vector<1x12xf32>
    %413 = arith.addf %411, %412 : vector<1x12xf32>
    %414 = arith.mulf %407, %351 : vector<1x12xf32>
    %415 = arith.mulf %402, %408 : vector<1x12xf32>
    %416 = arith.addf %414, %415 : vector<1x12xf32>
    %417 = math.tanh %416 : vector<1x12xf32>
    %418 = arith.mulf %413, %417 : vector<1x12xf32>
    %419 = vector.extract_strided_slice %24 {offsets = [6, 0], sizes = [1, 24], strides = [1, 1]} : vector<16x24xf32> to vector<1x24xf32>
    %420 = vector.extract_strided_slice %391 {offsets = [0, 0], sizes = [6, 1], strides = [1, 1]} : vector<18x1xf32> to vector<6x1xf32>
    %421 = vector.broadcast %420 : vector<6x1xf32> to vector<6x24xf32>
    %422 = arith.mulf %421, %0 : vector<6x24xf32>
    %cst_107 = arith.constant dense<0.000000e+00> : vector<24xf32>
    %423 = vector.multi_reduction <add>, %422, %cst_107 [0] : vector<6x24xf32> to vector<24xf32>
    %424 = vector.shape_cast %423 : vector<24xf32> to vector<1x24xf32>
    %425 = arith.addf %419, %424 : vector<1x24xf32>
    %426 = math.tanh %425 : vector<1x24xf32>
    %427 = vector.extract_strided_slice %426 {offsets = [0, 0], sizes = [1, 6], strides = [1, 1]} : vector<1x24xf32> to vector<1x6xf32>
    %cst_108 = arith.constant 5.000000e-01 : f32
    %428 = vector.broadcast %cst_108 : f32 to vector<1x6xf32>
    %429 = arith.mulf %428, %427 : vector<1x6xf32>
    %cst_109 = arith.constant 5.000000e-01 : f32
    %430 = vector.broadcast %cst_109 : f32 to vector<1x6xf32>
    %431 = arith.addf %429, %430 : vector<1x6xf32>
    %432 = vector.extract_strided_slice %426 {offsets = [0, 6], sizes = [1, 6], strides = [1, 1]} : vector<1x24xf32> to vector<1x6xf32>
    %cst_110 = arith.constant 5.000000e-01 : f32
    %433 = vector.broadcast %cst_110 : f32 to vector<1x6xf32>
    %434 = arith.mulf %433, %432 : vector<1x6xf32>
    %cst_111 = arith.constant 5.000000e-01 : f32
    %435 = vector.broadcast %cst_111 : f32 to vector<1x6xf32>
    %436 = arith.addf %434, %435 : vector<1x6xf32>
    %437 = vector.extract_strided_slice %426 {offsets = [0, 12], sizes = [1, 6], strides = [1, 1]} : vector<1x24xf32> to vector<1x6xf32>
    %438 = vector.extract_strided_slice %426 {offsets = [0, 18], sizes = [1, 6], strides = [1, 1]} : vector<1x24xf32> to vector<1x6xf32>
    %cst_112 = arith.constant 5.000000e-01 : f32
    %439 = vector.broadcast %cst_112 : f32 to vector<1x6xf32>
    %440 = arith.mulf %439, %438 : vector<1x6xf32>
    %cst_113 = arith.constant 5.000000e-01 : f32
    %441 = vector.broadcast %cst_113 : f32 to vector<1x6xf32>
    %442 = arith.addf %440, %441 : vector<1x6xf32>
    %443 = arith.mulf %436, %380 : vector<1x6xf32>
    %444 = arith.mulf %431, %437 : vector<1x6xf32>
    %445 = arith.addf %443, %444 : vector<1x6xf32>
    %446 = math.tanh %445 : vector<1x6xf32>
    %447 = arith.mulf %442, %446 : vector<1x6xf32>
    %448 = vector.broadcast %447 : vector<1x6xf32> to vector<18x6xf32>
    %449 = arith.mulf %12, %448 : vector<18x6xf32>
    %cst_114 = arith.constant dense<0.000000e+00> : vector<18xf32>
    %450 = vector.multi_reduction <add>, %449, %cst_114 [1] : vector<18x6xf32> to vector<18xf32>
    %451 = vector.shape_cast %450 : vector<18xf32> to vector<18x1xf32>
    %452 = vector.broadcast %418 : vector<1x12xf32> to vector<18x12xf32>
    %453 = arith.mulf %19, %452 : vector<18x12xf32>
    %cst_115 = arith.constant dense<0.000000e+00> : vector<18xf32>
    %454 = vector.multi_reduction <add>, %453, %cst_115 [1] : vector<18x12xf32> to vector<18xf32>
    %455 = vector.shape_cast %454 : vector<18xf32> to vector<18x1xf32>
    %456 = arith.addf %451, %455 : vector<18x1xf32>
    %457 = vector.broadcast %456 : vector<18x1xf32> to vector<18x48xf32>
    %458 = arith.mulf %457, %3 : vector<18x48xf32>
    %cst_116 = arith.constant dense<0.000000e+00> : vector<48xf32>
    %459 = vector.multi_reduction <add>, %458, %cst_116 [0] : vector<18x48xf32> to vector<48xf32>
    %460 = vector.shape_cast %459 : vector<48xf32> to vector<1x48xf32>
    %461 = arith.addf %4, %460 : vector<1x48xf32>
    %462 = math.tanh %461 : vector<1x48xf32>
    %463 = vector.extract_strided_slice %462 {offsets = [0, 0], sizes = [1, 12], strides = [1, 1]} : vector<1x48xf32> to vector<1x12xf32>
    %cst_117 = arith.constant 5.000000e-01 : f32
    %464 = vector.broadcast %cst_117 : f32 to vector<1x12xf32>
    %465 = arith.mulf %464, %463 : vector<1x12xf32>
    %cst_118 = arith.constant 5.000000e-01 : f32
    %466 = vector.broadcast %cst_118 : f32 to vector<1x12xf32>
    %467 = arith.addf %465, %466 : vector<1x12xf32>
    %468 = vector.extract_strided_slice %462 {offsets = [0, 12], sizes = [1, 12], strides = [1, 1]} : vector<1x48xf32> to vector<1x12xf32>
    %cst_119 = arith.constant 5.000000e-01 : f32
    %469 = vector.broadcast %cst_119 : f32 to vector<1x12xf32>
    %470 = arith.mulf %469, %468 : vector<1x12xf32>
    %cst_120 = arith.constant 5.000000e-01 : f32
    %471 = vector.broadcast %cst_120 : f32 to vector<1x12xf32>
    %472 = arith.addf %470, %471 : vector<1x12xf32>
    %473 = vector.extract_strided_slice %462 {offsets = [0, 24], sizes = [1, 12], strides = [1, 1]} : vector<1x48xf32> to vector<1x12xf32>
    %474 = vector.extract_strided_slice %462 {offsets = [0, 36], sizes = [1, 12], strides = [1, 1]} : vector<1x48xf32> to vector<1x12xf32>
    %cst_121 = arith.constant 5.000000e-01 : f32
    %475 = vector.broadcast %cst_121 : f32 to vector<1x12xf32>
    %476 = arith.mulf %475, %474 : vector<1x12xf32>
    %cst_122 = arith.constant 5.000000e-01 : f32
    %477 = vector.broadcast %cst_122 : f32 to vector<1x12xf32>
    %478 = arith.addf %476, %477 : vector<1x12xf32>
    %479 = arith.mulf %472, %416 : vector<1x12xf32>
    %480 = arith.mulf %467, %473 : vector<1x12xf32>
    %481 = arith.addf %479, %480 : vector<1x12xf32>
    %482 = math.tanh %481 : vector<1x12xf32>
    %483 = arith.mulf %478, %482 : vector<1x12xf32>
    %484 = vector.extract_strided_slice %24 {offsets = [7, 0], sizes = [1, 24], strides = [1, 1]} : vector<16x24xf32> to vector<1x24xf32>
    %485 = vector.extract_strided_slice %456 {offsets = [0, 0], sizes = [6, 1], strides = [1, 1]} : vector<18x1xf32> to vector<6x1xf32>
    %486 = vector.broadcast %485 : vector<6x1xf32> to vector<6x24xf32>
    %487 = arith.mulf %486, %0 : vector<6x24xf32>
    %cst_123 = arith.constant dense<0.000000e+00> : vector<24xf32>
    %488 = vector.multi_reduction <add>, %487, %cst_123 [0] : vector<6x24xf32> to vector<24xf32>
    %489 = vector.shape_cast %488 : vector<24xf32> to vector<1x24xf32>
    %490 = arith.addf %484, %489 : vector<1x24xf32>
    %491 = math.tanh %490 : vector<1x24xf32>
    %492 = vector.extract_strided_slice %491 {offsets = [0, 0], sizes = [1, 6], strides = [1, 1]} : vector<1x24xf32> to vector<1x6xf32>
    %cst_124 = arith.constant 5.000000e-01 : f32
    %493 = vector.broadcast %cst_124 : f32 to vector<1x6xf32>
    %494 = arith.mulf %493, %492 : vector<1x6xf32>
    %cst_125 = arith.constant 5.000000e-01 : f32
    %495 = vector.broadcast %cst_125 : f32 to vector<1x6xf32>
    %496 = arith.addf %494, %495 : vector<1x6xf32>
    %497 = vector.extract_strided_slice %491 {offsets = [0, 6], sizes = [1, 6], strides = [1, 1]} : vector<1x24xf32> to vector<1x6xf32>
    %cst_126 = arith.constant 5.000000e-01 : f32
    %498 = vector.broadcast %cst_126 : f32 to vector<1x6xf32>
    %499 = arith.mulf %498, %497 : vector<1x6xf32>
    %cst_127 = arith.constant 5.000000e-01 : f32
    %500 = vector.broadcast %cst_127 : f32 to vector<1x6xf32>
    %501 = arith.addf %499, %500 : vector<1x6xf32>
    %502 = vector.extract_strided_slice %491 {offsets = [0, 12], sizes = [1, 6], strides = [1, 1]} : vector<1x24xf32> to vector<1x6xf32>
    %503 = vector.extract_strided_slice %491 {offsets = [0, 18], sizes = [1, 6], strides = [1, 1]} : vector<1x24xf32> to vector<1x6xf32>
    %cst_128 = arith.constant 5.000000e-01 : f32
    %504 = vector.broadcast %cst_128 : f32 to vector<1x6xf32>
    %505 = arith.mulf %504, %503 : vector<1x6xf32>
    %cst_129 = arith.constant 5.000000e-01 : f32
    %506 = vector.broadcast %cst_129 : f32 to vector<1x6xf32>
    %507 = arith.addf %505, %506 : vector<1x6xf32>
    %508 = arith.mulf %501, %445 : vector<1x6xf32>
    %509 = arith.mulf %496, %502 : vector<1x6xf32>
    %510 = arith.addf %508, %509 : vector<1x6xf32>
    %511 = math.tanh %510 : vector<1x6xf32>
    %512 = arith.mulf %507, %511 : vector<1x6xf32>
    %513 = vector.broadcast %512 : vector<1x6xf32> to vector<18x6xf32>
    %514 = arith.mulf %12, %513 : vector<18x6xf32>
    %cst_130 = arith.constant dense<0.000000e+00> : vector<18xf32>
    %515 = vector.multi_reduction <add>, %514, %cst_130 [1] : vector<18x6xf32> to vector<18xf32>
    %516 = vector.shape_cast %515 : vector<18xf32> to vector<18x1xf32>
    %517 = vector.broadcast %483 : vector<1x12xf32> to vector<18x12xf32>
    %518 = arith.mulf %19, %517 : vector<18x12xf32>
    %cst_131 = arith.constant dense<0.000000e+00> : vector<18xf32>
    %519 = vector.multi_reduction <add>, %518, %cst_131 [1] : vector<18x12xf32> to vector<18xf32>
    %520 = vector.shape_cast %519 : vector<18xf32> to vector<18x1xf32>
    %521 = arith.addf %516, %520 : vector<18x1xf32>
    %522 = vector.broadcast %521 : vector<18x1xf32> to vector<18x48xf32>
    %523 = arith.mulf %522, %3 : vector<18x48xf32>
    %cst_132 = arith.constant dense<0.000000e+00> : vector<48xf32>
    %524 = vector.multi_reduction <add>, %523, %cst_132 [0] : vector<18x48xf32> to vector<48xf32>
    %525 = vector.shape_cast %524 : vector<48xf32> to vector<1x48xf32>
    %526 = arith.addf %4, %525 : vector<1x48xf32>
    %527 = math.tanh %526 : vector<1x48xf32>
    %528 = vector.extract_strided_slice %527 {offsets = [0, 0], sizes = [1, 12], strides = [1, 1]} : vector<1x48xf32> to vector<1x12xf32>
    %cst_133 = arith.constant 5.000000e-01 : f32
    %529 = vector.broadcast %cst_133 : f32 to vector<1x12xf32>
    %530 = arith.mulf %529, %528 : vector<1x12xf32>
    %cst_134 = arith.constant 5.000000e-01 : f32
    %531 = vector.broadcast %cst_134 : f32 to vector<1x12xf32>
    %532 = arith.addf %530, %531 : vector<1x12xf32>
    %533 = vector.extract_strided_slice %527 {offsets = [0, 12], sizes = [1, 12], strides = [1, 1]} : vector<1x48xf32> to vector<1x12xf32>
    %cst_135 = arith.constant 5.000000e-01 : f32
    %534 = vector.broadcast %cst_135 : f32 to vector<1x12xf32>
    %535 = arith.mulf %534, %533 : vector<1x12xf32>
    %cst_136 = arith.constant 5.000000e-01 : f32
    %536 = vector.broadcast %cst_136 : f32 to vector<1x12xf32>
    %537 = arith.addf %535, %536 : vector<1x12xf32>
    %538 = vector.extract_strided_slice %527 {offsets = [0, 24], sizes = [1, 12], strides = [1, 1]} : vector<1x48xf32> to vector<1x12xf32>
    %539 = vector.extract_strided_slice %527 {offsets = [0, 36], sizes = [1, 12], strides = [1, 1]} : vector<1x48xf32> to vector<1x12xf32>
    %cst_137 = arith.constant 5.000000e-01 : f32
    %540 = vector.broadcast %cst_137 : f32 to vector<1x12xf32>
    %541 = arith.mulf %540, %539 : vector<1x12xf32>
    %cst_138 = arith.constant 5.000000e-01 : f32
    %542 = vector.broadcast %cst_138 : f32 to vector<1x12xf32>
    %543 = arith.addf %541, %542 : vector<1x12xf32>
    %544 = arith.mulf %537, %481 : vector<1x12xf32>
    %545 = arith.mulf %532, %538 : vector<1x12xf32>
    %546 = arith.addf %544, %545 : vector<1x12xf32>
    %547 = math.tanh %546 : vector<1x12xf32>
    %548 = arith.mulf %543, %547 : vector<1x12xf32>
    %549 = vector.extract_strided_slice %24 {offsets = [8, 0], sizes = [1, 24], strides = [1, 1]} : vector<16x24xf32> to vector<1x24xf32>
    %550 = vector.extract_strided_slice %521 {offsets = [0, 0], sizes = [6, 1], strides = [1, 1]} : vector<18x1xf32> to vector<6x1xf32>
    %551 = vector.broadcast %550 : vector<6x1xf32> to vector<6x24xf32>
    %552 = arith.mulf %551, %0 : vector<6x24xf32>
    %cst_139 = arith.constant dense<0.000000e+00> : vector<24xf32>
    %553 = vector.multi_reduction <add>, %552, %cst_139 [0] : vector<6x24xf32> to vector<24xf32>
    %554 = vector.shape_cast %553 : vector<24xf32> to vector<1x24xf32>
    %555 = arith.addf %549, %554 : vector<1x24xf32>
    %556 = math.tanh %555 : vector<1x24xf32>
    %557 = vector.extract_strided_slice %556 {offsets = [0, 0], sizes = [1, 6], strides = [1, 1]} : vector<1x24xf32> to vector<1x6xf32>
    %cst_140 = arith.constant 5.000000e-01 : f32
    %558 = vector.broadcast %cst_140 : f32 to vector<1x6xf32>
    %559 = arith.mulf %558, %557 : vector<1x6xf32>
    %cst_141 = arith.constant 5.000000e-01 : f32
    %560 = vector.broadcast %cst_141 : f32 to vector<1x6xf32>
    %561 = arith.addf %559, %560 : vector<1x6xf32>
    %562 = vector.extract_strided_slice %556 {offsets = [0, 6], sizes = [1, 6], strides = [1, 1]} : vector<1x24xf32> to vector<1x6xf32>
    %cst_142 = arith.constant 5.000000e-01 : f32
    %563 = vector.broadcast %cst_142 : f32 to vector<1x6xf32>
    %564 = arith.mulf %563, %562 : vector<1x6xf32>
    %cst_143 = arith.constant 5.000000e-01 : f32
    %565 = vector.broadcast %cst_143 : f32 to vector<1x6xf32>
    %566 = arith.addf %564, %565 : vector<1x6xf32>
    %567 = vector.extract_strided_slice %556 {offsets = [0, 12], sizes = [1, 6], strides = [1, 1]} : vector<1x24xf32> to vector<1x6xf32>
    %568 = vector.extract_strided_slice %556 {offsets = [0, 18], sizes = [1, 6], strides = [1, 1]} : vector<1x24xf32> to vector<1x6xf32>
    %cst_144 = arith.constant 5.000000e-01 : f32
    %569 = vector.broadcast %cst_144 : f32 to vector<1x6xf32>
    %570 = arith.mulf %569, %568 : vector<1x6xf32>
    %cst_145 = arith.constant 5.000000e-01 : f32
    %571 = vector.broadcast %cst_145 : f32 to vector<1x6xf32>
    %572 = arith.addf %570, %571 : vector<1x6xf32>
    %573 = arith.mulf %566, %510 : vector<1x6xf32>
    %574 = arith.mulf %561, %567 : vector<1x6xf32>
    %575 = arith.addf %573, %574 : vector<1x6xf32>
    %576 = math.tanh %575 : vector<1x6xf32>
    %577 = arith.mulf %572, %576 : vector<1x6xf32>
    %578 = vector.broadcast %577 : vector<1x6xf32> to vector<18x6xf32>
    %579 = arith.mulf %12, %578 : vector<18x6xf32>
    %cst_146 = arith.constant dense<0.000000e+00> : vector<18xf32>
    %580 = vector.multi_reduction <add>, %579, %cst_146 [1] : vector<18x6xf32> to vector<18xf32>
    %581 = vector.shape_cast %580 : vector<18xf32> to vector<18x1xf32>
    %582 = vector.broadcast %548 : vector<1x12xf32> to vector<18x12xf32>
    %583 = arith.mulf %19, %582 : vector<18x12xf32>
    %cst_147 = arith.constant dense<0.000000e+00> : vector<18xf32>
    %584 = vector.multi_reduction <add>, %583, %cst_147 [1] : vector<18x12xf32> to vector<18xf32>
    %585 = vector.shape_cast %584 : vector<18xf32> to vector<18x1xf32>
    %586 = arith.addf %581, %585 : vector<18x1xf32>
    %587 = vector.broadcast %586 : vector<18x1xf32> to vector<18x48xf32>
    %588 = arith.mulf %587, %3 : vector<18x48xf32>
    %cst_148 = arith.constant dense<0.000000e+00> : vector<48xf32>
    %589 = vector.multi_reduction <add>, %588, %cst_148 [0] : vector<18x48xf32> to vector<48xf32>
    %590 = vector.shape_cast %589 : vector<48xf32> to vector<1x48xf32>
    %591 = arith.addf %4, %590 : vector<1x48xf32>
    %592 = math.tanh %591 : vector<1x48xf32>
    %593 = vector.extract_strided_slice %592 {offsets = [0, 0], sizes = [1, 12], strides = [1, 1]} : vector<1x48xf32> to vector<1x12xf32>
    %cst_149 = arith.constant 5.000000e-01 : f32
    %594 = vector.broadcast %cst_149 : f32 to vector<1x12xf32>
    %595 = arith.mulf %594, %593 : vector<1x12xf32>
    %cst_150 = arith.constant 5.000000e-01 : f32
    %596 = vector.broadcast %cst_150 : f32 to vector<1x12xf32>
    %597 = arith.addf %595, %596 : vector<1x12xf32>
    %598 = vector.extract_strided_slice %592 {offsets = [0, 12], sizes = [1, 12], strides = [1, 1]} : vector<1x48xf32> to vector<1x12xf32>
    %cst_151 = arith.constant 5.000000e-01 : f32
    %599 = vector.broadcast %cst_151 : f32 to vector<1x12xf32>
    %600 = arith.mulf %599, %598 : vector<1x12xf32>
    %cst_152 = arith.constant 5.000000e-01 : f32
    %601 = vector.broadcast %cst_152 : f32 to vector<1x12xf32>
    %602 = arith.addf %600, %601 : vector<1x12xf32>
    %603 = vector.extract_strided_slice %592 {offsets = [0, 24], sizes = [1, 12], strides = [1, 1]} : vector<1x48xf32> to vector<1x12xf32>
    %604 = vector.extract_strided_slice %592 {offsets = [0, 36], sizes = [1, 12], strides = [1, 1]} : vector<1x48xf32> to vector<1x12xf32>
    %cst_153 = arith.constant 5.000000e-01 : f32
    %605 = vector.broadcast %cst_153 : f32 to vector<1x12xf32>
    %606 = arith.mulf %605, %604 : vector<1x12xf32>
    %cst_154 = arith.constant 5.000000e-01 : f32
    %607 = vector.broadcast %cst_154 : f32 to vector<1x12xf32>
    %608 = arith.addf %606, %607 : vector<1x12xf32>
    %609 = arith.mulf %602, %546 : vector<1x12xf32>
    %610 = arith.mulf %597, %603 : vector<1x12xf32>
    %611 = arith.addf %609, %610 : vector<1x12xf32>
    %612 = math.tanh %611 : vector<1x12xf32>
    %613 = arith.mulf %608, %612 : vector<1x12xf32>
    %614 = vector.extract_strided_slice %24 {offsets = [9, 0], sizes = [1, 24], strides = [1, 1]} : vector<16x24xf32> to vector<1x24xf32>
    %615 = vector.extract_strided_slice %586 {offsets = [0, 0], sizes = [6, 1], strides = [1, 1]} : vector<18x1xf32> to vector<6x1xf32>
    %616 = vector.broadcast %615 : vector<6x1xf32> to vector<6x24xf32>
    %617 = arith.mulf %616, %0 : vector<6x24xf32>
    %cst_155 = arith.constant dense<0.000000e+00> : vector<24xf32>
    %618 = vector.multi_reduction <add>, %617, %cst_155 [0] : vector<6x24xf32> to vector<24xf32>
    %619 = vector.shape_cast %618 : vector<24xf32> to vector<1x24xf32>
    %620 = arith.addf %614, %619 : vector<1x24xf32>
    %621 = math.tanh %620 : vector<1x24xf32>
    %622 = vector.extract_strided_slice %621 {offsets = [0, 0], sizes = [1, 6], strides = [1, 1]} : vector<1x24xf32> to vector<1x6xf32>
    %cst_156 = arith.constant 5.000000e-01 : f32
    %623 = vector.broadcast %cst_156 : f32 to vector<1x6xf32>
    %624 = arith.mulf %623, %622 : vector<1x6xf32>
    %cst_157 = arith.constant 5.000000e-01 : f32
    %625 = vector.broadcast %cst_157 : f32 to vector<1x6xf32>
    %626 = arith.addf %624, %625 : vector<1x6xf32>
    %627 = vector.extract_strided_slice %621 {offsets = [0, 6], sizes = [1, 6], strides = [1, 1]} : vector<1x24xf32> to vector<1x6xf32>
    %cst_158 = arith.constant 5.000000e-01 : f32
    %628 = vector.broadcast %cst_158 : f32 to vector<1x6xf32>
    %629 = arith.mulf %628, %627 : vector<1x6xf32>
    %cst_159 = arith.constant 5.000000e-01 : f32
    %630 = vector.broadcast %cst_159 : f32 to vector<1x6xf32>
    %631 = arith.addf %629, %630 : vector<1x6xf32>
    %632 = vector.extract_strided_slice %621 {offsets = [0, 12], sizes = [1, 6], strides = [1, 1]} : vector<1x24xf32> to vector<1x6xf32>
    %633 = vector.extract_strided_slice %621 {offsets = [0, 18], sizes = [1, 6], strides = [1, 1]} : vector<1x24xf32> to vector<1x6xf32>
    %cst_160 = arith.constant 5.000000e-01 : f32
    %634 = vector.broadcast %cst_160 : f32 to vector<1x6xf32>
    %635 = arith.mulf %634, %633 : vector<1x6xf32>
    %cst_161 = arith.constant 5.000000e-01 : f32
    %636 = vector.broadcast %cst_161 : f32 to vector<1x6xf32>
    %637 = arith.addf %635, %636 : vector<1x6xf32>
    %638 = arith.mulf %631, %575 : vector<1x6xf32>
    %639 = arith.mulf %626, %632 : vector<1x6xf32>
    %640 = arith.addf %638, %639 : vector<1x6xf32>
    %641 = math.tanh %640 : vector<1x6xf32>
    %642 = arith.mulf %637, %641 : vector<1x6xf32>
    %643 = vector.broadcast %642 : vector<1x6xf32> to vector<18x6xf32>
    %644 = arith.mulf %12, %643 : vector<18x6xf32>
    %cst_162 = arith.constant dense<0.000000e+00> : vector<18xf32>
    %645 = vector.multi_reduction <add>, %644, %cst_162 [1] : vector<18x6xf32> to vector<18xf32>
    %646 = vector.shape_cast %645 : vector<18xf32> to vector<18x1xf32>
    %647 = vector.broadcast %613 : vector<1x12xf32> to vector<18x12xf32>
    %648 = arith.mulf %19, %647 : vector<18x12xf32>
    %cst_163 = arith.constant dense<0.000000e+00> : vector<18xf32>
    %649 = vector.multi_reduction <add>, %648, %cst_163 [1] : vector<18x12xf32> to vector<18xf32>
    %650 = vector.shape_cast %649 : vector<18xf32> to vector<18x1xf32>
    %651 = arith.addf %646, %650 : vector<18x1xf32>
    %652 = vector.broadcast %651 : vector<18x1xf32> to vector<18x48xf32>
    %653 = arith.mulf %652, %3 : vector<18x48xf32>
    %cst_164 = arith.constant dense<0.000000e+00> : vector<48xf32>
    %654 = vector.multi_reduction <add>, %653, %cst_164 [0] : vector<18x48xf32> to vector<48xf32>
    %655 = vector.shape_cast %654 : vector<48xf32> to vector<1x48xf32>
    %656 = arith.addf %4, %655 : vector<1x48xf32>
    %657 = math.tanh %656 : vector<1x48xf32>
    %658 = vector.extract_strided_slice %657 {offsets = [0, 0], sizes = [1, 12], strides = [1, 1]} : vector<1x48xf32> to vector<1x12xf32>
    %cst_165 = arith.constant 5.000000e-01 : f32
    %659 = vector.broadcast %cst_165 : f32 to vector<1x12xf32>
    %660 = arith.mulf %659, %658 : vector<1x12xf32>
    %cst_166 = arith.constant 5.000000e-01 : f32
    %661 = vector.broadcast %cst_166 : f32 to vector<1x12xf32>
    %662 = arith.addf %660, %661 : vector<1x12xf32>
    %663 = vector.extract_strided_slice %657 {offsets = [0, 12], sizes = [1, 12], strides = [1, 1]} : vector<1x48xf32> to vector<1x12xf32>
    %cst_167 = arith.constant 5.000000e-01 : f32
    %664 = vector.broadcast %cst_167 : f32 to vector<1x12xf32>
    %665 = arith.mulf %664, %663 : vector<1x12xf32>
    %cst_168 = arith.constant 5.000000e-01 : f32
    %666 = vector.broadcast %cst_168 : f32 to vector<1x12xf32>
    %667 = arith.addf %665, %666 : vector<1x12xf32>
    %668 = vector.extract_strided_slice %657 {offsets = [0, 24], sizes = [1, 12], strides = [1, 1]} : vector<1x48xf32> to vector<1x12xf32>
    %669 = vector.extract_strided_slice %657 {offsets = [0, 36], sizes = [1, 12], strides = [1, 1]} : vector<1x48xf32> to vector<1x12xf32>
    %cst_169 = arith.constant 5.000000e-01 : f32
    %670 = vector.broadcast %cst_169 : f32 to vector<1x12xf32>
    %671 = arith.mulf %670, %669 : vector<1x12xf32>
    %cst_170 = arith.constant 5.000000e-01 : f32
    %672 = vector.broadcast %cst_170 : f32 to vector<1x12xf32>
    %673 = arith.addf %671, %672 : vector<1x12xf32>
    %674 = arith.mulf %667, %611 : vector<1x12xf32>
    %675 = arith.mulf %662, %668 : vector<1x12xf32>
    %676 = arith.addf %674, %675 : vector<1x12xf32>
    %677 = math.tanh %676 : vector<1x12xf32>
    %678 = arith.mulf %673, %677 : vector<1x12xf32>
    %679 = vector.extract_strided_slice %24 {offsets = [10, 0], sizes = [1, 24], strides = [1, 1]} : vector<16x24xf32> to vector<1x24xf32>
    %680 = vector.extract_strided_slice %651 {offsets = [0, 0], sizes = [6, 1], strides = [1, 1]} : vector<18x1xf32> to vector<6x1xf32>
    %681 = vector.broadcast %680 : vector<6x1xf32> to vector<6x24xf32>
    %682 = arith.mulf %681, %0 : vector<6x24xf32>
    %cst_171 = arith.constant dense<0.000000e+00> : vector<24xf32>
    %683 = vector.multi_reduction <add>, %682, %cst_171 [0] : vector<6x24xf32> to vector<24xf32>
    %684 = vector.shape_cast %683 : vector<24xf32> to vector<1x24xf32>
    %685 = arith.addf %679, %684 : vector<1x24xf32>
    %686 = math.tanh %685 : vector<1x24xf32>
    %687 = vector.extract_strided_slice %686 {offsets = [0, 0], sizes = [1, 6], strides = [1, 1]} : vector<1x24xf32> to vector<1x6xf32>
    %cst_172 = arith.constant 5.000000e-01 : f32
    %688 = vector.broadcast %cst_172 : f32 to vector<1x6xf32>
    %689 = arith.mulf %688, %687 : vector<1x6xf32>
    %cst_173 = arith.constant 5.000000e-01 : f32
    %690 = vector.broadcast %cst_173 : f32 to vector<1x6xf32>
    %691 = arith.addf %689, %690 : vector<1x6xf32>
    %692 = vector.extract_strided_slice %686 {offsets = [0, 6], sizes = [1, 6], strides = [1, 1]} : vector<1x24xf32> to vector<1x6xf32>
    %cst_174 = arith.constant 5.000000e-01 : f32
    %693 = vector.broadcast %cst_174 : f32 to vector<1x6xf32>
    %694 = arith.mulf %693, %692 : vector<1x6xf32>
    %cst_175 = arith.constant 5.000000e-01 : f32
    %695 = vector.broadcast %cst_175 : f32 to vector<1x6xf32>
    %696 = arith.addf %694, %695 : vector<1x6xf32>
    %697 = vector.extract_strided_slice %686 {offsets = [0, 12], sizes = [1, 6], strides = [1, 1]} : vector<1x24xf32> to vector<1x6xf32>
    %698 = vector.extract_strided_slice %686 {offsets = [0, 18], sizes = [1, 6], strides = [1, 1]} : vector<1x24xf32> to vector<1x6xf32>
    %cst_176 = arith.constant 5.000000e-01 : f32
    %699 = vector.broadcast %cst_176 : f32 to vector<1x6xf32>
    %700 = arith.mulf %699, %698 : vector<1x6xf32>
    %cst_177 = arith.constant 5.000000e-01 : f32
    %701 = vector.broadcast %cst_177 : f32 to vector<1x6xf32>
    %702 = arith.addf %700, %701 : vector<1x6xf32>
    %703 = arith.mulf %696, %640 : vector<1x6xf32>
    %704 = arith.mulf %691, %697 : vector<1x6xf32>
    %705 = arith.addf %703, %704 : vector<1x6xf32>
    %706 = math.tanh %705 : vector<1x6xf32>
    %707 = arith.mulf %702, %706 : vector<1x6xf32>
    %708 = vector.broadcast %707 : vector<1x6xf32> to vector<18x6xf32>
    %709 = arith.mulf %12, %708 : vector<18x6xf32>
    %cst_178 = arith.constant dense<0.000000e+00> : vector<18xf32>
    %710 = vector.multi_reduction <add>, %709, %cst_178 [1] : vector<18x6xf32> to vector<18xf32>
    %711 = vector.shape_cast %710 : vector<18xf32> to vector<18x1xf32>
    %712 = vector.broadcast %678 : vector<1x12xf32> to vector<18x12xf32>
    %713 = arith.mulf %19, %712 : vector<18x12xf32>
    %cst_179 = arith.constant dense<0.000000e+00> : vector<18xf32>
    %714 = vector.multi_reduction <add>, %713, %cst_179 [1] : vector<18x12xf32> to vector<18xf32>
    %715 = vector.shape_cast %714 : vector<18xf32> to vector<18x1xf32>
    %716 = arith.addf %711, %715 : vector<18x1xf32>
    %717 = vector.broadcast %716 : vector<18x1xf32> to vector<18x48xf32>
    %718 = arith.mulf %717, %3 : vector<18x48xf32>
    %cst_180 = arith.constant dense<0.000000e+00> : vector<48xf32>
    %719 = vector.multi_reduction <add>, %718, %cst_180 [0] : vector<18x48xf32> to vector<48xf32>
    %720 = vector.shape_cast %719 : vector<48xf32> to vector<1x48xf32>
    %721 = arith.addf %4, %720 : vector<1x48xf32>
    %722 = math.tanh %721 : vector<1x48xf32>
    %723 = vector.extract_strided_slice %722 {offsets = [0, 0], sizes = [1, 12], strides = [1, 1]} : vector<1x48xf32> to vector<1x12xf32>
    %cst_181 = arith.constant 5.000000e-01 : f32
    %724 = vector.broadcast %cst_181 : f32 to vector<1x12xf32>
    %725 = arith.mulf %724, %723 : vector<1x12xf32>
    %cst_182 = arith.constant 5.000000e-01 : f32
    %726 = vector.broadcast %cst_182 : f32 to vector<1x12xf32>
    %727 = arith.addf %725, %726 : vector<1x12xf32>
    %728 = vector.extract_strided_slice %722 {offsets = [0, 12], sizes = [1, 12], strides = [1, 1]} : vector<1x48xf32> to vector<1x12xf32>
    %cst_183 = arith.constant 5.000000e-01 : f32
    %729 = vector.broadcast %cst_183 : f32 to vector<1x12xf32>
    %730 = arith.mulf %729, %728 : vector<1x12xf32>
    %cst_184 = arith.constant 5.000000e-01 : f32
    %731 = vector.broadcast %cst_184 : f32 to vector<1x12xf32>
    %732 = arith.addf %730, %731 : vector<1x12xf32>
    %733 = vector.extract_strided_slice %722 {offsets = [0, 24], sizes = [1, 12], strides = [1, 1]} : vector<1x48xf32> to vector<1x12xf32>
    %734 = vector.extract_strided_slice %722 {offsets = [0, 36], sizes = [1, 12], strides = [1, 1]} : vector<1x48xf32> to vector<1x12xf32>
    %cst_185 = arith.constant 5.000000e-01 : f32
    %735 = vector.broadcast %cst_185 : f32 to vector<1x12xf32>
    %736 = arith.mulf %735, %734 : vector<1x12xf32>
    %cst_186 = arith.constant 5.000000e-01 : f32
    %737 = vector.broadcast %cst_186 : f32 to vector<1x12xf32>
    %738 = arith.addf %736, %737 : vector<1x12xf32>
    %739 = arith.mulf %732, %676 : vector<1x12xf32>
    %740 = arith.mulf %727, %733 : vector<1x12xf32>
    %741 = arith.addf %739, %740 : vector<1x12xf32>
    %742 = math.tanh %741 : vector<1x12xf32>
    %743 = arith.mulf %738, %742 : vector<1x12xf32>
    %744 = vector.extract_strided_slice %24 {offsets = [11, 0], sizes = [1, 24], strides = [1, 1]} : vector<16x24xf32> to vector<1x24xf32>
    %745 = vector.extract_strided_slice %716 {offsets = [0, 0], sizes = [6, 1], strides = [1, 1]} : vector<18x1xf32> to vector<6x1xf32>
    %746 = vector.broadcast %745 : vector<6x1xf32> to vector<6x24xf32>
    %747 = arith.mulf %746, %0 : vector<6x24xf32>
    %cst_187 = arith.constant dense<0.000000e+00> : vector<24xf32>
    %748 = vector.multi_reduction <add>, %747, %cst_187 [0] : vector<6x24xf32> to vector<24xf32>
    %749 = vector.shape_cast %748 : vector<24xf32> to vector<1x24xf32>
    %750 = arith.addf %744, %749 : vector<1x24xf32>
    %751 = math.tanh %750 : vector<1x24xf32>
    %752 = vector.extract_strided_slice %751 {offsets = [0, 0], sizes = [1, 6], strides = [1, 1]} : vector<1x24xf32> to vector<1x6xf32>
    %cst_188 = arith.constant 5.000000e-01 : f32
    %753 = vector.broadcast %cst_188 : f32 to vector<1x6xf32>
    %754 = arith.mulf %753, %752 : vector<1x6xf32>
    %cst_189 = arith.constant 5.000000e-01 : f32
    %755 = vector.broadcast %cst_189 : f32 to vector<1x6xf32>
    %756 = arith.addf %754, %755 : vector<1x6xf32>
    %757 = vector.extract_strided_slice %751 {offsets = [0, 6], sizes = [1, 6], strides = [1, 1]} : vector<1x24xf32> to vector<1x6xf32>
    %cst_190 = arith.constant 5.000000e-01 : f32
    %758 = vector.broadcast %cst_190 : f32 to vector<1x6xf32>
    %759 = arith.mulf %758, %757 : vector<1x6xf32>
    %cst_191 = arith.constant 5.000000e-01 : f32
    %760 = vector.broadcast %cst_191 : f32 to vector<1x6xf32>
    %761 = arith.addf %759, %760 : vector<1x6xf32>
    %762 = vector.extract_strided_slice %751 {offsets = [0, 12], sizes = [1, 6], strides = [1, 1]} : vector<1x24xf32> to vector<1x6xf32>
    %763 = vector.extract_strided_slice %751 {offsets = [0, 18], sizes = [1, 6], strides = [1, 1]} : vector<1x24xf32> to vector<1x6xf32>
    %cst_192 = arith.constant 5.000000e-01 : f32
    %764 = vector.broadcast %cst_192 : f32 to vector<1x6xf32>
    %765 = arith.mulf %764, %763 : vector<1x6xf32>
    %cst_193 = arith.constant 5.000000e-01 : f32
    %766 = vector.broadcast %cst_193 : f32 to vector<1x6xf32>
    %767 = arith.addf %765, %766 : vector<1x6xf32>
    %768 = arith.mulf %761, %705 : vector<1x6xf32>
    %769 = arith.mulf %756, %762 : vector<1x6xf32>
    %770 = arith.addf %768, %769 : vector<1x6xf32>
    %771 = math.tanh %770 : vector<1x6xf32>
    %772 = arith.mulf %767, %771 : vector<1x6xf32>
    %773 = vector.broadcast %772 : vector<1x6xf32> to vector<18x6xf32>
    %774 = arith.mulf %12, %773 : vector<18x6xf32>
    %cst_194 = arith.constant dense<0.000000e+00> : vector<18xf32>
    %775 = vector.multi_reduction <add>, %774, %cst_194 [1] : vector<18x6xf32> to vector<18xf32>
    %776 = vector.shape_cast %775 : vector<18xf32> to vector<18x1xf32>
    %777 = vector.broadcast %743 : vector<1x12xf32> to vector<18x12xf32>
    %778 = arith.mulf %19, %777 : vector<18x12xf32>
    %cst_195 = arith.constant dense<0.000000e+00> : vector<18xf32>
    %779 = vector.multi_reduction <add>, %778, %cst_195 [1] : vector<18x12xf32> to vector<18xf32>
    %780 = vector.shape_cast %779 : vector<18xf32> to vector<18x1xf32>
    %781 = arith.addf %776, %780 : vector<18x1xf32>
    %782 = vector.broadcast %781 : vector<18x1xf32> to vector<18x48xf32>
    %783 = arith.mulf %782, %3 : vector<18x48xf32>
    %cst_196 = arith.constant dense<0.000000e+00> : vector<48xf32>
    %784 = vector.multi_reduction <add>, %783, %cst_196 [0] : vector<18x48xf32> to vector<48xf32>
    %785 = vector.shape_cast %784 : vector<48xf32> to vector<1x48xf32>
    %786 = arith.addf %4, %785 : vector<1x48xf32>
    %787 = math.tanh %786 : vector<1x48xf32>
    %788 = vector.extract_strided_slice %787 {offsets = [0, 0], sizes = [1, 12], strides = [1, 1]} : vector<1x48xf32> to vector<1x12xf32>
    %cst_197 = arith.constant 5.000000e-01 : f32
    %789 = vector.broadcast %cst_197 : f32 to vector<1x12xf32>
    %790 = arith.mulf %789, %788 : vector<1x12xf32>
    %cst_198 = arith.constant 5.000000e-01 : f32
    %791 = vector.broadcast %cst_198 : f32 to vector<1x12xf32>
    %792 = arith.addf %790, %791 : vector<1x12xf32>
    %793 = vector.extract_strided_slice %787 {offsets = [0, 12], sizes = [1, 12], strides = [1, 1]} : vector<1x48xf32> to vector<1x12xf32>
    %cst_199 = arith.constant 5.000000e-01 : f32
    %794 = vector.broadcast %cst_199 : f32 to vector<1x12xf32>
    %795 = arith.mulf %794, %793 : vector<1x12xf32>
    %cst_200 = arith.constant 5.000000e-01 : f32
    %796 = vector.broadcast %cst_200 : f32 to vector<1x12xf32>
    %797 = arith.addf %795, %796 : vector<1x12xf32>
    %798 = vector.extract_strided_slice %787 {offsets = [0, 24], sizes = [1, 12], strides = [1, 1]} : vector<1x48xf32> to vector<1x12xf32>
    %799 = vector.extract_strided_slice %787 {offsets = [0, 36], sizes = [1, 12], strides = [1, 1]} : vector<1x48xf32> to vector<1x12xf32>
    %cst_201 = arith.constant 5.000000e-01 : f32
    %800 = vector.broadcast %cst_201 : f32 to vector<1x12xf32>
    %801 = arith.mulf %800, %799 : vector<1x12xf32>
    %cst_202 = arith.constant 5.000000e-01 : f32
    %802 = vector.broadcast %cst_202 : f32 to vector<1x12xf32>
    %803 = arith.addf %801, %802 : vector<1x12xf32>
    %804 = arith.mulf %797, %741 : vector<1x12xf32>
    %805 = arith.mulf %792, %798 : vector<1x12xf32>
    %806 = arith.addf %804, %805 : vector<1x12xf32>
    %807 = math.tanh %806 : vector<1x12xf32>
    %808 = arith.mulf %803, %807 : vector<1x12xf32>
    %809 = vector.extract_strided_slice %24 {offsets = [12, 0], sizes = [1, 24], strides = [1, 1]} : vector<16x24xf32> to vector<1x24xf32>
    %810 = vector.extract_strided_slice %781 {offsets = [0, 0], sizes = [6, 1], strides = [1, 1]} : vector<18x1xf32> to vector<6x1xf32>
    %811 = vector.broadcast %810 : vector<6x1xf32> to vector<6x24xf32>
    %812 = arith.mulf %811, %0 : vector<6x24xf32>
    %cst_203 = arith.constant dense<0.000000e+00> : vector<24xf32>
    %813 = vector.multi_reduction <add>, %812, %cst_203 [0] : vector<6x24xf32> to vector<24xf32>
    %814 = vector.shape_cast %813 : vector<24xf32> to vector<1x24xf32>
    %815 = arith.addf %809, %814 : vector<1x24xf32>
    %816 = math.tanh %815 : vector<1x24xf32>
    %817 = vector.extract_strided_slice %816 {offsets = [0, 0], sizes = [1, 6], strides = [1, 1]} : vector<1x24xf32> to vector<1x6xf32>
    %cst_204 = arith.constant 5.000000e-01 : f32
    %818 = vector.broadcast %cst_204 : f32 to vector<1x6xf32>
    %819 = arith.mulf %818, %817 : vector<1x6xf32>
    %cst_205 = arith.constant 5.000000e-01 : f32
    %820 = vector.broadcast %cst_205 : f32 to vector<1x6xf32>
    %821 = arith.addf %819, %820 : vector<1x6xf32>
    %822 = vector.extract_strided_slice %816 {offsets = [0, 6], sizes = [1, 6], strides = [1, 1]} : vector<1x24xf32> to vector<1x6xf32>
    %cst_206 = arith.constant 5.000000e-01 : f32
    %823 = vector.broadcast %cst_206 : f32 to vector<1x6xf32>
    %824 = arith.mulf %823, %822 : vector<1x6xf32>
    %cst_207 = arith.constant 5.000000e-01 : f32
    %825 = vector.broadcast %cst_207 : f32 to vector<1x6xf32>
    %826 = arith.addf %824, %825 : vector<1x6xf32>
    %827 = vector.extract_strided_slice %816 {offsets = [0, 12], sizes = [1, 6], strides = [1, 1]} : vector<1x24xf32> to vector<1x6xf32>
    %828 = vector.extract_strided_slice %816 {offsets = [0, 18], sizes = [1, 6], strides = [1, 1]} : vector<1x24xf32> to vector<1x6xf32>
    %cst_208 = arith.constant 5.000000e-01 : f32
    %829 = vector.broadcast %cst_208 : f32 to vector<1x6xf32>
    %830 = arith.mulf %829, %828 : vector<1x6xf32>
    %cst_209 = arith.constant 5.000000e-01 : f32
    %831 = vector.broadcast %cst_209 : f32 to vector<1x6xf32>
    %832 = arith.addf %830, %831 : vector<1x6xf32>
    %833 = arith.mulf %826, %770 : vector<1x6xf32>
    %834 = arith.mulf %821, %827 : vector<1x6xf32>
    %835 = arith.addf %833, %834 : vector<1x6xf32>
    %836 = math.tanh %835 : vector<1x6xf32>
    %837 = arith.mulf %832, %836 : vector<1x6xf32>
    %838 = vector.broadcast %837 : vector<1x6xf32> to vector<18x6xf32>
    %839 = arith.mulf %12, %838 : vector<18x6xf32>
    %cst_210 = arith.constant dense<0.000000e+00> : vector<18xf32>
    %840 = vector.multi_reduction <add>, %839, %cst_210 [1] : vector<18x6xf32> to vector<18xf32>
    %841 = vector.shape_cast %840 : vector<18xf32> to vector<18x1xf32>
    %842 = vector.broadcast %808 : vector<1x12xf32> to vector<18x12xf32>
    %843 = arith.mulf %19, %842 : vector<18x12xf32>
    %cst_211 = arith.constant dense<0.000000e+00> : vector<18xf32>
    %844 = vector.multi_reduction <add>, %843, %cst_211 [1] : vector<18x12xf32> to vector<18xf32>
    %845 = vector.shape_cast %844 : vector<18xf32> to vector<18x1xf32>
    %846 = arith.addf %841, %845 : vector<18x1xf32>
    %847 = vector.broadcast %846 : vector<18x1xf32> to vector<18x48xf32>
    %848 = arith.mulf %847, %3 : vector<18x48xf32>
    %cst_212 = arith.constant dense<0.000000e+00> : vector<48xf32>
    %849 = vector.multi_reduction <add>, %848, %cst_212 [0] : vector<18x48xf32> to vector<48xf32>
    %850 = vector.shape_cast %849 : vector<48xf32> to vector<1x48xf32>
    %851 = arith.addf %4, %850 : vector<1x48xf32>
    %852 = math.tanh %851 : vector<1x48xf32>
    %853 = vector.extract_strided_slice %852 {offsets = [0, 0], sizes = [1, 12], strides = [1, 1]} : vector<1x48xf32> to vector<1x12xf32>
    %cst_213 = arith.constant 5.000000e-01 : f32
    %854 = vector.broadcast %cst_213 : f32 to vector<1x12xf32>
    %855 = arith.mulf %854, %853 : vector<1x12xf32>
    %cst_214 = arith.constant 5.000000e-01 : f32
    %856 = vector.broadcast %cst_214 : f32 to vector<1x12xf32>
    %857 = arith.addf %855, %856 : vector<1x12xf32>
    %858 = vector.extract_strided_slice %852 {offsets = [0, 12], sizes = [1, 12], strides = [1, 1]} : vector<1x48xf32> to vector<1x12xf32>
    %cst_215 = arith.constant 5.000000e-01 : f32
    %859 = vector.broadcast %cst_215 : f32 to vector<1x12xf32>
    %860 = arith.mulf %859, %858 : vector<1x12xf32>
    %cst_216 = arith.constant 5.000000e-01 : f32
    %861 = vector.broadcast %cst_216 : f32 to vector<1x12xf32>
    %862 = arith.addf %860, %861 : vector<1x12xf32>
    %863 = vector.extract_strided_slice %852 {offsets = [0, 24], sizes = [1, 12], strides = [1, 1]} : vector<1x48xf32> to vector<1x12xf32>
    %864 = vector.extract_strided_slice %852 {offsets = [0, 36], sizes = [1, 12], strides = [1, 1]} : vector<1x48xf32> to vector<1x12xf32>
    %cst_217 = arith.constant 5.000000e-01 : f32
    %865 = vector.broadcast %cst_217 : f32 to vector<1x12xf32>
    %866 = arith.mulf %865, %864 : vector<1x12xf32>
    %cst_218 = arith.constant 5.000000e-01 : f32
    %867 = vector.broadcast %cst_218 : f32 to vector<1x12xf32>
    %868 = arith.addf %866, %867 : vector<1x12xf32>
    %869 = arith.mulf %862, %806 : vector<1x12xf32>
    %870 = arith.mulf %857, %863 : vector<1x12xf32>
    %871 = arith.addf %869, %870 : vector<1x12xf32>
    %872 = math.tanh %871 : vector<1x12xf32>
    %873 = arith.mulf %868, %872 : vector<1x12xf32>
    %874 = vector.extract_strided_slice %24 {offsets = [13, 0], sizes = [1, 24], strides = [1, 1]} : vector<16x24xf32> to vector<1x24xf32>
    %875 = vector.extract_strided_slice %846 {offsets = [0, 0], sizes = [6, 1], strides = [1, 1]} : vector<18x1xf32> to vector<6x1xf32>
    %876 = vector.broadcast %875 : vector<6x1xf32> to vector<6x24xf32>
    %877 = arith.mulf %876, %0 : vector<6x24xf32>
    %cst_219 = arith.constant dense<0.000000e+00> : vector<24xf32>
    %878 = vector.multi_reduction <add>, %877, %cst_219 [0] : vector<6x24xf32> to vector<24xf32>
    %879 = vector.shape_cast %878 : vector<24xf32> to vector<1x24xf32>
    %880 = arith.addf %874, %879 : vector<1x24xf32>
    %881 = math.tanh %880 : vector<1x24xf32>
    %882 = vector.extract_strided_slice %881 {offsets = [0, 0], sizes = [1, 6], strides = [1, 1]} : vector<1x24xf32> to vector<1x6xf32>
    %cst_220 = arith.constant 5.000000e-01 : f32
    %883 = vector.broadcast %cst_220 : f32 to vector<1x6xf32>
    %884 = arith.mulf %883, %882 : vector<1x6xf32>
    %cst_221 = arith.constant 5.000000e-01 : f32
    %885 = vector.broadcast %cst_221 : f32 to vector<1x6xf32>
    %886 = arith.addf %884, %885 : vector<1x6xf32>
    %887 = vector.extract_strided_slice %881 {offsets = [0, 6], sizes = [1, 6], strides = [1, 1]} : vector<1x24xf32> to vector<1x6xf32>
    %cst_222 = arith.constant 5.000000e-01 : f32
    %888 = vector.broadcast %cst_222 : f32 to vector<1x6xf32>
    %889 = arith.mulf %888, %887 : vector<1x6xf32>
    %cst_223 = arith.constant 5.000000e-01 : f32
    %890 = vector.broadcast %cst_223 : f32 to vector<1x6xf32>
    %891 = arith.addf %889, %890 : vector<1x6xf32>
    %892 = vector.extract_strided_slice %881 {offsets = [0, 12], sizes = [1, 6], strides = [1, 1]} : vector<1x24xf32> to vector<1x6xf32>
    %893 = vector.extract_strided_slice %881 {offsets = [0, 18], sizes = [1, 6], strides = [1, 1]} : vector<1x24xf32> to vector<1x6xf32>
    %cst_224 = arith.constant 5.000000e-01 : f32
    %894 = vector.broadcast %cst_224 : f32 to vector<1x6xf32>
    %895 = arith.mulf %894, %893 : vector<1x6xf32>
    %cst_225 = arith.constant 5.000000e-01 : f32
    %896 = vector.broadcast %cst_225 : f32 to vector<1x6xf32>
    %897 = arith.addf %895, %896 : vector<1x6xf32>
    %898 = arith.mulf %891, %835 : vector<1x6xf32>
    %899 = arith.mulf %886, %892 : vector<1x6xf32>
    %900 = arith.addf %898, %899 : vector<1x6xf32>
    %901 = math.tanh %900 : vector<1x6xf32>
    %902 = arith.mulf %897, %901 : vector<1x6xf32>
    %903 = vector.broadcast %902 : vector<1x6xf32> to vector<18x6xf32>
    %904 = arith.mulf %12, %903 : vector<18x6xf32>
    %cst_226 = arith.constant dense<0.000000e+00> : vector<18xf32>
    %905 = vector.multi_reduction <add>, %904, %cst_226 [1] : vector<18x6xf32> to vector<18xf32>
    %906 = vector.shape_cast %905 : vector<18xf32> to vector<18x1xf32>
    %907 = vector.broadcast %873 : vector<1x12xf32> to vector<18x12xf32>
    %908 = arith.mulf %19, %907 : vector<18x12xf32>
    %cst_227 = arith.constant dense<0.000000e+00> : vector<18xf32>
    %909 = vector.multi_reduction <add>, %908, %cst_227 [1] : vector<18x12xf32> to vector<18xf32>
    %910 = vector.shape_cast %909 : vector<18xf32> to vector<18x1xf32>
    %911 = arith.addf %906, %910 : vector<18x1xf32>
    %912 = vector.broadcast %911 : vector<18x1xf32> to vector<18x48xf32>
    %913 = arith.mulf %912, %3 : vector<18x48xf32>
    %cst_228 = arith.constant dense<0.000000e+00> : vector<48xf32>
    %914 = vector.multi_reduction <add>, %913, %cst_228 [0] : vector<18x48xf32> to vector<48xf32>
    %915 = vector.shape_cast %914 : vector<48xf32> to vector<1x48xf32>
    %916 = arith.addf %4, %915 : vector<1x48xf32>
    %917 = math.tanh %916 : vector<1x48xf32>
    %918 = vector.extract_strided_slice %917 {offsets = [0, 0], sizes = [1, 12], strides = [1, 1]} : vector<1x48xf32> to vector<1x12xf32>
    %cst_229 = arith.constant 5.000000e-01 : f32
    %919 = vector.broadcast %cst_229 : f32 to vector<1x12xf32>
    %920 = arith.mulf %919, %918 : vector<1x12xf32>
    %cst_230 = arith.constant 5.000000e-01 : f32
    %921 = vector.broadcast %cst_230 : f32 to vector<1x12xf32>
    %922 = arith.addf %920, %921 : vector<1x12xf32>
    %923 = vector.extract_strided_slice %917 {offsets = [0, 12], sizes = [1, 12], strides = [1, 1]} : vector<1x48xf32> to vector<1x12xf32>
    %cst_231 = arith.constant 5.000000e-01 : f32
    %924 = vector.broadcast %cst_231 : f32 to vector<1x12xf32>
    %925 = arith.mulf %924, %923 : vector<1x12xf32>
    %cst_232 = arith.constant 5.000000e-01 : f32
    %926 = vector.broadcast %cst_232 : f32 to vector<1x12xf32>
    %927 = arith.addf %925, %926 : vector<1x12xf32>
    %928 = vector.extract_strided_slice %917 {offsets = [0, 24], sizes = [1, 12], strides = [1, 1]} : vector<1x48xf32> to vector<1x12xf32>
    %929 = vector.extract_strided_slice %917 {offsets = [0, 36], sizes = [1, 12], strides = [1, 1]} : vector<1x48xf32> to vector<1x12xf32>
    %cst_233 = arith.constant 5.000000e-01 : f32
    %930 = vector.broadcast %cst_233 : f32 to vector<1x12xf32>
    %931 = arith.mulf %930, %929 : vector<1x12xf32>
    %cst_234 = arith.constant 5.000000e-01 : f32
    %932 = vector.broadcast %cst_234 : f32 to vector<1x12xf32>
    %933 = arith.addf %931, %932 : vector<1x12xf32>
    %934 = arith.mulf %927, %871 : vector<1x12xf32>
    %935 = arith.mulf %922, %928 : vector<1x12xf32>
    %936 = arith.addf %934, %935 : vector<1x12xf32>
    %937 = math.tanh %936 : vector<1x12xf32>
    %938 = arith.mulf %933, %937 : vector<1x12xf32>
    %939 = vector.extract_strided_slice %24 {offsets = [14, 0], sizes = [1, 24], strides = [1, 1]} : vector<16x24xf32> to vector<1x24xf32>
    %940 = vector.extract_strided_slice %911 {offsets = [0, 0], sizes = [6, 1], strides = [1, 1]} : vector<18x1xf32> to vector<6x1xf32>
    %941 = vector.broadcast %940 : vector<6x1xf32> to vector<6x24xf32>
    %942 = arith.mulf %941, %0 : vector<6x24xf32>
    %cst_235 = arith.constant dense<0.000000e+00> : vector<24xf32>
    %943 = vector.multi_reduction <add>, %942, %cst_235 [0] : vector<6x24xf32> to vector<24xf32>
    %944 = vector.shape_cast %943 : vector<24xf32> to vector<1x24xf32>
    %945 = arith.addf %939, %944 : vector<1x24xf32>
    %946 = math.tanh %945 : vector<1x24xf32>
    %947 = vector.extract_strided_slice %946 {offsets = [0, 0], sizes = [1, 6], strides = [1, 1]} : vector<1x24xf32> to vector<1x6xf32>
    %cst_236 = arith.constant 5.000000e-01 : f32
    %948 = vector.broadcast %cst_236 : f32 to vector<1x6xf32>
    %949 = arith.mulf %948, %947 : vector<1x6xf32>
    %cst_237 = arith.constant 5.000000e-01 : f32
    %950 = vector.broadcast %cst_237 : f32 to vector<1x6xf32>
    %951 = arith.addf %949, %950 : vector<1x6xf32>
    %952 = vector.extract_strided_slice %946 {offsets = [0, 6], sizes = [1, 6], strides = [1, 1]} : vector<1x24xf32> to vector<1x6xf32>
    %cst_238 = arith.constant 5.000000e-01 : f32
    %953 = vector.broadcast %cst_238 : f32 to vector<1x6xf32>
    %954 = arith.mulf %953, %952 : vector<1x6xf32>
    %cst_239 = arith.constant 5.000000e-01 : f32
    %955 = vector.broadcast %cst_239 : f32 to vector<1x6xf32>
    %956 = arith.addf %954, %955 : vector<1x6xf32>
    %957 = vector.extract_strided_slice %946 {offsets = [0, 12], sizes = [1, 6], strides = [1, 1]} : vector<1x24xf32> to vector<1x6xf32>
    %958 = vector.extract_strided_slice %946 {offsets = [0, 18], sizes = [1, 6], strides = [1, 1]} : vector<1x24xf32> to vector<1x6xf32>
    %cst_240 = arith.constant 5.000000e-01 : f32
    %959 = vector.broadcast %cst_240 : f32 to vector<1x6xf32>
    %960 = arith.mulf %959, %958 : vector<1x6xf32>
    %cst_241 = arith.constant 5.000000e-01 : f32
    %961 = vector.broadcast %cst_241 : f32 to vector<1x6xf32>
    %962 = arith.addf %960, %961 : vector<1x6xf32>
    %963 = arith.mulf %956, %900 : vector<1x6xf32>
    %964 = arith.mulf %951, %957 : vector<1x6xf32>
    %965 = arith.addf %963, %964 : vector<1x6xf32>
    %966 = math.tanh %965 : vector<1x6xf32>
    %967 = arith.mulf %962, %966 : vector<1x6xf32>
    %968 = vector.broadcast %967 : vector<1x6xf32> to vector<18x6xf32>
    %969 = arith.mulf %12, %968 : vector<18x6xf32>
    %cst_242 = arith.constant dense<0.000000e+00> : vector<18xf32>
    %970 = vector.multi_reduction <add>, %969, %cst_242 [1] : vector<18x6xf32> to vector<18xf32>
    %971 = vector.shape_cast %970 : vector<18xf32> to vector<18x1xf32>
    %972 = vector.broadcast %938 : vector<1x12xf32> to vector<18x12xf32>
    %973 = arith.mulf %19, %972 : vector<18x12xf32>
    %cst_243 = arith.constant dense<0.000000e+00> : vector<18xf32>
    %974 = vector.multi_reduction <add>, %973, %cst_243 [1] : vector<18x12xf32> to vector<18xf32>
    %975 = vector.shape_cast %974 : vector<18xf32> to vector<18x1xf32>
    %976 = arith.addf %971, %975 : vector<18x1xf32>
    %977 = vector.broadcast %976 : vector<18x1xf32> to vector<18x48xf32>
    %978 = arith.mulf %977, %3 : vector<18x48xf32>
    %cst_244 = arith.constant dense<0.000000e+00> : vector<48xf32>
    %979 = vector.multi_reduction <add>, %978, %cst_244 [0] : vector<18x48xf32> to vector<48xf32>
    %980 = vector.shape_cast %979 : vector<48xf32> to vector<1x48xf32>
    %981 = arith.addf %4, %980 : vector<1x48xf32>
    %982 = math.tanh %981 : vector<1x48xf32>
    %983 = vector.extract_strided_slice %982 {offsets = [0, 0], sizes = [1, 12], strides = [1, 1]} : vector<1x48xf32> to vector<1x12xf32>
    %cst_245 = arith.constant 5.000000e-01 : f32
    %984 = vector.broadcast %cst_245 : f32 to vector<1x12xf32>
    %985 = arith.mulf %984, %983 : vector<1x12xf32>
    %cst_246 = arith.constant 5.000000e-01 : f32
    %986 = vector.broadcast %cst_246 : f32 to vector<1x12xf32>
    %987 = arith.addf %985, %986 : vector<1x12xf32>
    %988 = vector.extract_strided_slice %982 {offsets = [0, 12], sizes = [1, 12], strides = [1, 1]} : vector<1x48xf32> to vector<1x12xf32>
    %cst_247 = arith.constant 5.000000e-01 : f32
    %989 = vector.broadcast %cst_247 : f32 to vector<1x12xf32>
    %990 = arith.mulf %989, %988 : vector<1x12xf32>
    %cst_248 = arith.constant 5.000000e-01 : f32
    %991 = vector.broadcast %cst_248 : f32 to vector<1x12xf32>
    %992 = arith.addf %990, %991 : vector<1x12xf32>
    %993 = vector.extract_strided_slice %982 {offsets = [0, 24], sizes = [1, 12], strides = [1, 1]} : vector<1x48xf32> to vector<1x12xf32>
    %994 = vector.extract_strided_slice %982 {offsets = [0, 36], sizes = [1, 12], strides = [1, 1]} : vector<1x48xf32> to vector<1x12xf32>
    %cst_249 = arith.constant 5.000000e-01 : f32
    %995 = vector.broadcast %cst_249 : f32 to vector<1x12xf32>
    %996 = arith.mulf %995, %994 : vector<1x12xf32>
    %cst_250 = arith.constant 5.000000e-01 : f32
    %997 = vector.broadcast %cst_250 : f32 to vector<1x12xf32>
    %998 = arith.addf %996, %997 : vector<1x12xf32>
    %999 = arith.mulf %992, %936 : vector<1x12xf32>
    %1000 = arith.mulf %987, %993 : vector<1x12xf32>
    %1001 = arith.addf %999, %1000 : vector<1x12xf32>
    %1002 = math.tanh %1001 : vector<1x12xf32>
    %1003 = arith.mulf %998, %1002 : vector<1x12xf32>
    %1004 = vector.extract_strided_slice %24 {offsets = [15, 0], sizes = [1, 24], strides = [1, 1]} : vector<16x24xf32> to vector<1x24xf32>
    %1005 = vector.extract_strided_slice %976 {offsets = [0, 0], sizes = [6, 1], strides = [1, 1]} : vector<18x1xf32> to vector<6x1xf32>
    %1006 = vector.broadcast %1005 : vector<6x1xf32> to vector<6x24xf32>
    %1007 = arith.mulf %1006, %0 : vector<6x24xf32>
    %cst_251 = arith.constant dense<0.000000e+00> : vector<24xf32>
    %1008 = vector.multi_reduction <add>, %1007, %cst_251 [0] : vector<6x24xf32> to vector<24xf32>
    %1009 = vector.shape_cast %1008 : vector<24xf32> to vector<1x24xf32>
    %1010 = arith.addf %1004, %1009 : vector<1x24xf32>
    %1011 = math.tanh %1010 : vector<1x24xf32>
    %1012 = vector.extract_strided_slice %1011 {offsets = [0, 0], sizes = [1, 6], strides = [1, 1]} : vector<1x24xf32> to vector<1x6xf32>
    %cst_252 = arith.constant 5.000000e-01 : f32
    %1013 = vector.broadcast %cst_252 : f32 to vector<1x6xf32>
    %1014 = arith.mulf %1013, %1012 : vector<1x6xf32>
    %cst_253 = arith.constant 5.000000e-01 : f32
    %1015 = vector.broadcast %cst_253 : f32 to vector<1x6xf32>
    %1016 = arith.addf %1014, %1015 : vector<1x6xf32>
    %1017 = vector.extract_strided_slice %1011 {offsets = [0, 6], sizes = [1, 6], strides = [1, 1]} : vector<1x24xf32> to vector<1x6xf32>
    %cst_254 = arith.constant 5.000000e-01 : f32
    %1018 = vector.broadcast %cst_254 : f32 to vector<1x6xf32>
    %1019 = arith.mulf %1018, %1017 : vector<1x6xf32>
    %cst_255 = arith.constant 5.000000e-01 : f32
    %1020 = vector.broadcast %cst_255 : f32 to vector<1x6xf32>
    %1021 = arith.addf %1019, %1020 : vector<1x6xf32>
    %1022 = vector.extract_strided_slice %1011 {offsets = [0, 12], sizes = [1, 6], strides = [1, 1]} : vector<1x24xf32> to vector<1x6xf32>
    %1023 = vector.extract_strided_slice %1011 {offsets = [0, 18], sizes = [1, 6], strides = [1, 1]} : vector<1x24xf32> to vector<1x6xf32>
    %cst_256 = arith.constant 5.000000e-01 : f32
    %1024 = vector.broadcast %cst_256 : f32 to vector<1x6xf32>
    %1025 = arith.mulf %1024, %1023 : vector<1x6xf32>
    %cst_257 = arith.constant 5.000000e-01 : f32
    %1026 = vector.broadcast %cst_257 : f32 to vector<1x6xf32>
    %1027 = arith.addf %1025, %1026 : vector<1x6xf32>
    %1028 = arith.mulf %1021, %965 : vector<1x6xf32>
    %1029 = arith.mulf %1016, %1022 : vector<1x6xf32>
    %1030 = arith.addf %1028, %1029 : vector<1x6xf32>
    %1031 = math.tanh %1030 : vector<1x6xf32>
    %1032 = arith.mulf %1027, %1031 : vector<1x6xf32>
    %1033 = vector.broadcast %1032 : vector<1x6xf32> to vector<18x6xf32>
    %1034 = arith.mulf %12, %1033 : vector<18x6xf32>
    %cst_258 = arith.constant dense<0.000000e+00> : vector<18xf32>
    %1035 = vector.multi_reduction <add>, %1034, %cst_258 [1] : vector<18x6xf32> to vector<18xf32>
    %1036 = vector.shape_cast %1035 : vector<18xf32> to vector<18x1xf32>
    %1037 = vector.broadcast %1003 : vector<1x12xf32> to vector<18x12xf32>
    %1038 = arith.mulf %19, %1037 : vector<18x12xf32>
    %cst_259 = arith.constant dense<0.000000e+00> : vector<18xf32>
    %1039 = vector.multi_reduction <add>, %1038, %cst_259 [1] : vector<18x12xf32> to vector<18xf32>
    %1040 = vector.shape_cast %1039 : vector<18xf32> to vector<18x1xf32>
    %1041 = arith.addf %1036, %1040 : vector<18x1xf32>
    %1042 = vector.broadcast %1041 : vector<18x1xf32> to vector<18x48xf32>
    %1043 = arith.mulf %1042, %3 : vector<18x48xf32>
    %cst_260 = arith.constant dense<0.000000e+00> : vector<48xf32>
    %1044 = vector.multi_reduction <add>, %1043, %cst_260 [0] : vector<18x48xf32> to vector<48xf32>
    %1045 = vector.shape_cast %1044 : vector<48xf32> to vector<1x48xf32>
    %1046 = arith.addf %4, %1045 : vector<1x48xf32>
    %1047 = math.tanh %1046 : vector<1x48xf32>
    %1048 = vector.extract_strided_slice %1047 {offsets = [0, 0], sizes = [1, 12], strides = [1, 1]} : vector<1x48xf32> to vector<1x12xf32>
    %cst_261 = arith.constant 5.000000e-01 : f32
    %1049 = vector.broadcast %cst_261 : f32 to vector<1x12xf32>
    %1050 = arith.mulf %1049, %1048 : vector<1x12xf32>
    %cst_262 = arith.constant 5.000000e-01 : f32
    %1051 = vector.broadcast %cst_262 : f32 to vector<1x12xf32>
    %1052 = arith.addf %1050, %1051 : vector<1x12xf32>
    %1053 = vector.extract_strided_slice %1047 {offsets = [0, 12], sizes = [1, 12], strides = [1, 1]} : vector<1x48xf32> to vector<1x12xf32>
    %cst_263 = arith.constant 5.000000e-01 : f32
    %1054 = vector.broadcast %cst_263 : f32 to vector<1x12xf32>
    %1055 = arith.mulf %1054, %1053 : vector<1x12xf32>
    %cst_264 = arith.constant 5.000000e-01 : f32
    %1056 = vector.broadcast %cst_264 : f32 to vector<1x12xf32>
    %1057 = arith.addf %1055, %1056 : vector<1x12xf32>
    %1058 = vector.extract_strided_slice %1047 {offsets = [0, 24], sizes = [1, 12], strides = [1, 1]} : vector<1x48xf32> to vector<1x12xf32>
    %1059 = vector.extract_strided_slice %1047 {offsets = [0, 36], sizes = [1, 12], strides = [1, 1]} : vector<1x48xf32> to vector<1x12xf32>
    %cst_265 = arith.constant 5.000000e-01 : f32
    %1060 = vector.broadcast %cst_265 : f32 to vector<1x12xf32>
    %1061 = arith.mulf %1060, %1059 : vector<1x12xf32>
    %cst_266 = arith.constant 5.000000e-01 : f32
    %1062 = vector.broadcast %cst_266 : f32 to vector<1x12xf32>
    %1063 = arith.addf %1061, %1062 : vector<1x12xf32>
    %1064 = arith.mulf %1057, %1001 : vector<1x12xf32>
    %1065 = arith.mulf %1052, %1058 : vector<1x12xf32>
    %1066 = arith.addf %1064, %1065 : vector<1x12xf32>
    %1067 = math.tanh %1066 : vector<1x12xf32>
    %1068 = arith.mulf %1063, %1067 : vector<1x12xf32>
    %1069 = vector.broadcast %1068 : vector<1x12xf32> to vector<14x12xf32>
    %1070 = arith.mulf %1069, %5 : vector<14x12xf32>
    %cst_267 = arith.constant dense<0.000000e+00> : vector<14xf32>
    %1071 = vector.multi_reduction <add>, %1070, %cst_267 [1] : vector<14x12xf32> to vector<14xf32>
    %1072 = vector.shape_cast %1071 : vector<14xf32> to vector<14x1xf32>
    %1073 = arith.addf %1072, %6 : vector<14x1xf32>
    %c0_268 = arith.constant 0 : index
    %c0_269 = arith.constant 0 : index
    %1074 = vector.load %arg1[%c0_268, %c0_269] : memref<14x1xf32, #tpu.memory_space<vmem>>, vector<14x1xf32>
    tpu.vector_store %arg1[%c0_268, %c0_269], %1073 {strides = array<i32>} : memref<14x1xf32, #tpu.memory_space<vmem>>, vector<14x1xf32>,
    return
  }
}

</mosaic_0001>

<llo_original>
// kernel: morse_lstm_forward.1
$region0: #{morse_lstm_forward.1}
  #allocation0 [shape = 'u32[]', space=smem, size = 0x4, offset = 0x4, fixed_abs, tag = 'smem constant byte address 0x4 - core index']
  #allocation1 [shape = 'u32[144,128]{1,0:T(1,128)}', space=vmem, size = 0x12000, scoped, tag = 'internal scratch']
  %s0 = inlined_call_operand.vmem [shape: f32[64,128], index: 0, kind: input, shape index: {}]
  %s1 = inlined_call_operand.vmem [shape: f32[14,1], index: 1, kind: output, shape index: {}]
  %s2 = sld [smem:[#allocation0]]
  $region14: #{morse_lstm_forward.1} parent=0
    _
  %s4 = ssub.s32 1, %s2
  %s5 = scalar_select 0, %s4, %s2
  // Predicated region
  $region2: #{morse_lstm_forward.1} parent=0 // pred_check
    _
  $region3: #{morse_lstm_forward.1} parent=0 // pred_check_branch
    %7 = sbr.rel (0) target = $region5
  $region4: #{morse_lstm_forward.1} parent=0 // pred_region
    _
  $region5: #{morse_lstm_forward.1} parent=0 // pred_fallthru
    _
  %v8 = vld [vmem:[%s0] sm:$0x3f]
  %v9 = vld [vmem:[%s0 + $0x6] sm:$0x1]
  %v10 = vld [vmem:[%s0 + $0x7] sm:$0x1]
  %v11 = vld [vmem:[%s0 + $0x8] sm:$0xff]
  %v12 = vld [vmem:[%s0 + $0x10] sm:$0xff]
  %v13 = vld [vmem:[%s0 + $0x18] sm:$0x3]
  %v14 = vld [vmem:[%s0 + $0x20] sm:$0x1]
  %v15 = vld [vmem:[%s0 + $0x21] sm:$0xff]
  %v16 = vld [vmem:[%s0 + $0x29] sm:$0x3f]
  %v17 = vld [vmem:[%s0 + $0x30] sm:$0xff]
  %v18 = vld [vmem:[%s0 + $0x38] sm:$0xff]
  %v19 = vlaneseq
  %v20 = vshrl.u32 %v19, 7
  %v21 = vadd.s32 %v20, 8
  %v22 = vadd.s32 %v20, 16
  %v23 = vlaneseq
  %v24 = vand.u32 %v23, 127
  %vm25 = vcmp.eq.s32.totalorder %v20, %v24
  %vm26 = vcmp.eq.s32.totalorder %v21, %v24
  %vm27 = vcmp.eq.s32.totalorder %v22, %v24
  %v28 = vsel %vm25, 1, 0
  %v29 = vsel %vm26, 1, 0
  %v30 = vsel %vm27, 1, 0
  %v31 = vcvt.s32.f32 %v28
  %v32 = vcvt.s32.f32 %v29
  %v33 = vcvt.s32.f32 %v30
  %v34 = vadd.s32 %v24, 6
  %vm35 = vcmp.eq.s32.totalorder %v20, %v34
  %vm36 = vcmp.eq.s32.totalorder %v21, %v34
  %vm37 = vcmp.eq.s32.totalorder %v22, %v34
  %v38 = vsel %vm35, 1, 0
  %v39 = vsel %vm36, 1, 0
  %v40 = vsel %vm37, 1, 0
  %v41 = vcvt.s32.f32 %v38
  %v42 = vcvt.s32.f32 %v39
  %v43 = vcvt.s32.f32 %v40
  %45 = vset.pattern.permute.xlu0 0
  %46 = vperm.xlu0 %45, %v17
  %v47 = vpop.permute.xlu0 %46
  %50 = vset.pattern.permute.xlu0 0
  %51 = vperm.xlu0 %50, %v18
  %v52 = vpop.permute.xlu0 %51
  %v54 = vlaneseq
  %v55 = vshrl.u32 %v54, 7
  %v56 = vsub.s32 0, %v55
  %v57 = vrot.slane %v9, %v56
  %v58 = vmul.f32 %v47, %v57
  %v59 = vmul.f32 %v52, %v57
  %v60 = vlaneseq
  %v61 = vshrl.u32 %v60, 7
  %v62 = vsub.s32 0, %v61
  %v63 = vrot.slane %v10, %v62
  %v64 = vadd.f32 %v58, %v63
  %v65 = vadd.f32 %v59, %v63
  %v66 = vmul.f32 %v8, 0.0
  %vm67 = vcmask 193536
  %v68 = vsel %vm67, %v66, 0.0
  %v69 = vrot.slane %v68, 4
  %v70 = vadd.f32 %v68, %v69
  %v71 = vrot.slane %v70, 2
  %v72 = vadd.f32 %v70, %v71
  %v73 = vrot.slane %v72, 1
  %v74 = vadd.f32 %v72, %v73
  %v75 = vadd.f32 %v64, %v74
  %v76 = vtanh.pop %v75
  %v77 = vmul.f32 %v76, 0.5
  %v78 = vadd.f32 %v77, 0.5
  %v79 = vmul.f32 %v78, 0.0
  %81 = vrot.lane.b32.xlu0 %v76, 116
  %v82 = vpop.permute.xlu0 %81
  %v84 = vmul.f32 %v78, %v82
  %86 = vrot.lane.b32.xlu0 %v84, 6
  %v87 = vpop.permute.xlu0 %86
  %v89 = vadd.f32 %v79, %v87
  %v90 = vtanh.pop %v89
  %92 = vrot.lane.b32.xlu0 %v90, 12
  %v93 = vpop.permute.xlu0 %92
  %v95 = vmul.f32 %v78, %v93
  %v96 = vlaneseq
  %v97 = vshrl.u32 %v96, 7
  %v98 = vsub.s32 0, %v97
  %v99 = vrot.slane %v95, %v98
  %101 = vrot.lane.b32.xlu0 %v99, 110
  %v102 = vpop.permute.xlu0 %101
  %v104 = vmul.f32 %v31, %v102
  %v105 = vmul.f32 %v32, %v102
  %v106 = vmul.f32 %v33, %v102
  %vm107 = vcmask 48128
  %v108 = vsel %vm107, %v104, 0.0
  %109 = vadd.xlane.f32.xlu0 %v108
  %v110 = vpop.xlane.xlu0 %109
  %v111 = vsel %vm107, %v105, 0.0
  %112 = vadd.xlane.f32.xlu0 %v111
  %v113 = vpop.xlane.xlu0 %112
  %vm114 = vcmask 41984
  %v115 = vsel %vm114, %v106, 0.0
  %116 = vadd.xlane.f32.xlu0 %v115
  %v117 = vpop.xlane.xlu0 %116
  %v118 = vmul.f32 %v41, 0.0
  %v119 = vmul.f32 %v42, 0.0
  %v120 = vmul.f32 %v43, 0.0
  %vm121 = vcmask 97280
  %v122 = vsel %vm121, %v118, 0.0
  %123 = vadd.xlane.f32.xlu0 %v122
  %v124 = vpop.xlane.xlu0 %123
  %v125 = vsel %vm121, %v119, 0.0
  %126 = vadd.xlane.f32.xlu0 %v125
  %v127 = vpop.xlane.xlu0 %126
  %vm128 = vcmask 91136
  %v129 = vsel %vm128, %v120, 0.0
  %130 = vadd.xlane.f32.xlu0 %v129
  %v131 = vpop.xlane.xlu0 %130
  %v132 = vadd.f32 %v110, %v124
  %v133 = vadd.f32 %v113, %v127
  %v134 = vadd.f32 %v117, %v131
  %v135 = vmul.f32 %v132, %v11
  %v136 = vmul.f32 %v133, %v12
  %v137 = vmul.f32 %v134, %v13
  %vm138 = vcmask 392192
  %v139 = vsel %vm138, %v135, 0.0
  %v140 = vsel %vm138, %v136, 0.0
  %v141 = vadd.f32 %v139, %v140
  %vm142 = vcmask 386048
  %v143 = vsel %vm142, %v137, 0.0
  %v144 = vadd.f32 %v141, %v143
  %v145 = vrot.slane %v144, 4
  %v146 = vadd.f32 %v144, %v145
  %v147 = vrot.slane %v146, 2
  %v148 = vadd.f32 %v146, %v147
  %v149 = vrot.slane %v148, 1
  %v150 = vadd.f32 %v148, %v149
  %v151 = vadd.f32 %v14, %v150
  %v152 = vtanh.pop %v151
  %v153 = vmul.f32 %v152, 0.5
  %v154 = vadd.f32 %v153, 0.5
  %v155 = vmul.f32 %v154, 0.0
  %157 = vrot.lane.b32.xlu0 %v152, 104
  %v158 = vpop.permute.xlu0 %157
  %v160 = vmul.f32 %v154, %v158
  %162 = vrot.lane.b32.xlu0 %v160, 12
  %v163 = vpop.permute.xlu0 %162
  %v165 = vadd.f32 %v155, %v163
  %v166 = vtanh.pop %v165
  %168 = vrot.lane.b32.xlu0 %v166, 24
  %v169 = vpop.permute.xlu0 %168
  %v171 = vmul.f32 %v154, %v169
  %v172 = vmul.f32 %v132, %v8
  %v173 = vsel %vm67, %v172, 0.0
  %v174 = vrot.slane %v173, 4
  %v175 = vadd.f32 %v173, %v174
  %v176 = vrot.slane %v175, 2
  %v177 = vadd.f32 %v175, %v176
  %v178 = vrot.slane %v177, 1
  %v179 = vadd.f32 %v177, %v178
  %v180 = vadd.f32 %v64, %v179
  %v181 = vtanh.pop %v180
  %v182 = vmul.f32 %v181, 0.5
  %v183 = vadd.f32 %v182, 0.5
  %v185 = vrot.slane %v89, 7
  %v187 = vmul.f32 %v183, %v185
  %189 = vrot.lane.b32.xlu0 %v181, 116
  %v190 = vpop.permute.xlu0 %189
  %v192 = vmul.f32 %v183, %v190
  %194 = vrot.lane.b32.xlu0 %v192, 6
  %v195 = vpop.permute.xlu0 %194
  %v197 = vadd.f32 %v187, %v195
  %v198 = vtanh.pop %v197
  %200 = vrot.lane.b32.xlu0 %v198, 12
  %v201 = vpop.permute.xlu0 %200
  %v203 = vmul.f32 %v183, %v201
  %v204 = vlaneseq
  %v205 = vshrl.u32 %v204, 7
  %v206 = vsub.s32 1, %v205
  %v207 = vrot.slane %v203, %v206
  %209 = vrot.lane.b32.xlu0 %v207, 110
  %v210 = vpop.permute.xlu0 %209
  %v212 = vmul.f32 %v31, %v210
  %v213 = vmul.f32 %v32, %v210
  %v214 = vmul.f32 %v33, %v210
  %v215 = vsel %vm107, %v212, 0.0
  %216 = vadd.xlane.f32.xlu0 %v215
  %v217 = vpop.xlane.xlu0 %216
  %v218 = vsel %vm107, %v213, 0.0
  %219 = vadd.xlane.f32.xlu0 %v218
  %v220 = vpop.xlane.xlu0 %219
  %v221 = vsel %vm114, %v214, 0.0
  %222 = vadd.xlane.f32.xlu0 %v221
  %v223 = vpop.xlane.xlu0 %222
  %v224 = vlaneseq
  %v225 = vshrl.u32 %v224, 7
  %v226 = vsub.s32 0, %v225
  %v227 = vrot.slane %v171, %v226
  %229 = vrot.lane.b32.xlu0 %v227, 92
  %v230 = vpop.permute.xlu0 %229
  %v232 = vmul.f32 %v41, %v230
  %v233 = vmul.f32 %v42, %v230
  %v234 = vmul.f32 %v43, %v230
  %v235 = vsel %vm121, %v232, 0.0
  %236 = vadd.xlane.f32.xlu0 %v235
  %v237 = vpop.xlane.xlu0 %236
  %v238 = vsel %vm121, %v233, 0.0
  %239 = vadd.xlane.f32.xlu0 %v238
  %v240 = vpop.xlane.xlu0 %239
  %v241 = vsel %vm128, %v234, 0.0
  %242 = vadd.xlane.f32.xlu0 %v241
  %v243 = vpop.xlane.xlu0 %242
  %v244 = vadd.f32 %v217, %v237
  %v245 = vadd.f32 %v220, %v240
  %v246 = vadd.f32 %v223, %v243
  %v247 = vmul.f32 %v244, %v11
  %v248 = vmul.f32 %v245, %v12
  %v249 = vmul.f32 %v246, %v13
  %v250 = vsel %vm138, %v247, 0.0
  %v251 = vsel %vm138, %v248, 0.0
  %v252 = vadd.f32 %v250, %v251
  %v253 = vsel %vm142, %v249, 0.0
  %v254 = vadd.f32 %v252, %v253
  %v255 = vrot.slane %v254, 4
  %v256 = vadd.f32 %v254, %v255
  %v257 = vrot.slane %v256, 2
  %v258 = vadd.f32 %v256, %v257
  %v259 = vrot.slane %v258, 1
  %v260 = vadd.f32 %v258, %v259
  %v261 = vadd.f32 %v14, %v260
  %v262 = vtanh.pop %v261
  %v263 = vmul.f32 %v262, 0.5
  %v264 = vadd.f32 %v263, 0.5
  %v265 = vmul.f32 %v264, %v165
  %267 = vrot.lane.b32.xlu0 %v262, 104
  %v268 = vpop.permute.xlu0 %267
  %v270 = vmul.f32 %v264, %v268
  %272 = vrot.lane.b32.xlu0 %v270, 12
  %v273 = vpop.permute.xlu0 %272
  %v275 = vadd.f32 %v265, %v273
  %v276 = vtanh.pop %v275
  %278 = vrot.lane.b32.xlu0 %v276, 24
  %v279 = vpop.permute.xlu0 %278
  %v281 = vmul.f32 %v264, %v279
  %v282 = vmul.f32 %v244, %v8
  %v283 = vsel %vm67, %v282, 0.0
  %v284 = vrot.slane %v283, 4
  %v285 = vadd.f32 %v283, %v284
  %v286 = vrot.slane %v285, 2
  %v287 = vadd.f32 %v285, %v286
  %v288 = vrot.slane %v287, 1
  %v289 = vadd.f32 %v287, %v288
  %v290 = vadd.f32 %v64, %v289
  %v291 = vtanh.pop %v290
  %v292 = vmul.f32 %v291, 0.5
  %v293 = vadd.f32 %v292, 0.5
  %v295 = vrot.slane %v197, 7
  %v297 = vmul.f32 %v293, %v295
  %299 = vrot.lane.b32.xlu0 %v291, 116
  %v300 = vpop.permute.xlu0 %299
  %v302 = vmul.f32 %v293, %v300
  %304 = vrot.lane.b32.xlu0 %v302, 6
  %v305 = vpop.permute.xlu0 %304
  %v307 = vadd.f32 %v297, %v305
  %v308 = vtanh.pop %v307
  %310 = vrot.lane.b32.xlu0 %v308, 12
  %v311 = vpop.permute.xlu0 %310
  %v313 = vmul.f32 %v293, %v311
  %v314 = vlaneseq
  %v315 = vshrl.u32 %v314, 7
  %v316 = vsub.s32 2, %v315
  %v317 = vrot.slane %v313, %v316
  %319 = vrot.lane.b32.xlu0 %v317, 110
  %v320 = vpop.permute.xlu0 %319
  %v322 = vmul.f32 %v31, %v320
  %v323 = vmul.f32 %v32, %v320
  %v324 = vmul.f32 %v33, %v320
  %v325 = vsel %vm107, %v322, 0.0
  %326 = vadd.xlane.f32.xlu0 %v325
  %v327 = vpop.xlane.xlu0 %326
  %v328 = vsel %vm107, %v323, 0.0
  %329 = vadd.xlane.f32.xlu0 %v328
  %v330 = vpop.xlane.xlu0 %329
  %v331 = vsel %vm114, %v324, 0.0
  %332 = vadd.xlane.f32.xlu0 %v331
  %v333 = vpop.xlane.xlu0 %332
  %v334 = vlaneseq
  %v335 = vshrl.u32 %v334, 7
  %v336 = vsub.s32 0, %v335
  %v337 = vrot.slane %v281, %v336
  %339 = vrot.lane.b32.xlu0 %v337, 92
  %v340 = vpop.permute.xlu0 %339
  %v342 = vmul.f32 %v41, %v340
  %v343 = vmul.f32 %v42, %v340
  %v344 = vmul.f32 %v43, %v340
  %v345 = vsel %vm121, %v342, 0.0
  %346 = vadd.xlane.f32.xlu0 %v345
  %v347 = vpop.xlane.xlu0 %346
  %v348 = vsel %vm121, %v343, 0.0
  %349 = vadd.xlane.f32.xlu0 %v348
  %v350 = vpop.xlane.xlu0 %349
  %v351 = vsel %vm128, %v344, 0.0
  %352 = vadd.xlane.f32.xlu0 %v351
  %v353 = vpop.xlane.xlu0 %352
  %v354 = vadd.f32 %v327, %v347
  %v355 = vadd.f32 %v330, %v350
  %v356 = vadd.f32 %v333, %v353
  %v357 = vmul.f32 %v354, %v11
  %v358 = vmul.f32 %v355, %v12
  %v359 = vmul.f32 %v356, %v13
  %v360 = vsel %vm138, %v357, 0.0
  %v361 = vsel %vm138, %v358, 0.0
  %v362 = vadd.f32 %v360, %v361
  %v363 = vsel %vm142, %v359, 0.0
  %v364 = vadd.f32 %v362, %v363
  %v365 = vrot.slane %v364, 4
  %v366 = vadd.f32 %v364, %v365
  %v367 = vrot.slane %v366, 2
  %v368 = vadd.f32 %v366, %v367
  %v369 = vrot.slane %v368, 1
  %v370 = vadd.f32 %v368, %v369
  %v371 = vadd.f32 %v14, %v370
  %v372 = vtanh.pop %v371
  %v373 = vmul.f32 %v372, 0.5
  %v374 = vadd.f32 %v373, 0.5
  %v375 = vmul.f32 %v374, %v275
  %377 = vrot.lane.b32.xlu0 %v372, 104
  %v378 = vpop.permute.xlu0 %377
  %v380 = vmul.f32 %v374, %v378
  %382 = vrot.lane.b32.xlu0 %v380, 12
  %v383 = vpop.permute.xlu0 %382
  %v385 = vadd.f32 %v375, %v383
  %v386 = vtanh.pop %v385
  %388 = vrot.lane.b32.xlu0 %v386, 24
  %v389 = vpop.permute.xlu0 %388
  %v391 = vmul.f32 %v374, %v389
  %v392 = vmul.f32 %v354, %v8
  %v393 = vsel %vm67, %v392, 0.0
  %v394 = vrot.slane %v393, 4
  %v395 = vadd.f32 %v393, %v394
  %v396 = vrot.slane %v395, 2
  %v397 = vadd.f32 %v395, %v396
  %v398 = vrot.slane %v397, 1
  %v399 = vadd.f32 %v397, %v398
  %v400 = vadd.f32 %v64, %v399
  %v401 = vtanh.pop %v400
  %v402 = vmul.f32 %v401, 0.5
  %v403 = vadd.f32 %v402, 0.5
  %v405 = vrot.slane %v307, 7
  %v407 = vmul.f32 %v403, %v405
  %409 = vrot.lane.b32.xlu0 %v401, 116
  %v410 = vpop.permute.xlu0 %409
  %v412 = vmul.f32 %v403, %v410
  %414 = vrot.lane.b32.xlu0 %v412, 6
  %v415 = vpop.permute.xlu0 %414
  %v417 = vadd.f32 %v407, %v415
  %v418 = vtanh.pop %v417
  %420 = vrot.lane.b32.xlu0 %v418, 12
  %v421 = vpop.permute.xlu0 %420
  %v423 = vmul.f32 %v403, %v421
  %v424 = vlaneseq
  %v425 = vshrl.u32 %v424, 7
  %v426 = vsub.s32 3, %v425
  %v427 = vrot.slane %v423, %v426
  %429 = vrot.lane.b32.xlu0 %v427, 110
  %v430 = vpop.permute.xlu0 %429
  %v432 = vmul.f32 %v31, %v430
  %v433 = vmul.f32 %v32, %v430
  %v434 = vmul.f32 %v33, %v430
  %v435 = vsel %vm107, %v432, 0.0
  %436 = vadd.xlane.f32.xlu0 %v435
  %v437 = vpop.xlane.xlu0 %436
  %v438 = vsel %vm107, %v433, 0.0
  %439 = vadd.xlane.f32.xlu0 %v438
  %v440 = vpop.xlane.xlu0 %439
  %v441 = vsel %vm114, %v434, 0.0
  %442 = vadd.xlane.f32.xlu0 %v441
  %v443 = vpop.xlane.xlu0 %442
  %v444 = vlaneseq
  %v445 = vshrl.u32 %v444, 7
  %v446 = vsub.s32 0, %v445
  %v447 = vrot.slane %v391, %v446
  %449 = vrot.lane.b32.xlu0 %v447, 92
  %v450 = vpop.permute.xlu0 %449
  %v452 = vmul.f32 %v41, %v450
  %v453 = vmul.f32 %v42, %v450
  %v454 = vmul.f32 %v43, %v450
  %v455 = vsel %vm121, %v452, 0.0
  %456 = vadd.xlane.f32.xlu0 %v455
  %v457 = vpop.xlane.xlu0 %456
  %v458 = vsel %vm121, %v453, 0.0
  %459 = vadd.xlane.f32.xlu0 %v458
  %v460 = vpop.xlane.xlu0 %459
  %v461 = vsel %vm128, %v454, 0.0
  %462 = vadd.xlane.f32.xlu0 %v461
  %v463 = vpop.xlane.xlu0 %462
  %v464 = vadd.f32 %v437, %v457
  %v465 = vadd.f32 %v440, %v460
  %v466 = vadd.f32 %v443, %v463
  %v467 = vmul.f32 %v464, %v11
  %v468 = vmul.f32 %v465, %v12
  %v469 = vmul.f32 %v466, %v13
  %v470 = vsel %vm138, %v467, 0.0
  %v471 = vsel %vm138, %v468, 0.0
  %v472 = vadd.f32 %v470, %v471
  %v473 = vsel %vm142, %v469, 0.0
  %v474 = vadd.f32 %v472, %v473
  %v475 = vrot.slane %v474, 4
  %v476 = vadd.f32 %v474, %v475
  %v477 = vrot.slane %v476, 2
  %v478 = vadd.f32 %v476, %v477
  %v479 = vrot.slane %v478, 1
  %v480 = vadd.f32 %v478, %v479
  %v481 = vadd.f32 %v14, %v480
  %v482 = vtanh.pop %v481
  %v483 = vmul.f32 %v482, 0.5
  %v484 = vadd.f32 %v483, 0.5
  %v485 = vmul.f32 %v484, %v385
  %487 = vrot.lane.b32.xlu0 %v482, 104
  %v488 = vpop.permute.xlu0 %487
  %v490 = vmul.f32 %v484, %v488
  %492 = vrot.lane.b32.xlu0 %v490, 12
  %v493 = vpop.permute.xlu0 %492
  %v495 = vadd.f32 %v485, %v493
  %v496 = vtanh.pop %v495
  %498 = vrot.lane.b32.xlu0 %v496, 24
  %v499 = vpop.permute.xlu0 %498
  %v501 = vmul.f32 %v484, %v499
  %v502 = vmul.f32 %v464, %v8
  %v503 = vsel %vm67, %v502, 0.0
  %v504 = vrot.slane %v503, 4
  %v505 = vadd.f32 %v503, %v504
  %v506 = vrot.slane %v505, 2
  %v507 = vadd.f32 %v505, %v506
  %v508 = vrot.slane %v507, 1
  %v509 = vadd.f32 %v507, %v508
  %v510 = vadd.f32 %v64, %v509
  %v511 = vtanh.pop %v510
  %v512 = vmul.f32 %v511, 0.5
  %v513 = vadd.f32 %v512, 0.5
  %v515 = vrot.slane %v417, 7
  %v517 = vmul.f32 %v513, %v515
  %519 = vrot.lane.b32.xlu0 %v511, 116
  %v520 = vpop.permute.xlu0 %519
  %v522 = vmul.f32 %v513, %v520
  %524 = vrot.lane.b32.xlu0 %v522, 6
  %v525 = vpop.permute.xlu0 %524
  %v527 = vadd.f32 %v517, %v525
  %v528 = vtanh.pop %v527
  %530 = vrot.lane.b32.xlu0 %v528, 12
  %v531 = vpop.permute.xlu0 %530
  %v533 = vmul.f32 %v513, %v531
  %v534 = vlaneseq
  %v535 = vshrl.u32 %v534, 7
  %v536 = vsub.s32 4, %v535
  %v537 = vrot.slane %v533, %v536
  %539 = vrot.lane.b32.xlu0 %v537, 110
  %v540 = vpop.permute.xlu0 %539
  %v542 = vmul.f32 %v31, %v540
  %v543 = vmul.f32 %v32, %v540
  %v544 = vmul.f32 %v33, %v540
  %v545 = vsel %vm107, %v542, 0.0
  %546 = vadd.xlane.f32.xlu0 %v545
  %v547 = vpop.xlane.xlu0 %546
  %v548 = vsel %vm107, %v543, 0.0
  %549 = vadd.xlane.f32.xlu0 %v548
  %v550 = vpop.xlane.xlu0 %549
  %v551 = vsel %vm114, %v544, 0.0
  %552 = vadd.xlane.f32.xlu0 %v551
  %v553 = vpop.xlane.xlu0 %552
  %v554 = vlaneseq
  %v555 = vshrl.u32 %v554, 7
  %v556 = vsub.s32 0, %v555
  %v557 = vrot.slane %v501, %v556
  %559 = vrot.lane.b32.xlu0 %v557, 92
  %v560 = vpop.permute.xlu0 %559
  %v562 = vmul.f32 %v41, %v560
  %v563 = vmul.f32 %v42, %v560
  %v564 = vmul.f32 %v43, %v560
  %v565 = vsel %vm121, %v562, 0.0
  %566 = vadd.xlane.f32.xlu0 %v565
  %v567 = vpop.xlane.xlu0 %566
  %v568 = vsel %vm121, %v563, 0.0
  %569 = vadd.xlane.f32.xlu0 %v568
  %v570 = vpop.xlane.xlu0 %569
  %v571 = vsel %vm128, %v564, 0.0
  %572 = vadd.xlane.f32.xlu0 %v571
  %v573 = vpop.xlane.xlu0 %572
  %v574 = vadd.f32 %v547, %v567
  %v575 = vadd.f32 %v550, %v570
  %v576 = vadd.f32 %v553, %v573
  %v577 = vmul.f32 %v574, %v11
  %v578 = vmul.f32 %v575, %v12
  %v579 = vmul.f32 %v576, %v13
  %v580 = vsel %vm138, %v577, 0.0
  %v581 = vsel %vm138, %v578, 0.0
  %v582 = vadd.f32 %v580, %v581
  %v583 = vsel %vm142, %v579, 0.0
  %v584 = vadd.f32 %v582, %v583
  %v585 = vrot.slane %v584, 4
  %v586 = vadd.f32 %v584, %v585
  %v587 = vrot.slane %v586, 2
  %v588 = vadd.f32 %v586, %v587
  %v589 = vrot.slane %v588, 1
  %v590 = vadd.f32 %v588, %v589
  %v591 = vadd.f32 %v14, %v590
  %v592 = vtanh.pop %v591
  %v593 = vmul.f32 %v592, 0.5
  %v594 = vadd.f32 %v593, 0.5
  %v595 = vmul.f32 %v594, %v495
  %597 = vrot.lane.b32.xlu0 %v592, 104
  %v598 = vpop.permute.xlu0 %597
  %v600 = vmul.f32 %v594, %v598
  %602 = vrot.lane.b32.xlu0 %v600, 12
  %v603 = vpop.permute.xlu0 %602
  %v605 = vadd.f32 %v595, %v603
  %v606 = vtanh.pop %v605
  %608 = vrot.lane.b32.xlu0 %v606, 24
  %v609 = vpop.permute.xlu0 %608
  %v611 = vmul.f32 %v594, %v609
  %v612 = vmul.f32 %v574, %v8
  %v613 = vsel %vm67, %v612, 0.0
  %v614 = vrot.slane %v613, 4
  %v615 = vadd.f32 %v613, %v614
  %v616 = vrot.slane %v615, 2
  %v617 = vadd.f32 %v615, %v616
  %v618 = vrot.slane %v617, 1
  %v619 = vadd.f32 %v617, %v618
  %v620 = vadd.f32 %v64, %v619
  %v621 = vtanh.pop %v620
  %v622 = vmul.f32 %v621, 0.5
  %v623 = vadd.f32 %v622, 0.5
  %v625 = vrot.slane %v527, 7
  %v627 = vmul.f32 %v623, %v625
  %629 = vrot.lane.b32.xlu0 %v621, 116
  %v630 = vpop.permute.xlu0 %629
  %v632 = vmul.f32 %v623, %v630
  %634 = vrot.lane.b32.xlu0 %v632, 6
  %v635 = vpop.permute.xlu0 %634
  %v637 = vadd.f32 %v627, %v635
  %v638 = vtanh.pop %v637
  %640 = vrot.lane.b32.xlu0 %v638, 12
  %v641 = vpop.permute.xlu0 %640
  %v643 = vmul.f32 %v623, %v641
  %v644 = vlaneseq
  %v645 = vshrl.u32 %v644, 7
  %v646 = vsub.s32 5, %v645
  %v647 = vrot.slane %v643, %v646
  %649 = vrot.lane.b32.xlu0 %v647, 110
  %v650 = vpop.permute.xlu0 %649
  %v652 = vmul.f32 %v31, %v650
  %v653 = vmul.f32 %v32, %v650
  %v654 = vmul.f32 %v33, %v650
  %v655 = vsel %vm107, %v652, 0.0
  %656 = vadd.xlane.f32.xlu0 %v655
  %v657 = vpop.xlane.xlu0 %656
  %v658 = vsel %vm107, %v653, 0.0
  %659 = vadd.xlane.f32.xlu0 %v658
  %v660 = vpop.xlane.xlu0 %659
  %v661 = vsel %vm114, %v654, 0.0
  %662 = vadd.xlane.f32.xlu0 %v661
  %v663 = vpop.xlane.xlu0 %662
  %v664 = vlaneseq
  %v665 = vshrl.u32 %v664, 7
  %v666 = vsub.s32 0, %v665
  %v667 = vrot.slane %v611, %v666
  %669 = vrot.lane.b32.xlu0 %v667, 92
  %v670 = vpop.permute.xlu0 %669
  %v672 = vmul.f32 %v41, %v670
  %v673 = vmul.f32 %v42, %v670
  %v674 = vmul.f32 %v43, %v670
  %v675 = vsel %vm121, %v672, 0.0
  %676 = vadd.xlane.f32.xlu0 %v675
  %v677 = vpop.xlane.xlu0 %676
  %v678 = vsel %vm121, %v673, 0.0
  %679 = vadd.xlane.f32.xlu0 %v678
  %v680 = vpop.xlane.xlu0 %679
  %v681 = vsel %vm128, %v674, 0.0
  %682 = vadd.xlane.f32.xlu0 %v681
  %v683 = vpop.xlane.xlu0 %682
  %v684 = vadd.f32 %v657, %v677
  %v685 = vadd.f32 %v660, %v680
  %v686 = vadd.f32 %v663, %v683
  %v687 = vmul.f32 %v684, %v11
  %v688 = vmul.f32 %v685, %v12
  %v689 = vmul.f32 %v686, %v13
  %v690 = vsel %vm138, %v687, 0.0
  %v691 = vsel %vm138, %v688, 0.0
  %v692 = vadd.f32 %v690, %v691
  %v693 = vsel %vm142, %v689, 0.0
  %v694 = vadd.f32 %v692, %v693
  %v695 = vrot.slane %v694, 4
  %v696 = vadd.f32 %v694, %v695
  %v697 = vrot.slane %v696, 2
  %v698 = vadd.f32 %v696, %v697
  %v699 = vrot.slane %v698, 1
  %v700 = vadd.f32 %v698, %v699
  %v701 = vadd.f32 %v14, %v700
  %v702 = vtanh.pop %v701
  %v703 = vmul.f32 %v702, 0.5
  %v704 = vadd.f32 %v703, 0.5
  %v705 = vmul.f32 %v704, %v605
  %707 = vrot.lane.b32.xlu0 %v702, 104
  %v708 = vpop.permute.xlu0 %707
  %v710 = vmul.f32 %v704, %v708
  %712 = vrot.lane.b32.xlu0 %v710, 12
  %v713 = vpop.permute.xlu0 %712
  %v715 = vadd.f32 %v705, %v713
  %v716 = vtanh.pop %v715
  %718 = vrot.lane.b32.xlu0 %v716, 24
  %v719 = vpop.permute.xlu0 %718
  %v721 = vmul.f32 %v704, %v719
  %v722 = vmul.f32 %v684, %v8
  %v723 = vsel %vm67, %v722, 0.0
  %v724 = vrot.slane %v723, 4
  %v725 = vadd.f32 %v723, %v724
  %v726 = vrot.slane %v725, 2
  %v727 = vadd.f32 %v725, %v726
  %v728 = vrot.slane %v727, 1
  %v729 = vadd.f32 %v727, %v728
  %v730 = vadd.f32 %v64, %v729
  %v731 = vtanh.pop %v730
  %v732 = vmul.f32 %v731, 0.5
  %v733 = vadd.f32 %v732, 0.5
  %v735 = vrot.slane %v637, 7
  %v737 = vmul.f32 %v733, %v735
  %739 = vrot.lane.b32.xlu0 %v731, 116
  %v740 = vpop.permute.xlu0 %739
  %v742 = vmul.f32 %v733, %v740
  %744 = vrot.lane.b32.xlu0 %v742, 6
  %v745 = vpop.permute.xlu0 %744
  %v747 = vadd.f32 %v737, %v745
  %v748 = vtanh.pop %v747
  %750 = vrot.lane.b32.xlu0 %v748, 12
  %v751 = vpop.permute.xlu0 %750
  %v753 = vmul.f32 %v733, %v751
  %v754 = vlaneseq
  %v755 = vshrl.u32 %v754, 7
  %v756 = vsub.s32 6, %v755
  %v757 = vrot.slane %v753, %v756
  %759 = vrot.lane.b32.xlu0 %v757, 110
  %v760 = vpop.permute.xlu0 %759
  %v762 = vmul.f32 %v31, %v760
  %v763 = vmul.f32 %v32, %v760
  %v764 = vmul.f32 %v33, %v760
  %v765 = vsel %vm107, %v762, 0.0
  %766 = vadd.xlane.f32.xlu0 %v765
  %v767 = vpop.xlane.xlu0 %766
  %v768 = vsel %vm107, %v763, 0.0
  %769 = vadd.xlane.f32.xlu0 %v768
  %v770 = vpop.xlane.xlu0 %769
  %v771 = vsel %vm114, %v764, 0.0
  %772 = vadd.xlane.f32.xlu0 %v771
  %v773 = vpop.xlane.xlu0 %772
  %v774 = vlaneseq
  %v775 = vshrl.u32 %v774, 7
  %v776 = vsub.s32 0, %v775
  %v777 = vrot.slane %v721, %v776
  %779 = vrot.lane.b32.xlu0 %v777, 92
  %v780 = vpop.permute.xlu0 %779
  %v782 = vmul.f32 %v41, %v780
  %v783 = vmul.f32 %v42, %v780
  %v784 = vmul.f32 %v43, %v780
  %v785 = vsel %vm121, %v782, 0.0
  %786 = vadd.xlane.f32.xlu0 %v785
  %v787 = vpop.xlane.xlu0 %786
  %v788 = vsel %vm121, %v783, 0.0
  %789 = vadd.xlane.f32.xlu0 %v788
  %v790 = vpop.xlane.xlu0 %789
  %v791 = vsel %vm128, %v784, 0.0
  %792 = vadd.xlane.f32.xlu0 %v791
  %v793 = vpop.xlane.xlu0 %792
  %v794 = vadd.f32 %v767, %v787
  %v795 = vadd.f32 %v770, %v790
  %v796 = vadd.f32 %v773, %v793
  %v797 = vmul.f32 %v794, %v11
  %v798 = vmul.f32 %v795, %v12
  %v799 = vmul.f32 %v796, %v13
  %v800 = vsel %vm138, %v797, 0.0
  %v801 = vsel %vm138, %v798, 0.0
  %v802 = vadd.f32 %v800, %v801
  %v803 = vsel %vm142, %v799, 0.0
  %v804 = vadd.f32 %v802, %v803
  %v805 = vrot.slane %v804, 4
  %v806 = vadd.f32 %v804, %v805
  %v807 = vrot.slane %v806, 2
  %v808 = vadd.f32 %v806, %v807
  %v809 = vrot.slane %v808, 1
  %v810 = vadd.f32 %v808, %v809
  %v811 = vadd.f32 %v14, %v810
  %v812 = vtanh.pop %v811
  %v813 = vmul.f32 %v812, 0.5
  %v814 = vadd.f32 %v813, 0.5
  %v815 = vmul.f32 %v814, %v715
  %817 = vrot.lane.b32.xlu0 %v812, 104
  %v818 = vpop.permute.xlu0 %817
  %v820 = vmul.f32 %v814, %v818
  %822 = vrot.lane.b32.xlu0 %v820, 12
  %v823 = vpop.permute.xlu0 %822
  %v825 = vadd.f32 %v815, %v823
  %v826 = vtanh.pop %v825
  %828 = vrot.lane.b32.xlu0 %v826, 24
  %v829 = vpop.permute.xlu0 %828
  %v831 = vmul.f32 %v814, %v829
  %v832 = vmul.f32 %v794, %v8
  %v833 = vsel %vm67, %v832, 0.0
  %v834 = vrot.slane %v833, 4
  %v835 = vadd.f32 %v833, %v834
  %v836 = vrot.slane %v835, 2
  %v837 = vadd.f32 %v835, %v836
  %v838 = vrot.slane %v837, 1
  %v839 = vadd.f32 %v837, %v838
  %v840 = vadd.f32 %v64, %v839
  %v841 = vtanh.pop %v840
  %v842 = vmul.f32 %v841, 0.5
  %v843 = vadd.f32 %v842, 0.5
  %v845 = vrot.slane %v747, 7
  %v847 = vmul.f32 %v843, %v845
  %849 = vrot.lane.b32.xlu0 %v841, 116
  %v850 = vpop.permute.xlu0 %849
  %v852 = vmul.f32 %v843, %v850
  %854 = vrot.lane.b32.xlu0 %v852, 6
  %v855 = vpop.permute.xlu0 %854
  %v857 = vadd.f32 %v847, %v855
  %v858 = vtanh.pop %v857
  %860 = vrot.lane.b32.xlu0 %v858, 12
  %v861 = vpop.permute.xlu0 %860
  %v863 = vmul.f32 %v843, %v861
  %v864 = vlaneseq
  %v865 = vshrl.u32 %v864, 7
  %v866 = vsub.s32 7, %v865
  %v867 = vrot.slane %v863, %v866
  %869 = vrot.lane.b32.xlu0 %v867, 110
  %v870 = vpop.permute.xlu0 %869
  %v872 = vmul.f32 %v31, %v870
  %v873 = vmul.f32 %v32, %v870
  %v874 = vmul.f32 %v33, %v870
  %v875 = vsel %vm107, %v872, 0.0
  %876 = vadd.xlane.f32.xlu0 %v875
  %v877 = vpop.xlane.xlu0 %876
  %v878 = vsel %vm107, %v873, 0.0
  %879 = vadd.xlane.f32.xlu0 %v878
  %v880 = vpop.xlane.xlu0 %879
  %v881 = vsel %vm114, %v874, 0.0
  %882 = vadd.xlane.f32.xlu0 %v881
  %v883 = vpop.xlane.xlu0 %882
  %v884 = vlaneseq
  %v885 = vshrl.u32 %v884, 7
  %v886 = vsub.s32 0, %v885
  %v887 = vrot.slane %v831, %v886
  %889 = vrot.lane.b32.xlu0 %v887, 92
  %v890 = vpop.permute.xlu0 %889
  %v892 = vmul.f32 %v41, %v890
  %v893 = vmul.f32 %v42, %v890
  %v894 = vmul.f32 %v43, %v890
  %v895 = vsel %vm121, %v892, 0.0
  %896 = vadd.xlane.f32.xlu0 %v895
  %v897 = vpop.xlane.xlu0 %896
  %v898 = vsel %vm121, %v893, 0.0
  %899 = vadd.xlane.f32.xlu0 %v898
  %v900 = vpop.xlane.xlu0 %899
  %v901 = vsel %vm128, %v894, 0.0
  %902 = vadd.xlane.f32.xlu0 %v901
  %v903 = vpop.xlane.xlu0 %902
  %v904 = vadd.f32 %v877, %v897
  %v905 = vadd.f32 %v880, %v900
  %v906 = vadd.f32 %v883, %v903
  %v907 = vmul.f32 %v904, %v11
  %v908 = vmul.f32 %v905, %v12
  %v909 = vmul.f32 %v906, %v13
  %v910 = vsel %vm138, %v907, 0.0
  %v911 = vsel %vm138, %v908, 0.0
  %v912 = vadd.f32 %v910, %v911
  %v913 = vsel %vm142, %v909, 0.0
  %v914 = vadd.f32 %v912, %v913
  %v915 = vrot.slane %v914, 4
  %v916 = vadd.f32 %v914, %v915
  %v917 = vrot.slane %v916, 2
  %v918 = vadd.f32 %v916, %v917
  %v919 = vrot.slane %v918, 1
  %v920 = vadd.f32 %v918, %v919
  %v921 = vadd.f32 %v14, %v920
  %v922 = vtanh.pop %v921
  %v923 = vmul.f32 %v922, 0.5
  %v924 = vadd.f32 %v923, 0.5
  %v925 = vmul.f32 %v924, %v825
  %927 = vrot.lane.b32.xlu0 %v922, 104
  %v928 = vpop.permute.xlu0 %927
  %v930 = vmul.f32 %v924, %v928
  %932 = vrot.lane.b32.xlu0 %v930, 12
  %v933 = vpop.permute.xlu0 %932
  %v935 = vadd.f32 %v925, %v933
  %v936 = vtanh.pop %v935
  %938 = vrot.lane.b32.xlu0 %v936, 24
  %v939 = vpop.permute.xlu0 %938
  %v941 = vmul.f32 %v924, %v939
  %v942 = vmul.f32 %v904, %v8
  %v943 = vsel %vm67, %v942, 0.0
  %v944 = vrot.slane %v943, 4
  %v945 = vadd.f32 %v943, %v944
  %v946 = vrot.slane %v945, 2
  %v947 = vadd.f32 %v945, %v946
  %v948 = vrot.slane %v947, 1
  %v949 = vadd.f32 %v947, %v948
  %v950 = vadd.f32 %v65, %v949
  %v951 = vtanh.pop %v950
  %v952 = vmul.f32 %v951, 0.5
  %v953 = vadd.f32 %v952, 0.5
  %v955 = vrot.slane %v857, 7
  %v957 = vmul.f32 %v953, %v955
  %959 = vrot.lane.b32.xlu0 %v951, 116
  %v960 = vpop.permute.xlu0 %959
  %v962 = vmul.f32 %v953, %v960
  %964 = vrot.lane.b32.xlu0 %v962, 6
  %v965 = vpop.permute.xlu0 %964
  %v967 = vadd.f32 %v957, %v965
  %v968 = vtanh.pop %v967
  %970 = vrot.lane.b32.xlu0 %v968, 12
  %v971 = vpop.permute.xlu0 %970
  %v973 = vmul.f32 %v953, %v971
  %v974 = vlaneseq
  %v975 = vshrl.u32 %v974, 7
  %v976 = vsub.s32 0, %v975
  %v977 = vrot.slane %v973, %v976
  %979 = vrot.lane.b32.xlu0 %v977, 110
  %v980 = vpop.permute.xlu0 %979
  %v982 = vmul.f32 %v31, %v980
  %v983 = vmul.f32 %v32, %v980
  %v984 = vmul.f32 %v33, %v980
  %v985 = vsel %vm107, %v982, 0.0
  %986 = vadd.xlane.f32.xlu0 %v985
  %v987 = vpop.xlane.xlu0 %986
  %v988 = vsel %vm107, %v983, 0.0
  %989 = vadd.xlane.f32.xlu0 %v988
  %v990 = vpop.xlane.xlu0 %989
  %v991 = vsel %vm114, %v984, 0.0
  %992 = vadd.xlane.f32.xlu0 %v991
  %v993 = vpop.xlane.xlu0 %992
  %v994 = vlaneseq
  %v995 = vshrl.u32 %v994, 7
  %v996 = vsub.s32 0, %v995
  %v997 = vrot.slane %v941, %v996
  %999 = vrot.lane.b32.xlu0 %v997, 92
  %v1000 = vpop.permute.xlu0 %999
  %v1002 = vmul.f32 %v41, %v1000
  %v1003 = vmul.f32 %v42, %v1000
  %v1004 = vmul.f32 %v43, %v1000
  %v1005 = vsel %vm121, %v1002, 0.0
  %1006 = vadd.xlane.f32.xlu0 %v1005
  %v1007 = vpop.xlane.xlu0 %1006
  %v1008 = vsel %vm121, %v1003, 0.0
  %1009 = vadd.xlane.f32.xlu0 %v1008
  %v1010 = vpop.xlane.xlu0 %1009
  %v1011 = vsel %vm128, %v1004, 0.0
  %1012 = vadd.xlane.f32.xlu0 %v1011
  %v1013 = vpop.xlane.xlu0 %1012
  %v1014 = vadd.f32 %v987, %v1007
  %v1015 = vadd.f32 %v990, %v1010
  %v1016 = vadd.f32 %v993, %v1013
  %v1017 = vmul.f32 %v1014, %v11
  %v1018 = vmul.f32 %v1015, %v12
  %v1019 = vmul.f32 %v1016, %v13
  %v1020 = vsel %vm138, %v1017, 0.0
  %v1021 = vsel %vm138, %v1018, 0.0
  %v1022 = vadd.f32 %v1020, %v1021
  %v1023 = vsel %vm142, %v1019, 0.0
  %v1024 = vadd.f32 %v1022, %v1023
  %v1025 = vrot.slane %v1024, 4
  %v1026 = vadd.f32 %v1024, %v1025
  %v1027 = vrot.slane %v1026, 2
  %v1028 = vadd.f32 %v1026, %v1027
  %v1029 = vrot.slane %v1028, 1
  %v1030 = vadd.f32 %v1028, %v1029
  %v1031 = vadd.f32 %v14, %v1030
  %v1032 = vtanh.pop %v1031
  %v1033 = vmul.f32 %v1032, 0.5
  %v1034 = vadd.f32 %v1033, 0.5
  %v1035 = vmul.f32 %v1034, %v935
  %1037 = vrot.lane.b32.xlu0 %v1032, 104
  %v1038 = vpop.permute.xlu0 %1037
  %v1040 = vmul.f32 %v1034, %v1038
  %1042 = vrot.lane.b32.xlu0 %v1040, 12
  %v1043 = vpop.permute.xlu0 %1042
  %v1045 = vadd.f32 %v1035, %v1043
  %v1046 = vtanh.pop %v1045
  %1048 = vrot.lane.b32.xlu0 %v1046, 24
  %v1049 = vpop.permute.xlu0 %1048
  %v1051 = vmul.f32 %v1034, %v1049
  %v1052 = vmul.f32 %v1014, %v8
  %v1053 = vsel %vm67, %v1052, 0.0
  %v1054 = vrot.slane %v1053, 4
  %v1055 = vadd.f32 %v1053, %v1054
  %v1056 = vrot.slane %v1055, 2
  %v1057 = vadd.f32 %v1055, %v1056
  %v1058 = vrot.slane %v1057, 1
  %v1059 = vadd.f32 %v1057, %v1058
  %v1060 = vadd.f32 %v65, %v1059
  %v1061 = vtanh.pop %v1060
  %v1062 = vmul.f32 %v1061, 0.5
  %v1063 = vadd.f32 %v1062, 0.5
  %v1065 = vrot.slane %v967, 7
  %v1067 = vmul.f32 %v1063, %v1065
  %1069 = vrot.lane.b32.xlu0 %v1061, 116
  %v1070 = vpop.permute.xlu0 %1069
  %v1072 = vmul.f32 %v1063, %v1070
  %1074 = vrot.lane.b32.xlu0 %v1072, 6
  %v1075 = vpop.permute.xlu0 %1074
  %v1077 = vadd.f32 %v1067, %v1075
  %v1078 = vtanh.pop %v1077
  %1080 = vrot.lane.b32.xlu0 %v1078, 12
  %v1081 = vpop.permute.xlu0 %1080
  %v1083 = vmul.f32 %v1063, %v1081
  %v1084 = vlaneseq
  %v1085 = vshrl.u32 %v1084, 7
  %v1086 = vsub.s32 1, %v1085
  %v1087 = vrot.slane %v1083, %v1086
  %1089 = vrot.lane.b32.xlu0 %v1087, 110
  %v1090 = vpop.permute.xlu0 %1089
  %v1092 = vmul.f32 %v31, %v1090
  %v1093 = vmul.f32 %v32, %v1090
  %v1094 = vmul.f32 %v33, %v1090
  %v1095 = vsel %vm107, %v1092, 0.0
  %1096 = vadd.xlane.f32.xlu0 %v1095
  %v1097 = vpop.xlane.xlu0 %1096
  %v1098 = vsel %vm107, %v1093, 0.0
  %1099 = vadd.xlane.f32.xlu0 %v1098
  %v1100 = vpop.xlane.xlu0 %1099
  %v1101 = vsel %vm114, %v1094, 0.0
  %1102 = vadd.xlane.f32.xlu0 %v1101
  %v1103 = vpop.xlane.xlu0 %1102
  %v1104 = vlaneseq
  %v1105 = vshrl.u32 %v1104, 7
  %v1106 = vsub.s32 0, %v1105
  %v1107 = vrot.slane %v1051, %v1106
  %1109 = vrot.lane.b32.xlu0 %v1107, 92
  %v1110 = vpop.permute.xlu0 %1109
  %v1112 = vmul.f32 %v41, %v1110
  %v1113 = vmul.f32 %v42, %v1110
  %v1114 = vmul.f32 %v43, %v1110
  %v1115 = vsel %vm121, %v1112, 0.0
  %1116 = vadd.xlane.f32.xlu0 %v1115
  %v1117 = vpop.xlane.xlu0 %1116
  %v1118 = vsel %vm121, %v1113, 0.0
  %1119 = vadd.xlane.f32.xlu0 %v1118
  %v1120 = vpop.xlane.xlu0 %1119
  %v1121 = vsel %vm128, %v1114, 0.0
  %1122 = vadd.xlane.f32.xlu0 %v1121
  %v1123 = vpop.xlane.xlu0 %1122
  %v1124 = vadd.f32 %v1097, %v1117
  %v1125 = vadd.f32 %v1100, %v1120
  %v1126 = vadd.f32 %v1103, %v1123
  %v1127 = vmul.f32 %v1124, %v11
  %v1128 = vmul.f32 %v1125, %v12
  %v1129 = vmul.f32 %v1126, %v13
  %v1130 = vsel %vm138, %v1127, 0.0
  %v1131 = vsel %vm138, %v1128, 0.0
  %v1132 = vadd.f32 %v1130, %v1131
  %v1133 = vsel %vm142, %v1129, 0.0
  %v1134 = vadd.f32 %v1132, %v1133
  %v1135 = vrot.slane %v1134, 4
  %v1136 = vadd.f32 %v1134, %v1135
  %v1137 = vrot.slane %v1136, 2
  %v1138 = vadd.f32 %v1136, %v1137
  %v1139 = vrot.slane %v1138, 1
  %v1140 = vadd.f32 %v1138, %v1139
  %v1141 = vadd.f32 %v14, %v1140
  %v1142 = vtanh.pop %v1141
  %v1143 = vmul.f32 %v1142, 0.5
  %v1144 = vadd.f32 %v1143, 0.5
  %v1145 = vmul.f32 %v1144, %v1045
  %1147 = vrot.lane.b32.xlu0 %v1142, 104
  %v1148 = vpop.permute.xlu0 %1147
  %v1150 = vmul.f32 %v1144, %v1148
  %1152 = vrot.lane.b32.xlu0 %v1150, 12
  %v1153 = vpop.permute.xlu0 %1152
  %v1155 = vadd.f32 %v1145, %v1153
  %v1156 = vtanh.pop %v1155
  %1158 = vrot.lane.b32.xlu0 %v1156, 24
  %v1159 = vpop.permute.xlu0 %1158
  %v1161 = vmul.f32 %v1144, %v1159
  %v1162 = vmul.f32 %v1124, %v8
  %v1163 = vsel %vm67, %v1162, 0.0
  %v1164 = vrot.slane %v1163, 4
  %v1165 = vadd.f32 %v1163, %v1164
  %v1166 = vrot.slane %v1165, 2
  %v1167 = vadd.f32 %v1165, %v1166
  %v1168 = vrot.slane %v1167, 1
  %v1169 = vadd.f32 %v1167, %v1168
  %v1170 = vadd.f32 %v65, %v1169
  %v1171 = vtanh.pop %v1170
  %v1172 = vmul.f32 %v1171, 0.5
  %v1173 = vadd.f32 %v1172, 0.5
  %v1175 = vrot.slane %v1077, 7
  %v1177 = vmul.f32 %v1173, %v1175
  %1179 = vrot.lane.b32.xlu0 %v1171, 116
  %v1180 = vpop.permute.xlu0 %1179
  %v1182 = vmul.f32 %v1173, %v1180
  %1184 = vrot.lane.b32.xlu0 %v1182, 6
  %v1185 = vpop.permute.xlu0 %1184
  %v1187 = vadd.f32 %v1177, %v1185
  %v1188 = vtanh.pop %v1187
  %1190 = vrot.lane.b32.xlu0 %v1188, 12
  %v1191 = vpop.permute.xlu0 %1190
  %v1193 = vmul.f32 %v1173, %v1191
  %v1194 = vlaneseq
  %v1195 = vshrl.u32 %v1194, 7
  %v1196 = vsub.s32 2, %v1195
  %v1197 = vrot.slane %v1193, %v1196
  %1199 = vrot.lane.b32.xlu0 %v1197, 110
  %v1200 = vpop.permute.xlu0 %1199
  %v1202 = vmul.f32 %v31, %v1200
  %v1203 = vmul.f32 %v32, %v1200
  %v1204 = vmul.f32 %v33, %v1200
  %v1205 = vsel %vm107, %v1202, 0.0
  %1206 = vadd.xlane.f32.xlu0 %v1205
  %v1207 = vpop.xlane.xlu0 %1206
  %v1208 = vsel %vm107, %v1203, 0.0
  %1209 = vadd.xlane.f32.xlu0 %v1208
  %v1210 = vpop.xlane.xlu0 %1209
  %v1211 = vsel %vm114, %v1204, 0.0
  %1212 = vadd.xlane.f32.xlu0 %v1211
  %v1213 = vpop.xlane.xlu0 %1212
  %v1214 = vlaneseq
  %v1215 = vshrl.u32 %v1214, 7
  %v1216 = vsub.s32 0, %v1215
  %v1217 = vrot.slane %v1161, %v1216
  %1219 = vrot.lane.b32.xlu0 %v1217, 92
  %v1220 = vpop.permute.xlu0 %1219
  %v1222 = vmul.f32 %v41, %v1220
  %v1223 = vmul.f32 %v42, %v1220
  %v1224 = vmul.f32 %v43, %v1220
  %v1225 = vsel %vm121, %v1222, 0.0
  %1226 = vadd.xlane.f32.xlu0 %v1225
  %v1227 = vpop.xlane.xlu0 %1226
  %v1228 = vsel %vm121, %v1223, 0.0
  %1229 = vadd.xlane.f32.xlu0 %v1228
  %v1230 = vpop.xlane.xlu0 %1229
  %v1231 = vsel %vm128, %v1224, 0.0
  %1232 = vadd.xlane.f32.xlu0 %v1231
  %v1233 = vpop.xlane.xlu0 %1232
  %v1234 = vadd.f32 %v1207, %v1227
  %v1235 = vadd.f32 %v1210, %v1230
  %v1236 = vadd.f32 %v1213, %v1233
  %v1237 = vmul.f32 %v1234, %v11
  %v1238 = vmul.f32 %v1235, %v12
  %v1239 = vmul.f32 %v1236, %v13
  %v1240 = vsel %vm138, %v1237, 0.0
  %v1241 = vsel %vm138, %v1238, 0.0
  %v1242 = vadd.f32 %v1240, %v1241
  %v1243 = vsel %vm142, %v1239, 0.0
  %v1244 = vadd.f32 %v1242, %v1243
  %v1245 = vrot.slane %v1244, 4
  %v1246 = vadd.f32 %v1244, %v1245
  %v1247 = vrot.slane %v1246, 2
  %v1248 = vadd.f32 %v1246, %v1247
  %v1249 = vrot.slane %v1248, 1
  %v1250 = vadd.f32 %v1248, %v1249
  %v1251 = vadd.f32 %v14, %v1250
  %v1252 = vtanh.pop %v1251
  %v1253 = vmul.f32 %v1252, 0.5
  %v1254 = vadd.f32 %v1253, 0.5
  %v1255 = vmul.f32 %v1254, %v1155
  %1257 = vrot.lane.b32.xlu0 %v1252, 104
  %v1258 = vpop.permute.xlu0 %1257
  %v1260 = vmul.f32 %v1254, %v1258
  %1262 = vrot.lane.b32.xlu0 %v1260, 12
  %v1263 = vpop.permute.xlu0 %1262
  %v1265 = vadd.f32 %v1255, %v1263
  %v1266 = vtanh.pop %v1265
  %1268 = vrot.lane.b32.xlu0 %v1266, 24
  %v1269 = vpop.permute.xlu0 %1268
  %v1271 = vmul.f32 %v1254, %v1269
  %v1272 = vmul.f32 %v1234, %v8
  %v1273 = vsel %vm67, %v1272, 0.0
  %v1274 = vrot.slane %v1273, 4
  %v1275 = vadd.f32 %v1273, %v1274
  %v1276 = vrot.slane %v1275, 2
  %v1277 = vadd.f32 %v1275, %v1276
  %v1278 = vrot.slane %v1277, 1
  %v1279 = vadd.f32 %v1277, %v1278
  %v1280 = vadd.f32 %v65, %v1279
  %v1281 = vtanh.pop %v1280
  %v1282 = vmul.f32 %v1281, 0.5
  %v1283 = vadd.f32 %v1282, 0.5
  %v1285 = vrot.slane %v1187, 7
  %v1287 = vmul.f32 %v1283, %v1285
  %1289 = vrot.lane.b32.xlu0 %v1281, 116
  %v1290 = vpop.permute.xlu0 %1289
  %v1292 = vmul.f32 %v1283, %v1290
  %1294 = vrot.lane.b32.xlu0 %v1292, 6
  %v1295 = vpop.permute.xlu0 %1294
  %v1297 = vadd.f32 %v1287, %v1295
  %v1298 = vtanh.pop %v1297
  %1300 = vrot.lane.b32.xlu0 %v1298, 12
  %v1301 = vpop.permute.xlu0 %1300
  %v1303 = vmul.f32 %v1283, %v1301
  %v1304 = vlaneseq
  %v1305 = vshrl.u32 %v1304, 7
  %v1306 = vsub.s32 3, %v1305
  %v1307 = vrot.slane %v1303, %v1306
  %1309 = vrot.lane.b32.xlu0 %v1307, 110
  %v1310 = vpop.permute.xlu0 %1309
  %v1312 = vmul.f32 %v31, %v1310
  %v1313 = vmul.f32 %v32, %v1310
  %v1314 = vmul.f32 %v33, %v1310
  %v1315 = vsel %vm107, %v1312, 0.0
  %1316 = vadd.xlane.f32.xlu0 %v1315
  %v1317 = vpop.xlane.xlu0 %1316
  %v1318 = vsel %vm107, %v1313, 0.0
  %1319 = vadd.xlane.f32.xlu0 %v1318
  %v1320 = vpop.xlane.xlu0 %1319
  %v1321 = vsel %vm114, %v1314, 0.0
  %1322 = vadd.xlane.f32.xlu0 %v1321
  %v1323 = vpop.xlane.xlu0 %1322
  %v1324 = vlaneseq
  %v1325 = vshrl.u32 %v1324, 7
  %v1326 = vsub.s32 0, %v1325
  %v1327 = vrot.slane %v1271, %v1326
  %1329 = vrot.lane.b32.xlu0 %v1327, 92
  %v1330 = vpop.permute.xlu0 %1329
  %v1332 = vmul.f32 %v41, %v1330
  %v1333 = vmul.f32 %v42, %v1330
  %v1334 = vmul.f32 %v43, %v1330
  %v1335 = vsel %vm121, %v1332, 0.0
  %1336 = vadd.xlane.f32.xlu0 %v1335
  %v1337 = vpop.xlane.xlu0 %1336
  %v1338 = vsel %vm121, %v1333, 0.0
  %1339 = vadd.xlane.f32.xlu0 %v1338
  %v1340 = vpop.xlane.xlu0 %1339
  %v1341 = vsel %vm128, %v1334, 0.0
  %1342 = vadd.xlane.f32.xlu0 %v1341
  %v1343 = vpop.xlane.xlu0 %1342
  %v1344 = vadd.f32 %v1317, %v1337
  %v1345 = vadd.f32 %v1320, %v1340
  %v1346 = vadd.f32 %v1323, %v1343
  %v1347 = vmul.f32 %v1344, %v11
  %v1348 = vmul.f32 %v1345, %v12
  %v1349 = vmul.f32 %v1346, %v13
  %v1350 = vsel %vm138, %v1347, 0.0
  %v1351 = vsel %vm138, %v1348, 0.0
  %v1352 = vadd.f32 %v1350, %v1351
  %v1353 = vsel %vm142, %v1349, 0.0
  %v1354 = vadd.f32 %v1352, %v1353
  %v1355 = vrot.slane %v1354, 4
  %v1356 = vadd.f32 %v1354, %v1355
  %v1357 = vrot.slane %v1356, 2
  %v1358 = vadd.f32 %v1356, %v1357
  %v1359 = vrot.slane %v1358, 1
  %v1360 = vadd.f32 %v1358, %v1359
  %v1361 = vadd.f32 %v14, %v1360
  %v1362 = vtanh.pop %v1361
  %v1363 = vmul.f32 %v1362, 0.5
  %v1364 = vadd.f32 %v1363, 0.5
  %v1365 = vmul.f32 %v1364, %v1265
  %1367 = vrot.lane.b32.xlu0 %v1362, 104
  %v1368 = vpop.permute.xlu0 %1367
  %v1370 = vmul.f32 %v1364, %v1368
  %1372 = vrot.lane.b32.xlu0 %v1370, 12
  %v1373 = vpop.permute.xlu0 %1372
  %v1375 = vadd.f32 %v1365, %v1373
  %v1376 = vtanh.pop %v1375
  %1378 = vrot.lane.b32.xlu0 %v1376, 24
  %v1379 = vpop.permute.xlu0 %1378
  %v1381 = vmul.f32 %v1364, %v1379
  %v1382 = vmul.f32 %v1344, %v8
  %v1383 = vsel %vm67, %v1382, 0.0
  %v1384 = vrot.slane %v1383, 4
  %v1385 = vadd.f32 %v1383, %v1384
  %v1386 = vrot.slane %v1385, 2
  %v1387 = vadd.f32 %v1385, %v1386
  %v1388 = vrot.slane %v1387, 1
  %v1389 = vadd.f32 %v1387, %v1388
  %v1390 = vadd.f32 %v65, %v1389
  %v1391 = vtanh.pop %v1390
  %v1392 = vmul.f32 %v1391, 0.5
  %v1393 = vadd.f32 %v1392, 0.5
  %v1395 = vrot.slane %v1297, 7
  %v1397 = vmul.f32 %v1393, %v1395
  %1399 = vrot.lane.b32.xlu0 %v1391, 116
  %v1400 = vpop.permute.xlu0 %1399
  %v1402 = vmul.f32 %v1393, %v1400
  %1404 = vrot.lane.b32.xlu0 %v1402, 6
  %v1405 = vpop.permute.xlu0 %1404
  %v1407 = vadd.f32 %v1397, %v1405
  %v1408 = vtanh.pop %v1407
  %1410 = vrot.lane.b32.xlu0 %v1408, 12
  %v1411 = vpop.permute.xlu0 %1410
  %v1413 = vmul.f32 %v1393, %v1411
  %v1414 = vlaneseq
  %v1415 = vshrl.u32 %v1414, 7
  %v1416 = vsub.s32 4, %v1415
  %v1417 = vrot.slane %v1413, %v1416
  %1419 = vrot.lane.b32.xlu0 %v1417, 110
  %v1420 = vpop.permute.xlu0 %1419
  %v1422 = vmul.f32 %v31, %v1420
  %v1423 = vmul.f32 %v32, %v1420
  %v1424 = vmul.f32 %v33, %v1420
  %v1425 = vsel %vm107, %v1422, 0.0
  %1426 = vadd.xlane.f32.xlu0 %v1425
  %v1427 = vpop.xlane.xlu0 %1426
  %v1428 = vsel %vm107, %v1423, 0.0
  %1429 = vadd.xlane.f32.xlu0 %v1428
  %v1430 = vpop.xlane.xlu0 %1429
  %v1431 = vsel %vm114, %v1424, 0.0
  %1432 = vadd.xlane.f32.xlu0 %v1431
  %v1433 = vpop.xlane.xlu0 %1432
  %v1434 = vlaneseq
  %v1435 = vshrl.u32 %v1434, 7
  %v1436 = vsub.s32 0, %v1435
  %v1437 = vrot.slane %v1381, %v1436
  %1439 = vrot.lane.b32.xlu0 %v1437, 92
  %v1440 = vpop.permute.xlu0 %1439
  %v1442 = vmul.f32 %v41, %v1440
  %v1443 = vmul.f32 %v42, %v1440
  %v1444 = vmul.f32 %v43, %v1440
  %v1445 = vsel %vm121, %v1442, 0.0
  %1446 = vadd.xlane.f32.xlu0 %v1445
  %v1447 = vpop.xlane.xlu0 %1446
  %v1448 = vsel %vm121, %v1443, 0.0
  %1449 = vadd.xlane.f32.xlu0 %v1448
  %v1450 = vpop.xlane.xlu0 %1449
  %v1451 = vsel %vm128, %v1444, 0.0
  %1452 = vadd.xlane.f32.xlu0 %v1451
  %v1453 = vpop.xlane.xlu0 %1452
  %v1454 = vadd.f32 %v1427, %v1447
  %v1455 = vadd.f32 %v1430, %v1450
  %v1456 = vadd.f32 %v1433, %v1453
  %v1457 = vmul.f32 %v1454, %v11
  %v1458 = vmul.f32 %v1455, %v12
  %v1459 = vmul.f32 %v1456, %v13
  %v1460 = vsel %vm138, %v1457, 0.0
  %v1461 = vsel %vm138, %v1458, 0.0
  %v1462 = vadd.f32 %v1460, %v1461
  %v1463 = vsel %vm142, %v1459, 0.0
  %v1464 = vadd.f32 %v1462, %v1463
  %v1465 = vrot.slane %v1464, 4
  %v1466 = vadd.f32 %v1464, %v1465
  %v1467 = vrot.slane %v1466, 2
  %v1468 = vadd.f32 %v1466, %v1467
  %v1469 = vrot.slane %v1468, 1
  %v1470 = vadd.f32 %v1468, %v1469
  %v1471 = vadd.f32 %v14, %v1470
  %v1472 = vtanh.pop %v1471
  %v1473 = vmul.f32 %v1472, 0.5
  %v1474 = vadd.f32 %v1473, 0.5
  %v1475 = vmul.f32 %v1474, %v1375
  %1477 = vrot.lane.b32.xlu0 %v1472, 104
  %v1478 = vpop.permute.xlu0 %1477
  %v1480 = vmul.f32 %v1474, %v1478
  %1482 = vrot.lane.b32.xlu0 %v1480, 12
  %v1483 = vpop.permute.xlu0 %1482
  %v1485 = vadd.f32 %v1475, %v1483
  %v1486 = vtanh.pop %v1485
  %1488 = vrot.lane.b32.xlu0 %v1486, 24
  %v1489 = vpop.permute.xlu0 %1488
  %v1491 = vmul.f32 %v1474, %v1489
  %v1492 = vmul.f32 %v1454, %v8
  %v1493 = vsel %vm67, %v1492, 0.0
  %v1494 = vrot.slane %v1493, 4
  %v1495 = vadd.f32 %v1493, %v1494
  %v1496 = vrot.slane %v1495, 2
  %v1497 = vadd.f32 %v1495, %v1496
  %v1498 = vrot.slane %v1497, 1
  %v1499 = vadd.f32 %v1497, %v1498
  %v1500 = vadd.f32 %v65, %v1499
  %v1501 = vtanh.pop %v1500
  %v1502 = vmul.f32 %v1501, 0.5
  %v1503 = vadd.f32 %v1502, 0.5
  %v1505 = vrot.slane %v1407, 7
  %v1507 = vmul.f32 %v1503, %v1505
  %1509 = vrot.lane.b32.xlu0 %v1501, 116
  %v1510 = vpop.permute.xlu0 %1509
  %v1512 = vmul.f32 %v1503, %v1510
  %1514 = vrot.lane.b32.xlu0 %v1512, 6
  %v1515 = vpop.permute.xlu0 %1514
  %v1517 = vadd.f32 %v1507, %v1515
  %v1518 = vtanh.pop %v1517
  %1520 = vrot.lane.b32.xlu0 %v1518, 12
  %v1521 = vpop.permute.xlu0 %1520
  %v1523 = vmul.f32 %v1503, %v1521
  %v1524 = vlaneseq
  %v1525 = vshrl.u32 %v1524, 7
  %v1526 = vsub.s32 5, %v1525
  %v1527 = vrot.slane %v1523, %v1526
  %1529 = vrot.lane.b32.xlu0 %v1527, 110
  %v1530 = vpop.permute.xlu0 %1529
  %v1532 = vmul.f32 %v31, %v1530
  %v1533 = vmul.f32 %v32, %v1530
  %v1534 = vmul.f32 %v33, %v1530
  %v1535 = vsel %vm107, %v1532, 0.0
  %1536 = vadd.xlane.f32.xlu0 %v1535
  %v1537 = vpop.xlane.xlu0 %1536
  %v1538 = vsel %vm107, %v1533, 0.0
  %1539 = vadd.xlane.f32.xlu0 %v1538
  %v1540 = vpop.xlane.xlu0 %1539
  %v1541 = vsel %vm114, %v1534, 0.0
  %1542 = vadd.xlane.f32.xlu0 %v1541
  %v1543 = vpop.xlane.xlu0 %1542
  %v1544 = vlaneseq
  %v1545 = vshrl.u32 %v1544, 7
  %v1546 = vsub.s32 0, %v1545
  %v1547 = vrot.slane %v1491, %v1546
  %1549 = vrot.lane.b32.xlu0 %v1547, 92
  %v1550 = vpop.permute.xlu0 %1549
  %v1552 = vmul.f32 %v41, %v1550
  %v1553 = vmul.f32 %v42, %v1550
  %v1554 = vmul.f32 %v43, %v1550
  %v1555 = vsel %vm121, %v1552, 0.0
  %1556 = vadd.xlane.f32.xlu0 %v1555
  %v1557 = vpop.xlane.xlu0 %1556
  %v1558 = vsel %vm121, %v1553, 0.0
  %1559 = vadd.xlane.f32.xlu0 %v1558
  %v1560 = vpop.xlane.xlu0 %1559
  %v1561 = vsel %vm128, %v1554, 0.0
  %1562 = vadd.xlane.f32.xlu0 %v1561
  %v1563 = vpop.xlane.xlu0 %1562
  %v1564 = vadd.f32 %v1537, %v1557
  %v1565 = vadd.f32 %v1540, %v1560
  %v1566 = vadd.f32 %v1543, %v1563
  %v1567 = vmul.f32 %v1564, %v11
  %v1568 = vmul.f32 %v1565, %v12
  %v1569 = vmul.f32 %v1566, %v13
  %v1570 = vsel %vm138, %v1567, 0.0
  %v1571 = vsel %vm138, %v1568, 0.0
  %v1572 = vadd.f32 %v1570, %v1571
  %v1573 = vsel %vm142, %v1569, 0.0
  %v1574 = vadd.f32 %v1572, %v1573
  %v1575 = vrot.slane %v1574, 4
  %v1576 = vadd.f32 %v1574, %v1575
  %v1577 = vrot.slane %v1576, 2
  %v1578 = vadd.f32 %v1576, %v1577
  %v1579 = vrot.slane %v1578, 1
  %v1580 = vadd.f32 %v1578, %v1579
  %v1581 = vadd.f32 %v14, %v1580
  %v1582 = vtanh.pop %v1581
  %v1583 = vmul.f32 %v1582, 0.5
  %v1584 = vadd.f32 %v1583, 0.5
  %v1585 = vmul.f32 %v1584, %v1485
  %1587 = vrot.lane.b32.xlu0 %v1582, 104
  %v1588 = vpop.permute.xlu0 %1587
  %v1590 = vmul.f32 %v1584, %v1588
  %1592 = vrot.lane.b32.xlu0 %v1590, 12
  %v1593 = vpop.permute.xlu0 %1592
  %v1595 = vadd.f32 %v1585, %v1593
  %v1596 = vtanh.pop %v1595
  %1598 = vrot.lane.b32.xlu0 %v1596, 24
  %v1599 = vpop.permute.xlu0 %1598
  %v1601 = vmul.f32 %v1584, %v1599
  %v1602 = vmul.f32 %v1564, %v8
  %v1603 = vsel %vm67, %v1602, 0.0
  %v1604 = vrot.slane %v1603, 4
  %v1605 = vadd.f32 %v1603, %v1604
  %v1606 = vrot.slane %v1605, 2
  %v1607 = vadd.f32 %v1605, %v1606
  %v1608 = vrot.slane %v1607, 1
  %v1609 = vadd.f32 %v1607, %v1608
  %v1610 = vadd.f32 %v65, %v1609
  %v1611 = vtanh.pop %v1610
  %v1612 = vmul.f32 %v1611, 0.5
  %v1613 = vadd.f32 %v1612, 0.5
  %v1615 = vrot.slane %v1517, 7
  %v1617 = vmul.f32 %v1613, %v1615
  %1619 = vrot.lane.b32.xlu0 %v1611, 116
  %v1620 = vpop.permute.xlu0 %1619
  %v1622 = vmul.f32 %v1613, %v1620
  %1624 = vrot.lane.b32.xlu0 %v1622, 6
  %v1625 = vpop.permute.xlu0 %1624
  %v1627 = vadd.f32 %v1617, %v1625
  %v1628 = vtanh.pop %v1627
  %1630 = vrot.lane.b32.xlu0 %v1628, 12
  %v1631 = vpop.permute.xlu0 %1630
  %v1633 = vmul.f32 %v1613, %v1631
  %v1634 = vlaneseq
  %v1635 = vshrl.u32 %v1634, 7
  %v1636 = vsub.s32 6, %v1635
  %v1637 = vrot.slane %v1633, %v1636
  %1639 = vrot.lane.b32.xlu0 %v1637, 110
  %v1640 = vpop.permute.xlu0 %1639
  %v1642 = vmul.f32 %v31, %v1640
  %v1643 = vmul.f32 %v32, %v1640
  %v1644 = vmul.f32 %v33, %v1640
  %v1645 = vsel %vm107, %v1642, 0.0
  %1646 = vadd.xlane.f32.xlu0 %v1645
  %v1647 = vpop.xlane.xlu0 %1646
  %v1648 = vsel %vm107, %v1643, 0.0
  %1649 = vadd.xlane.f32.xlu0 %v1648
  %v1650 = vpop.xlane.xlu0 %1649
  %v1651 = vsel %vm114, %v1644, 0.0
  %1652 = vadd.xlane.f32.xlu0 %v1651
  %v1653 = vpop.xlane.xlu0 %1652
  %v1654 = vlaneseq
  %v1655 = vshrl.u32 %v1654, 7
  %v1656 = vsub.s32 0, %v1655
  %v1657 = vrot.slane %v1601, %v1656
  %1659 = vrot.lane.b32.xlu0 %v1657, 92
  %v1660 = vpop.permute.xlu0 %1659
  %v1662 = vmul.f32 %v41, %v1660
  %v1663 = vmul.f32 %v42, %v1660
  %v1664 = vmul.f32 %v43, %v1660
  %v1665 = vsel %vm121, %v1662, 0.0
  %1666 = vadd.xlane.f32.xlu0 %v1665
  %v1667 = vpop.xlane.xlu0 %1666
  %v1668 = vsel %vm121, %v1663, 0.0
  %1669 = vadd.xlane.f32.xlu0 %v1668
  %v1670 = vpop.xlane.xlu0 %1669
  %v1671 = vsel %vm128, %v1664, 0.0
  %1672 = vadd.xlane.f32.xlu0 %v1671
  %v1673 = vpop.xlane.xlu0 %1672
  %v1674 = vadd.f32 %v1647, %v1667
  %v1675 = vadd.f32 %v1650, %v1670
  %v1676 = vadd.f32 %v1653, %v1673
  %v1677 = vmul.f32 %v1674, %v11
  %v1678 = vmul.f32 %v1675, %v12
  %v1679 = vmul.f32 %v1676, %v13
  %v1680 = vsel %vm138, %v1677, 0.0
  %v1681 = vsel %vm138, %v1678, 0.0
  %v1682 = vadd.f32 %v1680, %v1681
  %v1683 = vsel %vm142, %v1679, 0.0
  %v1684 = vadd.f32 %v1682, %v1683
  %v1685 = vrot.slane %v1684, 4
  %v1686 = vadd.f32 %v1684, %v1685
  %v1687 = vrot.slane %v1686, 2
  %v1688 = vadd.f32 %v1686, %v1687
  %v1689 = vrot.slane %v1688, 1
  %v1690 = vadd.f32 %v1688, %v1689
  %v1691 = vadd.f32 %v14, %v1690
  %v1692 = vtanh.pop %v1691
  %v1693 = vmul.f32 %v1692, 0.5
  %v1694 = vadd.f32 %v1693, 0.5
  %v1695 = vmul.f32 %v1694, %v1595
  %1697 = vrot.lane.b32.xlu0 %v1692, 104
  %v1698 = vpop.permute.xlu0 %1697
  %v1700 = vmul.f32 %v1694, %v1698
  %1702 = vrot.lane.b32.xlu0 %v1700, 12
  %v1703 = vpop.permute.xlu0 %1702
  %v1705 = vadd.f32 %v1695, %v1703
  %v1706 = vtanh.pop %v1705
  %1708 = vrot.lane.b32.xlu0 %v1706, 24
  %v1709 = vpop.permute.xlu0 %1708
  %v1711 = vmul.f32 %v1694, %v1709
  %v1712 = vmul.f32 %v1674, %v8
  %v1713 = vsel %vm67, %v1712, 0.0
  %v1714 = vrot.slane %v1713, 4
  %v1715 = vadd.f32 %v1713, %v1714
  %v1716 = vrot.slane %v1715, 2
  %v1717 = vadd.f32 %v1715, %v1716
  %v1718 = vrot.slane %v1717, 1
  %v1719 = vadd.f32 %v1717, %v1718
  %v1720 = vadd.f32 %v65, %v1719
  %v1721 = vtanh.pop %v1720
  %v1722 = vmul.f32 %v1721, 0.5
  %v1723 = vadd.f32 %v1722, 0.5
  %v1725 = vrot.slane %v1627, 7
  %v1727 = vmul.f32 %v1723, %v1725
  %1729 = vrot.lane.b32.xlu0 %v1721, 116
  %v1730 = vpop.permute.xlu0 %1729
  %v1732 = vmul.f32 %v1723, %v1730
  %1734 = vrot.lane.b32.xlu0 %v1732, 6
  %v1735 = vpop.permute.xlu0 %1734
  %v1737 = vadd.f32 %v1727, %v1735
  %v1738 = vtanh.pop %v1737
  %1740 = vrot.lane.b32.xlu0 %v1738, 12
  %v1741 = vpop.permute.xlu0 %1740
  %v1743 = vmul.f32 %v1723, %v1741
  %v1744 = vlaneseq
  %v1745 = vshrl.u32 %v1744, 7
  %v1746 = vsub.s32 7, %v1745
  %v1747 = vrot.slane %v1743, %v1746
  %1749 = vrot.lane.b32.xlu0 %v1747, 110
  %v1750 = vpop.permute.xlu0 %1749
  %v1752 = vmul.f32 %v31, %v1750
  %v1753 = vmul.f32 %v32, %v1750
  %v1754 = vmul.f32 %v33, %v1750
  %v1755 = vsel %vm107, %v1752, 0.0
  %1756 = vadd.xlane.f32.xlu0 %v1755
  %v1757 = vpop.xlane.xlu0 %1756
  %v1758 = vsel %vm107, %v1753, 0.0
  %1759 = vadd.xlane.f32.xlu0 %v1758
  %v1760 = vpop.xlane.xlu0 %1759
  %v1761 = vsel %vm114, %v1754, 0.0
  %1762 = vadd.xlane.f32.xlu0 %v1761
  %v1763 = vpop.xlane.xlu0 %1762
  %v1764 = vlaneseq
  %v1765 = vshrl.u32 %v1764, 7
  %v1766 = vsub.s32 0, %v1765
  %v1767 = vrot.slane %v1711, %v1766
  %1769 = vrot.lane.b32.xlu0 %v1767, 92
  %v1770 = vpop.permute.xlu0 %1769
  %v1772 = vmul.f32 %v41, %v1770
  %v1773 = vmul.f32 %v42, %v1770
  %v1774 = vmul.f32 %v43, %v1770
  %v1775 = vsel %vm121, %v1772, 0.0
  %1776 = vadd.xlane.f32.xlu0 %v1775
  %v1777 = vpop.xlane.xlu0 %1776
  %v1778 = vsel %vm121, %v1773, 0.0
  %1779 = vadd.xlane.f32.xlu0 %v1778
  %v1780 = vpop.xlane.xlu0 %1779
  %v1781 = vsel %vm128, %v1774, 0.0
  %1782 = vadd.xlane.f32.xlu0 %v1781
  %v1783 = vpop.xlane.xlu0 %1782
  %v1784 = vadd.f32 %v1757, %v1777
  %v1785 = vadd.f32 %v1760, %v1780
  %v1786 = vadd.f32 %v1763, %v1783
  %v1787 = vmul.f32 %v1784, %v11
  %v1788 = vmul.f32 %v1785, %v12
  %v1789 = vmul.f32 %v1786, %v13
  %v1790 = vsel %vm138, %v1787, 0.0
  %v1791 = vsel %vm138, %v1788, 0.0
  %v1792 = vadd.f32 %v1790, %v1791
  %v1793 = vsel %vm142, %v1789, 0.0
  %v1794 = vadd.f32 %v1792, %v1793
  %v1795 = vrot.slane %v1794, 4
  %v1796 = vadd.f32 %v1794, %v1795
  %v1797 = vrot.slane %v1796, 2
  %v1798 = vadd.f32 %v1796, %v1797
  %v1799 = vrot.slane %v1798, 1
  %v1800 = vadd.f32 %v1798, %v1799
  %v1801 = vadd.f32 %v14, %v1800
  %v1802 = vtanh.pop %v1801
  %v1803 = vmul.f32 %v1802, 0.5
  %v1804 = vadd.f32 %v1803, 0.5
  %v1805 = vmul.f32 %v1804, %v1705
  %1807 = vrot.lane.b32.xlu0 %v1802, 104
  %v1808 = vpop.permute.xlu0 %1807
  %v1810 = vmul.f32 %v1804, %v1808
  %1812 = vrot.lane.b32.xlu0 %v1810, 12
  %v1813 = vpop.permute.xlu0 %1812
  %v1815 = vadd.f32 %v1805, %v1813
  %v1816 = vtanh.pop %v1815
  %1818 = vrot.lane.b32.xlu0 %v1816, 24
  %v1819 = vpop.permute.xlu0 %1818
  %v1821 = vmul.f32 %v1804, %v1819
  %v1822 = vlaneseq
  %v1823 = vshrl.u32 %v1822, 7
  %v1824 = vsub.s32 0, %v1823
  %v1825 = vrot.slane %v1821, %v1824
  %1828 = vrot.lane.b32.xlu0 %v15, 36
  %v1829 = vpop.permute.xlu0 %1828
  %1830 = vrot.lane.b32.xlu0 %v16, 36
  %v1831 = vpop.permute.xlu0 %1830
  %v1834 = vmul.f32 %v1825, %v1829
  %v1835 = vmul.f32 %v1825, %v1831
  %1838 = vrot.lane.b32.xlu0 %v1834, 92
  %v1839 = vpop.permute.xlu0 %1838
  %1840 = vrot.lane.b32.xlu0 %v1835, 92
  %v1841 = vpop.permute.xlu0 %1840
  %v1844 = vsel %vm121, %v1839, 0.0
  %1845 = vadd.xlane.f32.xlu0 %v1844
  %v1846 = vpop.xlane.xlu0 %1845
  %vm1847 = vcmask 95232
  %v1848 = vsel %vm1847, %v1841, 0.0
  %1849 = vadd.xlane.f32.xlu0 %v1848
  %v1850 = vpop.xlane.xlu0 %1849
  %v1851 = vadd.f32 %v1846, %v15
  %v1852 = vadd.f32 %v1850, %v16
  %1855 = vrot.lane.b32.xlu0 %v1851, 116
  %v1856 = vpop.permute.xlu0 %1855
  %1857 = vrot.lane.b32.xlu0 %v1852, 116
  %v1858 = vpop.permute.xlu0 %1857
  %vm1861 = vcmask 7168
  %1862 = vst.msk [vmem:[%s1] sm:$0xff] %vm1861, %v1856
  %vm1863 = vcmask 5120
  %1864 = vst.msk [vmem:[%s1 + $0x8] sm:$0x3f] %vm1863, %v1858
  // Predicated region
  $region6: #{morse_lstm_forward.1} parent=0 // pred_check
    _
  $region7: #{morse_lstm_forward.1} parent=0 // pred_check_branch
    %1866 = sbr.rel (0) target = $region9
  $region8: #{morse_lstm_forward.1} parent=0 // pred_region
    _
  $region9: #{morse_lstm_forward.1} parent=0 // pred_fallthru
    _
  // Predicated region
  $region10: #{morse_lstm_forward.1} parent=0 // pred_check
    _
  $region11: #{morse_lstm_forward.1} parent=0 // pred_check_branch
    %1868 = sbr.rel (0) target = $region13
  $region12: #{morse_lstm_forward.1} parent=0 // pred_region
    _
  $region13: #{morse_lstm_forward.1} parent=0 // pred_fallthru
    _

</llo_original>
